<compile_context>
chip_gen: v7x
topology: tpu7x:2x2x1
jax: 0.10.0
libtpu: 0.0.40
codegen_flags: <defaults>
</compile_context>

<pallas_src>
import functools

import jax
import jax.numpy as jnp
from jax import lax
from jax.experimental import pallas as pl
from jax.experimental.pallas import tpu as pltpu

# Above every generation's scoped default (16 MiB v5e, 32 MiB v6e/v7x), below
# v7x's 64 MiB physical VMEM.
_VMEM_LIMIT_BYTES = 48 * 1024 * 1024

# Tile targets (f32 activations, bf16 weights).  Sized for the 64 MiB v7x
# budget; v5e/v6e (128 MiB) could take larger N tiles.
_TM_TARGET = 256
_TN_TARGET = 512
_TK_TARGET = 512


# ----------------------------------------------------------------------------
# tile-size helpers
# ----------------------------------------------------------------------------

def _pick_m_tile(m, target=_TM_TARGET):
    """Sublane tile: multiple of 8 (or the full dim).  When everything fits in
    one tile we still split M in two so both v7x TensorCores get work."""
    if m <= 8:
        return m
    if m > target:
        return (target // 8) * 8
    half = -(-m // 2)
    half = -(-half // 8) * 8
    return min(half, m)


def _pick_n_tile(n, target=_TN_TARGET):
    if n <= target:
        return n
    return max((target // 128) * 128, 128)


def _pick_k_tile(k, target=_TK_TARGET):
    """K tile must divide K exactly (padded K blocks would corrupt the
    accumulation); fall back to untiled K otherwise."""
    if k <= target:
        return k
    t = (target // 128) * 128
    while t >= 128:
        if k % t == 0:
            return t
        t -= 128
    return k


# ----------------------------------------------------------------------------
# Pallas kernels
# ----------------------------------------------------------------------------

def _patch_embed_ln_kernel(p_ref, w_ref, pos_ref, g_ref, beta_ref, o_ref, *, eps):
    """Fused patch-conv matmul + class token + positional emb + ln_pre.

    p_ref: (1, T, K) patches with row 0 zeroed (class-token slot)
    pos_ref: (T, width) = pos_emb with class_emb folded into row 0
    """
    x = p_ref[0].astype(jnp.bfloat16)                       # (T, K)
    emb = jnp.dot(x, w_ref[...].astype(jnp.bfloat16),
                  preferred_element_type=jnp.float32)       # (T, width)
    emb = emb + pos_ref[...].astype(jnp.float32)
    mean = jnp.mean(emb, axis=-1, keepdims=True)
    var = jnp.mean(jnp.square(emb - mean), axis=-1, keepdims=True)
    y = (emb - mean) * lax.rsqrt(var + eps)
    y = y * g_ref[...].astype(jnp.float32) + beta_ref[...].astype(jnp.float32)
    o_ref[0] = y.astype(o_ref.dtype)


def _ln_matmul_kernel(*refs, eps, activation, has_bias):
    """out = act(LayerNorm(x) @ w [+ bias]).  K (= width) kept whole per block
    so LN statistics are exact; grid is (M tiles, N tiles), both parallel."""
    x_ref, g_ref, beta_ref, w_ref = refs[0], refs[1], refs[2], refs[3]
    if has_bias:
        bias_ref, o_ref = refs[4], refs[5]
    else:
        bias_ref, o_ref = None, refs[4]

    x = x_ref[...].astype(jnp.float32)
    mean = jnp.mean(x, axis=-1, keepdims=True)
    var = jnp.mean(jnp.square(x - mean), axis=-1, keepdims=True)
    xn = (x - mean) * lax.rsqrt(var + eps)
    xn = xn * g_ref[...].astype(jnp.float32) + beta_ref[...].astype(jnp.float32)

    acc = jnp.dot(xn.astype(jnp.bfloat16), w_ref[...].astype(jnp.bfloat16),
                  preferred_element_type=jnp.float32)
    if has_bias:
        acc = acc + bias_ref[...].astype(jnp.float32)
    if activation == "quick_gelu":                 # CLIP QuickGELU: x*sigmoid(1.702x)
        acc = acc * jax.nn.sigmoid(1.702 * acc)
    o_ref[...] = acc.astype(o_ref.dtype)


def _matmul_kernel(*refs, activation, has_bias, has_residual):
    """Tiled out = act(x @ w [+ bias]) [+ residual] with K-axis accumulation."""
    x_ref, w_ref = refs[0], refs[1]
    idx = 2
    if has_bias:
        bias_ref = refs[idx]; idx += 1
    if has_residual:
        res_ref = refs[idx]; idx += 1
    o_ref = refs[idx]
    acc_ref = refs[idx + 1]

    @pl.when(pl.program_id(2) == 0)
    def _init():
        acc_ref[...] = jnp.zeros_like(acc_ref)

    acc_ref[...] += jnp.dot(x_ref[...].astype(jnp.bfloat16),
                            w_ref[...].astype(jnp.bfloat16),
                            preferred_element_type=jnp.float32)

    @pl.when(pl.program_id(2) == pl.num_programs(2) - 1)
    def _finalize():
        acc = acc_ref[...]
        if has_bias:
            acc = acc + bias_ref[...].astype(jnp.float32)
        if activation == "quick_gelu":
            acc = acc * jax.nn.sigmoid(1.702 * acc)
        if has_residual:
            acc = acc + res_ref[...].astype(jnp.float32)
        o_ref[...] = acc.astype(o_ref.dtype)


def _mhsa_kernel(qkv_ref, o_ref, *, heads, head_dim, scale):
    """Multi-head SDPA for one batch element, fed directly from the fused
    (1, T, 3*width) qkv block (lane-dense loads/stores, no HBM transposes)."""
    qkv = qkv_ref[0].astype(jnp.float32)                    # (T, 3*width)
    width = heads * head_dim
    for h in range(heads):                                  # static unroll
        q = qkv[:, h * head_dim:(h + 1) * head_dim]
        k = qkv[:, width + h * head_dim: width + (h + 1) * head_dim]
        v = qkv[:, 2 * width + h * head_dim: 2 * width + (h + 1) * head_dim]
        # q @ k^T via dot_general contracting the last axes (no explicit k.T)
        s = lax.dot_general(q.astype(jnp.bfloat16), k.astype(jnp.bfloat16),
                            (((1,), (1,)), ((), ())),
                            preferred_element_type=jnp.float32) * scale
        s = s - jnp.max(s, axis=-1, keepdims=True)
        p = jnp.exp(s)
        p = p * pl.reciprocal(jnp.sum(p, axis=-1, keepdims=True), approx=True)
        o_h = jnp.dot(p.astype(jnp.bfloat16), v.astype(jnp.bfloat16),
                      preferred_element_type=jnp.float32)   # (T, head_dim)
        o_ref[0, :, h * head_dim:(h + 1) * head_dim] = o_h.astype(o_ref.dtype)


# ----------------------------------------------------------------------------
# pallas_call wrappers
# ----------------------------------------------------------------------------

def patch_embed_ln(patches, w, pos_cls, gamma, beta, eps=1e-5):
    B, T, K = patches.shape
    width = w.shape[1]
    kern = functools.partial(_patch_embed_ln_kernel, eps=eps)
    return pl.pallas_call(
        kern,
        out_shape=jax.ShapeDtypeStruct((B, T, width), jnp.float32),
        grid=(B,),
        in_specs=[
            pl.BlockSpec((1, T, K), lambda b: (b, 0, 0)),
            pl.BlockSpec((K, width), lambda b: (0, 0)),
            pl.BlockSpec((T, width), lambda b: (0, 0)),
            pl.BlockSpec((1, width), lambda b: (0, 0)),
            pl.BlockSpec((1, width), lambda b: (0, 0)),
        ],
        out_specs=pl.BlockSpec((1, T, width), lambda b: (b, 0, 0)),
        compiler_params=pltpu.CompilerParams(
            dimension_semantics=("parallel",),
            vmem_limit_bytes=_VMEM_LIMIT_BYTES),
    )(patches, w, pos_cls, gamma.reshape(1, width), beta.reshape(1, width))


def ln_matmul(x, gamma, beta, w, bias, activation=None, eps=1e-5):
    M, K = x.shape
    N = w.shape[1]
    tm = _pick_m_tile(M)
    tn = _pick_n_tile(N)
    gm, gn = pl.cdiv(M, tm), pl.cdiv(N, tn)

    in_specs = [
        pl.BlockSpec((tm, K), lambda i, j: (i, 0)),
        pl.BlockSpec((1, K), lambda i, j: (0, 0)),
        pl.BlockSpec((1, K), lambda i, j: (0, 0)),
        pl.BlockSpec((K, tn), lambda i, j: (0, j)),
    ]
    args = [x, gamma.reshape(1, K), beta.reshape(1, K), w]
    if bias is not None:
        in_specs.append(pl.BlockSpec((1, tn), lambda i, j: (0, j)))
        args.append(bias.reshape(1, N))

    kern = functools.partial(_ln_matmul_kernel, eps=eps, activation=activation,
                             has_bias=bias is not None)
    return pl.pallas_call(
        kern,
        out_shape=jax.ShapeDtypeStruct((M, N), jnp.float32),
        grid=(gm, gn),
        in_specs=in_specs,
        out_specs=pl.BlockSpec((tm, tn), lambda i, j: (i, j)),
        compiler_params=pltpu.CompilerParams(
            dimension_semantics=("parallel", "parallel"),
            vmem_limit_bytes=_VMEM_LIMIT_BYTES),
    )(*args)


def matmul(x, w, bias=None, residual=None, activation=None):
    M, K = x.shape
    N = w.shape[1]
    tm = _pick_m_tile(M)
    tn = _pick_n_tile(N)
    tk = _pick_k_tile(K)
    gm, gn, gk = pl.cdiv(M, tm), pl.cdiv(N, tn), K // tk

    in_specs = [
        pl.BlockSpec((tm, tk), lambda i, j, k: (i, k)),
        pl.BlockSpec((tk, tn), lambda i, j, k: (k, j)),
    ]
    args = [x, w]
    if bias is not None:
        in_specs.append(pl.BlockSpec((1, tn), lambda i, j, k: (0, j)))
        args.append(bias.reshape(1, N))
    if residual is not None:
        in_specs.append(pl.BlockSpec((tm, tn), lambda i, j, k: (i, j)))
        args.append(residual)

    kern = functools.partial(_matmul_kernel, activation=activation,
                             has_bias=bias is not None,
                             has_residual=residual is not None)
    return pl.pallas_call(
        kern,
        out_shape=jax.ShapeDtypeStruct((M, N), jnp.float32),
        grid=(gm, gn, gk),
        in_specs=in_specs,
        out_specs=pl.BlockSpec((tm, tn), lambda i, j, k: (i, j)),
        scratch_shapes=[pltpu.VMEM((tm, tn), jnp.float32)],
        compiler_params=pltpu.CompilerParams(
            dimension_semantics=("parallel", "parallel", "arbitrary"),
            vmem_limit_bytes=_VMEM_LIMIT_BYTES),
    )(*args)


def mhsa(qkv, *, heads, head_dim, scale):
    B, T, threew = qkv.shape
    width = heads * head_dim
    kern = functools.partial(_mhsa_kernel, heads=heads, head_dim=head_dim,
                             scale=scale)
    return pl.pallas_call(
        kern,
        out_shape=jax.ShapeDtypeStruct((B, T, width), jnp.float32),
        grid=(B,),
        in_specs=[pl.BlockSpec((1, T, threew), lambda b: (b, 0, 0))],
        out_specs=pl.BlockSpec((1, T, width), lambda b: (b, 0, 0)),
        compiler_params=pltpu.CompilerParams(
            dimension_semantics=("parallel",),
            vmem_limit_bytes=_VMEM_LIMIT_BYTES),
    )(qkv)


# ----------------------------------------------------------------------------
# Synthetic CLIP vision transformer parameters (deterministic init)
# ----------------------------------------------------------------------------

def init_params(key, *, channels, patch, width, heads, layers, mlp_dim,
                embed_dim, num_tokens):
    def w_init(k, shape, scale=0.02):
        # weight matrices stored in bf16 -> bf16 MXU operands, f32 accumulation
        return (scale * jax.random.normal(k, shape, dtype=jnp.float32)
                ).astype(jnp.bfloat16)

    def b_init(k, shape, scale=0.02):
        return scale * jax.random.normal(k, shape, dtype=jnp.float32)

    keys = iter(jax.random.split(key, 8 + 8 * layers))
    p = {
        # conv1 (stride=patch, bias=False) stored as an im2col matmul weight
        "patch_w": w_init(next(keys), (channels * patch * patch, width)),
        "class_emb": b_init(next(keys), (width,)),
        "pos_emb": b_init(next(keys), (num_tokens, width)),
        "ln_pre_g": jnp.ones((width,), jnp.float32),
        "ln_pre_b": jnp.zeros((width,), jnp.float32),
        "ln_post_g": jnp.ones((width,), jnp.float32),
        "ln_post_b": jnp.zeros((width,), jnp.float32),
        "proj": w_init(next(keys), (width, embed_dim)),   # no bias in CLIP
        "blocks": [],
    }
    for _ in range(layers):
        p["blocks"].append({
            "ln1_g": jnp.ones((width,), jnp.float32),
            "ln1_b": jnp.zeros((width,), jnp.float32),
            "ln2_g": jnp.ones((width,), jnp.float32),
            "ln2_b": jnp.zeros((width,), jnp.float32),
            "qkv_w": w_init(next(keys), (width, 3 * width)),
            "qkv_b": b_init(next(keys), (3 * width,)),
            "out_w": w_init(next(keys), (width, width)),
            "out_b": b_init(next(keys), (width,)),
            "fc_w": w_init(next(keys), (width, mlp_dim)),
            "fc_b": b_init(next(keys), (mlp_dim,)),
            "cproj_w": w_init(next(keys), (mlp_dim, width)),
            "cproj_b": b_init(next(keys), (width,)),
        })
    return p


# ----------------------------------------------------------------------------
# encode_image forward pass (== ImageCLIP.forward)
# ----------------------------------------------------------------------------

def encode_image(params, image, *, patch, heads):
    B, C, H, W_img = image.shape
    gh, gw = H // patch, W_img // patch
    n_patch = gh * gw
    T = n_patch + 1
    width = params["patch_w"].shape[1]
    head_dim = width // heads
    scale = float(head_dim) ** -0.5

    # im2col for the stride=patch conv (layout-only glue); the extra zero row
    # in front of each image becomes the class-token slot inside the kernel.
    patches = image.reshape(B, C, gh, patch, gw, patch)
    patches = patches.transpose(0, 2, 4, 1, 3, 5).reshape(B, n_patch,
                                                          C * patch * patch)
    patches = jnp.pad(patches, ((0, 0), (1, 0), (0, 0)))          # row 0 := 0

    # fold class_emb into row 0 of the positional table so the patch-embed
    # kernel's "+ pos" epilogue emits class_emb + pos_emb[0] on that row
    pos_cls = params["pos_emb"].astype(jnp.float32).at[0].add(
        params["class_emb"].astype(jnp.float32))

    # fused: patch-conv matmul + class token + pos emb + ln_pre       (Pallas)
    x = patch_embed_ln(patches, params["patch_w"], pos_cls,
                       params["ln_pre_g"], params["ln_pre_b"])     # (B,T,width)

    xf = x.reshape(B * T, width)
    for blk in params["blocks"]:
        # attention: ln_1 + qkv fused; per-batch multi-head SDPA     (Pallas)
        qkv = ln_matmul(xf, blk["ln1_g"], blk["ln1_b"],
                        blk["qkv_w"], blk["qkv_b"])                # (B*T, 3W)
        attn = mhsa(qkv.reshape(B, T, 3 * width), heads=heads,
                    head_dim=head_dim, scale=scale)                # (B, T, W)
        # out projection + bias + residual fused                    (Pallas)
        xf = matmul(attn.reshape(B * T, width), blk["out_w"],
                    bias=blk["out_b"], residual=xf)
        # MLP: ln_2 + fc + QuickGELU fused; c_proj + residual fused  (Pallas)
        h = ln_matmul(xf, blk["ln2_g"], blk["ln2_b"], blk["fc_w"], blk["fc_b"],
                      activation="quick_gelu")
        xf = matmul(h, blk["cproj_w"], bias=blk["cproj_b"], residual=xf)

    x = xf.reshape(B, T, width)
    cls_tok = x[:, 0, :]                                           # (B, width)
    # ln_post + final projection (no bias) fused                    (Pallas)
    return ln_matmul(cls_tok, params["ln_post_g"], params["ln_post_b"],
                     params["proj"], None)                         # (B, embed)


# ----------------------------------------------------------------------------
if __name__ == "__main__":
    # small synthetic CLIP-ViT config (feature dims lane-aligned to 128)
    B, C, HW = 2, 3, 32
    PATCH = 8
    WIDTH = 128
    HEADS = 2            # head_dim = 64
    LAYERS = 2
    MLP = 4 * WIDTH
    EMBED = 128
    NUM_TOKENS = (HW // PATCH) * (HW // PATCH) + 1

    key = jax.random.PRNGKey(0)
    k_img, k_par = jax.random.split(key)
    image = jax.random.normal(k_img, (B, C, HW, HW), dtype=jnp.float32)
    params = init_params(k_par, channels=C, patch=PATCH, width=WIDTH,
                         heads=HEADS, layers=LAYERS, mlp_dim=MLP,
                         embed_dim=EMBED, num_tokens=NUM_TOKENS)

    fwd = jax.jit(functools.partial(encode_image, patch=PATCH, heads=HEADS))
    out = jax.block_until_ready(fwd(params, image))
    assert out.shape == (B, EMBED)
    assert bool(jnp.all(jnp.isfinite(out)))
    print("KERNEL_OK")
</pallas_src>

<mosaic_0001>
module attributes {stable_mosaic.version = 11 : i64} {
  func.func @_ln_matmul_kernel(%arg0: i32, %arg1: i32, %arg2: memref<24x128xf32, #tpu.memory_space<vmem>>, %arg3: memref<1x128xf32, #tpu.memory_space<vmem>>, %arg4: memref<1x128xf32, #tpu.memory_space<vmem>>, %arg5: memref<128x384xbf16, #tpu.memory_space<vmem>>, %arg6: memref<1x384xf32, #tpu.memory_space<vmem>>, %arg7: memref<24x384xf32, #tpu.memory_space<vmem>>) attributes {dimension_semantics = [#tpu.dimension_semantics<parallel>, #tpu.dimension_semantics<parallel>], iteration_bounds = array<i64: 2, 1>, scalar_prefetch = 0 : i64, scratch_operands = 0 : i64, tpu.core_type = #tpu.core_type<tc>, window_params = [{transform_indices = @transform_0, window_bounds = array<i64: 24, 128>}, {pipeline_mode = #tpu.pipeline_mode<synchronous>, transform_indices = @transform_1, window_bounds = array<i64: 1, 128>}, {pipeline_mode = #tpu.pipeline_mode<synchronous>, transform_indices = @transform_2, window_bounds = array<i64: 1, 128>}, {transform_indices = @transform_3, window_bounds = array<i64: 128, 384>}, {transform_indices = @transform_4, window_bounds = array<i64: 1, 384>}, {transform_indices = @transform_5, window_bounds = array<i64: 24, 384>}]} {
    %c0 = arith.constant 0 : index
    %c0_0 = arith.constant 0 : index
    %0 = vector.load %arg2[%c0, %c0_0] : memref<24x128xf32, #tpu.memory_space<vmem>>, vector<24x128xf32>
    %cst = arith.constant dense<0.000000e+00> : vector<24xf32>
    %1 = vector.multi_reduction <add>, %0, %cst [1] : vector<24x128xf32> to vector<24xf32>
    %2 = vector.shape_cast %1 : vector<24xf32> to vector<24x1xf32>
    %cst_1 = arith.constant 1.280000e+02 : f32
    %3 = vector.broadcast %cst_1 : f32 to vector<24x1xf32>
    %4 = arith.divf %2, %3 : vector<24x1xf32>
    %5 = vector.broadcast %4 : vector<24x1xf32> to vector<24x128xf32>
    %6 = arith.subf %0, %5 : vector<24x128xf32>
    %7 = arith.mulf %6, %6 : vector<24x128xf32>
    %cst_2 = arith.constant dense<0.000000e+00> : vector<24xf32>
    %8 = vector.multi_reduction <add>, %7, %cst_2 [1] : vector<24x128xf32> to vector<24xf32>
    %9 = vector.shape_cast %8 : vector<24xf32> to vector<24x1xf32>
    %cst_3 = arith.constant 1.280000e+02 : f32
    %10 = vector.broadcast %cst_3 : f32 to vector<24x1xf32>
    %11 = arith.divf %9, %10 : vector<24x1xf32>
    %12 = vector.broadcast %4 : vector<24x1xf32> to vector<24x128xf32>
    %13 = arith.subf %0, %12 : vector<24x128xf32>
    %cst_4 = arith.constant 9.99999974E-6 : f32
    %14 = vector.broadcast %cst_4 : f32 to vector<24x1xf32>
    %15 = arith.addf %11, %14 : vector<24x1xf32>
    %16 = math.rsqrt %15 : vector<24x1xf32>
    %17 = vector.broadcast %16 : vector<24x1xf32> to vector<24x128xf32>
    %18 = arith.mulf %13, %17 : vector<24x128xf32>
    %c0_5 = arith.constant 0 : index
    %c0_6 = arith.constant 0 : index
    %19 = vector.load %arg3[%c0_5, %c0_6] : memref<1x128xf32, #tpu.memory_space<vmem>>, vector<1x128xf32>
    %20 = vector.broadcast %19 : vector<1x128xf32> to vector<24x128xf32>
    %21 = arith.mulf %18, %20 : vector<24x128xf32>
    %c0_7 = arith.constant 0 : index
    %c0_8 = arith.constant 0 : index
    %22 = vector.load %arg4[%c0_7, %c0_8] : memref<1x128xf32, #tpu.memory_space<vmem>>, vector<1x128xf32>
    %23 = vector.broadcast %22 : vector<1x128xf32> to vector<24x128xf32>
    %24 = arith.addf %21, %23 : vector<24x128xf32>
    %25 = arith.truncf %24 : vector<24x128xf32> to vector<24x128xbf16>
    %c0_9 = arith.constant 0 : index
    %c0_10 = arith.constant 0 : index
    %26 = vector.load %arg5[%c0_9, %c0_10] : memref<128x384xbf16, #tpu.memory_space<vmem>>, vector<128x384xbf16>
    %cst_11 = arith.constant dense<0.000000e+00> : vector<24x384xf32>
    %27 = tpu.matmul %25, %26, %cst_11 {dimension_numbers = #tpu.dot_dimension_numbers<[1], [0], [0], [1], [0, 0, 1, 1], [], []>} : vector<24x128xbf16>, vector<128x384xbf16>, vector<24x384xf32> -> vector<24x384xf32>
    %c0_12 = arith.constant 0 : index
    %c0_13 = arith.constant 0 : index
    %28 = vector.load %arg6[%c0_12, %c0_13] : memref<1x384xf32, #tpu.memory_space<vmem>>, vector<1x384xf32>
    %29 = vector.broadcast %28 : vector<1x384xf32> to vector<24x384xf32>
    %30 = arith.addf %27, %29 : vector<24x384xf32>
    %c0_14 = arith.constant 0 : index
    %c0_15 = arith.constant 0 : index
    %31 = vector.load %arg7[%c0_14, %c0_15] : memref<24x384xf32, #tpu.memory_space<vmem>>, vector<24x384xf32>
    tpu.vector_store %arg7[%c0_14, %c0_15], %30 {strides = array<i32>} : memref<24x384xf32, #tpu.memory_space<vmem>>, vector<24x384xf32>,
    return
  }
  func.func @transform_0(%arg0: i32, %arg1: i32) -> (i32, i32) {
    %c0_i32 = arith.constant 0 : i32
    %c0_i32_0 = arith.constant 0 : i32
    return %arg0, %c0_i32 : i32, i32
  }
  func.func @transform_1(%arg0: i32, %arg1: i32) -> (i32, i32) {
    %c0_i32 = arith.constant 0 : i32
    %c0_i32_0 = arith.constant 0 : i32
    %c0_i32_1 = arith.constant 0 : i32
    return %c0_i32, %c0_i32_0 : i32, i32
  }
  func.func @transform_2(%arg0: i32, %arg1: i32) -> (i32, i32) {
    %c0_i32 = arith.constant 0 : i32
    %c0_i32_0 = arith.constant 0 : i32
    %c0_i32_1 = arith.constant 0 : i32
    return %c0_i32, %c0_i32_0 : i32, i32
  }
  func.func @transform_3(%arg0: i32, %arg1: i32) -> (i32, i32) {
    %c0_i32 = arith.constant 0 : i32
    %c0_i32_0 = arith.constant 0 : i32
    return %c0_i32, %arg1 : i32, i32
  }
  func.func @transform_4(%arg0: i32, %arg1: i32) -> (i32, i32) {
    %c0_i32 = arith.constant 0 : i32
    %c0_i32_0 = arith.constant 0 : i32
    return %c0_i32, %arg1 : i32, i32
  }
  func.func @transform_5(%arg0: i32, %arg1: i32) -> (i32, i32) {
    %c0_i32 = arith.constant 0 : i32
    return %arg0, %arg1 : i32, i32
  }
}

module attributes {stable_mosaic.version = 11 : i64} {
  func.func @_mhsa_kernel(%arg0: i32, %arg1: memref<1x17x384xf32, #tpu.memory_space<vmem>>, %arg2: memref<1x17x128xf32, #tpu.memory_space<vmem>>) attributes {dimension_semantics = [#tpu.dimension_semantics<parallel>], iteration_bounds = array<i64: 2>, scalar_prefetch = 0 : i64, scratch_operands = 0 : i64, tpu.core_type = #tpu.core_type<tc>, window_params = [{transform_indices = @transform_0, window_bounds = array<i64: 1, 17, 384>}, {transform_indices = @transform_1, window_bounds = array<i64: 1, 17, 128>}]} {
    %c0 = arith.constant 0 : index
    %c0_0 = arith.constant 0 : index
    %c0_1 = arith.constant 0 : index
    %0 = vector.load %arg1[%c0, %c0_0, %c0_1] : memref<1x17x384xf32, #tpu.memory_space<vmem>>, vector<1x17x384xf32>
    %1 = vector.shape_cast %0 : vector<1x17x384xf32> to vector<17x384xf32>
    %2 = vector.extract_strided_slice %1 {offsets = [0, 0], sizes = [17, 64], strides = [1, 1]} : vector<17x384xf32> to vector<17x64xf32>
    %3 = vector.extract_strided_slice %1 {offsets = [0, 128], sizes = [17, 64], strides = [1, 1]} : vector<17x384xf32> to vector<17x64xf32>
    %4 = vector.extract_strided_slice %1 {offsets = [0, 256], sizes = [17, 64], strides = [1, 1]} : vector<17x384xf32> to vector<17x64xf32>
    %5 = arith.truncf %2 : vector<17x64xf32> to vector<17x64xbf16>
    %6 = arith.truncf %3 : vector<17x64xf32> to vector<17x64xbf16>
    %cst = arith.constant dense<0.000000e+00> : vector<17x17xf32>
    %7 = tpu.matmul %5, %6, %cst {dimension_numbers = #tpu.dot_dimension_numbers<[1], [1], [0], [0], [0, 0, 1, 0], [], []>} : vector<17x64xbf16>, vector<17x64xbf16>, vector<17x17xf32> -> vector<17x17xf32>
    %cst_2 = arith.constant 1.250000e-01 : f32
    %8 = vector.broadcast %cst_2 : f32 to vector<17x17xf32>
    %9 = arith.mulf %7, %8 : vector<17x17xf32>
    %cst_3 = arith.constant dense<0xFF800000> : vector<17xf32>
    %10 = vector.multi_reduction <maximumf>, %9, %cst_3 [1] : vector<17x17xf32> to vector<17xf32>
    %11 = vector.shape_cast %10 : vector<17xf32> to vector<17x1xf32>
    %12 = vector.broadcast %11 : vector<17x1xf32> to vector<17x17xf32>
    %13 = arith.subf %9, %12 : vector<17x17xf32>
    %14 = math.exp %13 : vector<17x17xf32>
    %cst_4 = arith.constant dense<0.000000e+00> : vector<17xf32>
    %15 = vector.multi_reduction <add>, %14, %cst_4 [1] : vector<17x17xf32> to vector<17xf32>
    %16 = vector.shape_cast %15 : vector<17xf32> to vector<17x1xf32>
    %17 = tpu.reciprocal %16 {approx = true} : vector<17x1xf32> -> vector<17x1xf32>
    %18 = vector.broadcast %17 : vector<17x1xf32> to vector<17x17xf32>
    %19 = arith.mulf %14, %18 : vector<17x17xf32>
    %20 = arith.truncf %19 : vector<17x17xf32> to vector<17x17xbf16>
    %21 = arith.truncf %4 : vector<17x64xf32> to vector<17x64xbf16>
    %cst_5 = arith.constant dense<0.000000e+00> : vector<17x64xf32>
    %22 = tpu.matmul %20, %21, %cst_5 {dimension_numbers = #tpu.dot_dimension_numbers<[1], [0], [0], [1], [0, 0, 1, 1], [], []>} : vector<17x17xbf16>, vector<17x64xbf16>, vector<17x64xf32> -> vector<17x64xf32>
    %c0_6 = arith.constant 0 : index
    %c0_7 = arith.constant 0 : index
    %c0_8 = arith.constant 0 : index
    %23 = vector.load %arg2[%c0_6, %c0_7, %c0_8] : memref<1x17x128xf32, #tpu.memory_space<vmem>>, vector<1x17x64xf32>
    %24 = vector.shape_cast %23 : vector<1x17x64xf32> to vector<17x64xf32>
    %25 = vector.shape_cast %22 : vector<17x64xf32> to vector<1x17x64xf32>
    tpu.vector_store %arg2[%c0_6, %c0_7, %c0_8], %25 {strides = array<i32>} : memref<1x17x128xf32, #tpu.memory_space<vmem>>, vector<1x17x64xf32>,
    %26 = vector.extract_strided_slice %1 {offsets = [0, 64], sizes = [17, 64], strides = [1, 1]} : vector<17x384xf32> to vector<17x64xf32>
    %27 = vector.extract_strided_slice %1 {offsets = [0, 192], sizes = [17, 64], strides = [1, 1]} : vector<17x384xf32> to vector<17x64xf32>
    %28 = vector.extract_strided_slice %1 {offsets = [0, 320], sizes = [17, 64], strides = [1, 1]} : vector<17x384xf32> to vector<17x64xf32>
    %29 = arith.truncf %26 : vector<17x64xf32> to vector<17x64xbf16>
    %30 = arith.truncf %27 : vector<17x64xf32> to vector<17x64xbf16>
    %cst_9 = arith.constant dense<0.000000e+00> : vector<17x17xf32>
    %31 = tpu.matmul %29, %30, %cst_9 {dimension_numbers = #tpu.dot_dimension_numbers<[1], [1], [0], [0], [0, 0, 1, 0], [], []>} : vector<17x64xbf16>, vector<17x64xbf16>, vector<17x17xf32> -> vector<17x17xf32>
    %cst_10 = arith.constant 1.250000e-01 : f32
    %32 = vector.broadcast %cst_10 : f32 to vector<17x17xf32>
    %33 = arith.mulf %31, %32 : vector<17x17xf32>
    %cst_11 = arith.constant dense<0xFF800000> : vector<17xf32>
    %34 = vector.multi_reduction <maximumf>, %33, %cst_11 [1] : vector<17x17xf32> to vector<17xf32>
    %35 = vector.shape_cast %34 : vector<17xf32> to vector<17x1xf32>
    %36 = vector.broadcast %35 : vector<17x1xf32> to vector<17x17xf32>
    %37 = arith.subf %33, %36 : vector<17x17xf32>
    %38 = math.exp %37 : vector<17x17xf32>
    %cst_12 = arith.constant dense<0.000000e+00> : vector<17xf32>
    %39 = vector.multi_reduction <add>, %38, %cst_12 [1] : vector<17x17xf32> to vector<17xf32>
    %40 = vector.shape_cast %39 : vector<17xf32> to vector<17x1xf32>
    %41 = tpu.reciprocal %40 {approx = true} : vector<17x1xf32> -> vector<17x1xf32>
    %42 = vector.broadcast %41 : vector<17x1xf32> to vector<17x17xf32>
    %43 = arith.mulf %38, %42 : vector<17x17xf32>
    %44 = arith.truncf %43 : vector<17x17xf32> to vector<17x17xbf16>
    %45 = arith.truncf %28 : vector<17x64xf32> to vector<17x64xbf16>
    %cst_13 = arith.constant dense<0.000000e+00> : vector<17x64xf32>
    %46 = tpu.matmul %44, %45, %cst_13 {dimension_numbers = #tpu.dot_dimension_numbers<[1], [0], [0], [1], [0, 0, 1, 1], [], []>} : vector<17x17xbf16>, vector<17x64xbf16>, vector<17x64xf32> -> vector<17x64xf32>
    %c0_14 = arith.constant 0 : index
    %c0_15 = arith.constant 0 : index
    %c64 = arith.constant 64 : index
    %47 = vector.load %arg2[%c0_14, %c0_15, %c64] : memref<1x17x128xf32, #tpu.memory_space<vmem>>, vector<1x17x64xf32>
    %48 = vector.shape_cast %47 : vector<1x17x64xf32> to vector<17x64xf32>
    %49 = vector.shape_cast %46 : vector<17x64xf32> to vector<1x17x64xf32>
    tpu.vector_store %arg2[%c0_14, %c0_15, %c64], %49 {strides = array<i32>} : memref<1x17x128xf32, #tpu.memory_space<vmem>>, vector<1x17x64xf32>,
    return
  }
  func.func @transform_0(%arg0: i32) -> (i32, i32, i32) {
    %c0_i32 = arith.constant 0 : i32
    %c0_i32_0 = arith.constant 0 : i32
    %c0_i32_1 = arith.constant 0 : i32
    return %arg0, %c0_i32, %c0_i32_0 : i32, i32, i32
  }
  func.func @transform_1(%arg0: i32) -> (i32, i32, i32) {
    %c0_i32 = arith.constant 0 : i32
    %c0_i32_0 = arith.constant 0 : i32
    %c0_i32_1 = arith.constant 0 : i32
    return %arg0, %c0_i32, %c0_i32_0 : i32, i32, i32
  }
}

module attributes {stable_mosaic.version = 11 : i64} {
  func.func @_patch_embed_ln_kernel(%arg0: i32, %arg1: memref<1x17x192xf32, #tpu.memory_space<vmem>>, %arg2: memref<192x128xbf16, #tpu.memory_space<vmem>>, %arg3: memref<17x128xf32, #tpu.memory_space<vmem>>, %arg4: memref<1x128xf32, #tpu.memory_space<vmem>>, %arg5: memref<1x128xf32, #tpu.memory_space<vmem>>, %arg6: memref<1x17x128xf32, #tpu.memory_space<vmem>>) attributes {dimension_semantics = [#tpu.dimension_semantics<parallel>], iteration_bounds = array<i64: 2>, scalar_prefetch = 0 : i64, scratch_operands = 0 : i64, tpu.core_type = #tpu.core_type<tc>, window_params = [{transform_indices = @transform_0, window_bounds = array<i64: 1, 17, 192>}, {pipeline_mode = #tpu.pipeline_mode<synchronous>, transform_indices = @transform_1, window_bounds = array<i64: 192, 128>}, {pipeline_mode = #tpu.pipeline_mode<synchronous>, transform_indices = @transform_2, window_bounds = array<i64: 17, 128>}, {pipeline_mode = #tpu.pipeline_mode<synchronous>, transform_indices = @transform_3, window_bounds = array<i64: 1, 128>}, {pipeline_mode = #tpu.pipeline_mode<synchronous>, transform_indices = @transform_4, window_bounds = array<i64: 1, 128>}, {transform_indices = @transform_5, window_bounds = array<i64: 1, 17, 128>}]} {
    %c0 = arith.constant 0 : index
    %c0_0 = arith.constant 0 : index
    %c0_1 = arith.constant 0 : index
    %0 = vector.load %arg1[%c0, %c0_0, %c0_1] : memref<1x17x192xf32, #tpu.memory_space<vmem>>, vector<1x17x192xf32>
    %1 = vector.shape_cast %0 : vector<1x17x192xf32> to vector<17x192xf32>
    %2 = arith.truncf %1 : vector<17x192xf32> to vector<17x192xbf16>
    %c0_2 = arith.constant 0 : index
    %c0_3 = arith.constant 0 : index
    %3 = vector.load %arg2[%c0_2, %c0_3] : memref<192x128xbf16, #tpu.memory_space<vmem>>, vector<192x128xbf16>
    %cst = arith.constant dense<0.000000e+00> : vector<17x128xf32>
    %4 = tpu.matmul %2, %3, %cst {dimension_numbers = #tpu.dot_dimension_numbers<[1], [0], [0], [1], [0, 0, 1, 1], [], []>} : vector<17x192xbf16>, vector<192x128xbf16>, vector<17x128xf32> -> vector<17x128xf32>
    %c0_4 = arith.constant 0 : index
    %c0_5 = arith.constant 0 : index
    %5 = vector.load %arg3[%c0_4, %c0_5] : memref<17x128xf32, #tpu.memory_space<vmem>>, vector<17x128xf32>
    %6 = arith.addf %4, %5 : vector<17x128xf32>
    %cst_6 = arith.constant dense<0.000000e+00> : vector<17xf32>
    %7 = vector.multi_reduction <add>, %6, %cst_6 [1] : vector<17x128xf32> to vector<17xf32>
    %8 = vector.shape_cast %7 : vector<17xf32> to vector<17x1xf32>
    %cst_7 = arith.constant 1.280000e+02 : f32
    %9 = vector.broadcast %cst_7 : f32 to vector<17x1xf32>
    %10 = arith.divf %8, %9 : vector<17x1xf32>
    %11 = vector.broadcast %10 : vector<17x1xf32> to vector<17x128xf32>
    %12 = arith.subf %6, %11 : vector<17x128xf32>
    %13 = arith.mulf %12, %12 : vector<17x128xf32>
    %cst_8 = arith.constant dense<0.000000e+00> : vector<17xf32>
    %14 = vector.multi_reduction <add>, %13, %cst_8 [1] : vector<17x128xf32> to vector<17xf32>
    %15 = vector.shape_cast %14 : vector<17xf32> to vector<17x1xf32>
    %cst_9 = arith.constant 1.280000e+02 : f32
    %16 = vector.broadcast %cst_9 : f32 to vector<17x1xf32>
    %17 = arith.divf %15, %16 : vector<17x1xf32>
    %18 = vector.broadcast %10 : vector<17x1xf32> to vector<17x128xf32>
    %19 = arith.subf %6, %18 : vector<17x128xf32>
    %cst_10 = arith.constant 9.99999974E-6 : f32
    %20 = vector.broadcast %cst_10 : f32 to vector<17x1xf32>
    %21 = arith.addf %17, %20 : vector<17x1xf32>
    %22 = math.rsqrt %21 : vector<17x1xf32>
    %23 = vector.broadcast %22 : vector<17x1xf32> to vector<17x128xf32>
    %24 = arith.mulf %19, %23 : vector<17x128xf32>
    %c0_11 = arith.constant 0 : index
    %c0_12 = arith.constant 0 : index
    %25 = vector.load %arg4[%c0_11, %c0_12] : memref<1x128xf32, #tpu.memory_space<vmem>>, vector<1x128xf32>
    %26 = vector.broadcast %25 : vector<1x128xf32> to vector<17x128xf32>
    %27 = arith.mulf %24, %26 : vector<17x128xf32>
    %c0_13 = arith.constant 0 : index
    %c0_14 = arith.constant 0 : index
    %28 = vector.load %arg5[%c0_13, %c0_14] : memref<1x128xf32, #tpu.memory_space<vmem>>, vector<1x128xf32>
    %29 = vector.broadcast %28 : vector<1x128xf32> to vector<17x128xf32>
    %30 = arith.addf %27, %29 : vector<17x128xf32>
    %c0_15 = arith.constant 0 : index
    %c0_16 = arith.constant 0 : index
    %c0_17 = arith.constant 0 : index
    %31 = vector.load %arg6[%c0_15, %c0_16, %c0_17] : memref<1x17x128xf32, #tpu.memory_space<vmem>>, vector<1x17x128xf32>
    %32 = vector.shape_cast %31 : vector<1x17x128xf32> to vector<17x128xf32>
    %33 = vector.shape_cast %30 : vector<17x128xf32> to vector<1x17x128xf32>
    tpu.vector_store %arg6[%c0_15, %c0_16, %c0_17], %33 {strides = array<i32>} : memref<1x17x128xf32, #tpu.memory_space<vmem>>, vector<1x17x128xf32>,
    return
  }
  func.func @transform_0(%arg0: i32) -> (i32, i32, i32) {
    %c0_i32 = arith.constant 0 : i32
    %c0_i32_0 = arith.constant 0 : i32
    %c0_i32_1 = arith.constant 0 : i32
    return %arg0, %c0_i32, %c0_i32_0 : i32, i32, i32
  }
  func.func @transform_1(%arg0: i32) -> (i32, i32) {
    %c0_i32 = arith.constant 0 : i32
    %c0_i32_0 = arith.constant 0 : i32
    %c0_i32_1 = arith.constant 0 : i32
    return %c0_i32, %c0_i32_0 : i32, i32
  }
  func.func @transform_2(%arg0: i32) -> (i32, i32) {
    %c0_i32 = arith.constant 0 : i32
    %c0_i32_0 = arith.constant 0 : i32
    %c0_i32_1 = arith.constant 0 : i32
    return %c0_i32, %c0_i32_0 : i32, i32
  }
  func.func @transform_3(%arg0: i32) -> (i32, i32) {
    %c0_i32 = arith.constant 0 : i32
    %c0_i32_0 = arith.constant 0 : i32
    %c0_i32_1 = arith.constant 0 : i32
    return %c0_i32, %c0_i32_0 : i32, i32
  }
  func.func @transform_4(%arg0: i32) -> (i32, i32) {
    %c0_i32 = arith.constant 0 : i32
    %c0_i32_0 = arith.constant 0 : i32
    %c0_i32_1 = arith.constant 0 : i32
    return %c0_i32, %c0_i32_0 : i32, i32
  }
  func.func @transform_5(%arg0: i32) -> (i32, i32, i32) {
    %c0_i32 = arith.constant 0 : i32
    %c0_i32_0 = arith.constant 0 : i32
    %c0_i32_1 = arith.constant 0 : i32
    return %arg0, %c0_i32, %c0_i32_0 : i32, i32, i32
  }
}

module attributes {stable_mosaic.version = 11 : i64} {
  func.func @_matmul_kernel(%arg0: i32, %arg1: i32, %arg2: i32, %arg3: memref<24x128xf32, #tpu.memory_space<vmem>>, %arg4: memref<128x128xbf16, #tpu.memory_space<vmem>>, %arg5: memref<1x128xf32, #tpu.memory_space<vmem>>, %arg6: memref<24x128xf32, #tpu.memory_space<vmem>>, %arg7: memref<24x128xf32, #tpu.memory_space<vmem>>, %arg8: memref<24x128xf32, #tpu.memory_space<vmem>>) attributes {dimension_semantics = [#tpu.dimension_semantics<parallel>, #tpu.dimension_semantics<parallel>, #tpu.dimension_semantics<arbitrary>], iteration_bounds = array<i64: 2, 1, 1>, scalar_prefetch = 0 : i64, scratch_operands = 1 : i64, tpu.core_type = #tpu.core_type<tc>, window_params = [{transform_indices = @transform_0, window_bounds = array<i64: 24, 128>}, {transform_indices = @transform_1, window_bounds = array<i64: 128, 128>}, {transform_indices = @transform_2, window_bounds = array<i64: 1, 128>}, {transform_indices = @transform_3, window_bounds = array<i64: 24, 128>}, {transform_indices = @transform_4, window_bounds = array<i64: 24, 128>}]} {
    %c0_i32 = arith.constant 0 : i32
    %0 = arith.cmpi eq, %arg2, %c0_i32 : i32
    %1 = arith.extui %0 : i1 to i32
    %c0_i32_0 = arith.constant 0 : i32
    %2 = arith.cmpi ne, %1, %c0_i32_0 : i32
    scf.if %2 {
      %cst_10 = arith.constant 0.000000e+00 : f32
      %13 = vector.broadcast %cst_10 : f32 to vector<24x128xf32>
      %c0_11 = arith.constant 0 : index
      %c0_12 = arith.constant 0 : index
      %14 = vector.load %arg8[%c0_11, %c0_12] : memref<24x128xf32, #tpu.memory_space<vmem>>, vector<24x128xf32>
      tpu.vector_store %arg8[%c0_11, %c0_12], %13 {strides = array<i32>} : memref<24x128xf32, #tpu.memory_space<vmem>>, vector<24x128xf32>,
    } else {
    }
    %c0 = arith.constant 0 : index
    %c0_1 = arith.constant 0 : index
    %3 = vector.load %arg8[%c0, %c0_1] : memref<24x128xf32, #tpu.memory_space<vmem>>, vector<24x128xf32>
    %c0_2 = arith.constant 0 : index
    %c0_3 = arith.constant 0 : index
    %4 = vector.load %arg3[%c0_2, %c0_3] : memref<24x128xf32, #tpu.memory_space<vmem>>, vector<24x128xf32>
    %5 = arith.truncf %4 : vector<24x128xf32> to vector<24x128xbf16>
    %c0_4 = arith.constant 0 : index
    %c0_5 = arith.constant 0 : index
    %6 = vector.load %arg4[%c0_4, %c0_5] : memref<128x128xbf16, #tpu.memory_space<vmem>>, vector<128x128xbf16>
    %cst = arith.constant dense<0.000000e+00> : vector<24x128xf32>
    %7 = tpu.matmul %5, %6, %cst {dimension_numbers = #tpu.dot_dimension_numbers<[1], [0], [0], [1], [0, 0, 1, 1], [], []>} : vector<24x128xbf16>, vector<128x128xbf16>, vector<24x128xf32> -> vector<24x128xf32>
    %8 = arith.addf %3, %7 : vector<24x128xf32>
    %c0_6 = arith.constant 0 : index
    %c0_7 = arith.constant 0 : index
    %9 = vector.load %arg8[%c0_6, %c0_7] : memref<24x128xf32, #tpu.memory_space<vmem>>, vector<24x128xf32>
    tpu.vector_store %arg8[%c0_6, %c0_7], %8 {strides = array<i32>} : memref<24x128xf32, #tpu.memory_space<vmem>>, vector<24x128xf32>,
    %c0_i32_8 = arith.constant 0 : i32
    %10 = arith.cmpi eq, %arg2, %c0_i32_8 : i32
    %11 = arith.extui %10 : i1 to i32
    %c0_i32_9 = arith.constant 0 : i32
    %12 = arith.cmpi ne, %11, %c0_i32_9 : i32
    scf.if %12 {
      %c0_10 = arith.constant 0 : index
      %c0_11 = arith.constant 0 : index
      %13 = vector.load %arg8[%c0_10, %c0_11] : memref<24x128xf32, #tpu.memory_space<vmem>>, vector<24x128xf32>
      %c0_12 = arith.constant 0 : index
      %c0_13 = arith.constant 0 : index
      %14 = vector.load %arg5[%c0_12, %c0_13] : memref<1x128xf32, #tpu.memory_space<vmem>>, vector<1x128xf32>
      %15 = vector.broadcast %14 : vector<1x128xf32> to vector<24x128xf32>
      %16 = arith.addf %13, %15 : vector<24x128xf32>
      %c0_14 = arith.constant 0 : index
      %c0_15 = arith.constant 0 : index
      %17 = vector.load %arg6[%c0_14, %c0_15] : memref<24x128xf32, #tpu.memory_space<vmem>>, vector<24x128xf32>
      %18 = arith.addf %16, %17 : vector<24x128xf32>
      %c0_16 = arith.constant 0 : index
      %c0_17 = arith.constant 0 : index
      %19 = vector.load %arg7[%c0_16, %c0_17] : memref<24x128xf32, #tpu.memory_space<vmem>>, vector<24x128xf32>
      tpu.vector_store %arg7[%c0_16, %c0_17], %18 {strides = array<i32>} : memref<24x128xf32, #tpu.memory_space<vmem>>, vector<24x128xf32>,
    } else {
    }
    return
  }
  func.func @transform_0(%arg0: i32, %arg1: i32, %arg2: i32) -> (i32, i32) {
    %c0_i32 = arith.constant 0 : i32
    return %arg0, %arg2 : i32, i32
  }
  func.func @transform_1(%arg0: i32, %arg1: i32, %arg2: i32) -> (i32, i32) {
    %c0_i32 = arith.constant 0 : i32
    return %arg2, %arg1 : i32, i32
  }
  func.func @transform_2(%arg0: i32, %arg1: i32, %arg2: i32) -> (i32, i32) {
    %c0_i32 = arith.constant 0 : i32
    %c0_i32_0 = arith.constant 0 : i32
    return %c0_i32, %arg1 : i32, i32
  }
  func.func @transform_3(%arg0: i32, %arg1: i32, %arg2: i32) -> (i32, i32) {
    %c0_i32 = arith.constant 0 : i32
    return %arg0, %arg1 : i32, i32
  }
  func.func @transform_4(%arg0: i32, %arg1: i32, %arg2: i32) -> (i32, i32) {
    %c0_i32 = arith.constant 0 : i32
    return %arg0, %arg1 : i32, i32
  }
}

module attributes {stable_mosaic.version = 11 : i64} {
  func.func @_ln_matmul_kernel(%arg0: i32, %arg1: i32, %arg2: memref<24x128xf32, #tpu.memory_space<vmem>>, %arg3: memref<1x128xf32, #tpu.memory_space<vmem>>, %arg4: memref<1x128xf32, #tpu.memory_space<vmem>>, %arg5: memref<128x512xbf16, #tpu.memory_space<vmem>>, %arg6: memref<1x512xf32, #tpu.memory_space<vmem>>, %arg7: memref<24x512xf32, #tpu.memory_space<vmem>>) attributes {dimension_semantics = [#tpu.dimension_semantics<parallel>, #tpu.dimension_semantics<parallel>], iteration_bounds = array<i64: 2, 1>, scalar_prefetch = 0 : i64, scratch_operands = 0 : i64, tpu.core_type = #tpu.core_type<tc>, window_params = [{transform_indices = @transform_0, window_bounds = array<i64: 24, 128>}, {pipeline_mode = #tpu.pipeline_mode<synchronous>, transform_indices = @transform_1, window_bounds = array<i64: 1, 128>}, {pipeline_mode = #tpu.pipeline_mode<synchronous>, transform_indices = @transform_2, window_bounds = array<i64: 1, 128>}, {transform_indices = @transform_3, window_bounds = array<i64: 128, 512>}, {transform_indices = @transform_4, window_bounds = array<i64: 1, 512>}, {transform_indices = @transform_5, window_bounds = array<i64: 24, 512>}]} {
    %c0 = arith.constant 0 : index
    %c0_0 = arith.constant 0 : index
    %0 = vector.load %arg2[%c0, %c0_0] : memref<24x128xf32, #tpu.memory_space<vmem>>, vector<24x128xf32>
    %cst = arith.constant dense<0.000000e+00> : vector<24xf32>
    %1 = vector.multi_reduction <add>, %0, %cst [1] : vector<24x128xf32> to vector<24xf32>
    %2 = vector.shape_cast %1 : vector<24xf32> to vector<24x1xf32>
    %cst_1 = arith.constant 1.280000e+02 : f32
    %3 = vector.broadcast %cst_1 : f32 to vector<24x1xf32>
    %4 = arith.divf %2, %3 : vector<24x1xf32>
    %5 = vector.broadcast %4 : vector<24x1xf32> to vector<24x128xf32>
    %6 = arith.subf %0, %5 : vector<24x128xf32>
    %7 = arith.mulf %6, %6 : vector<24x128xf32>
    %cst_2 = arith.constant dense<0.000000e+00> : vector<24xf32>
    %8 = vector.multi_reduction <add>, %7, %cst_2 [1] : vector<24x128xf32> to vector<24xf32>
    %9 = vector.shape_cast %8 : vector<24xf32> to vector<24x1xf32>
    %cst_3 = arith.constant 1.280000e+02 : f32
    %10 = vector.broadcast %cst_3 : f32 to vector<24x1xf32>
    %11 = arith.divf %9, %10 : vector<24x1xf32>
    %12 = vector.broadcast %4 : vector<24x1xf32> to vector<24x128xf32>
    %13 = arith.subf %0, %12 : vector<24x128xf32>
    %cst_4 = arith.constant 9.99999974E-6 : f32
    %14 = vector.broadcast %cst_4 : f32 to vector<24x1xf32>
    %15 = arith.addf %11, %14 : vector<24x1xf32>
    %16 = math.rsqrt %15 : vector<24x1xf32>
    %17 = vector.broadcast %16 : vector<24x1xf32> to vector<24x128xf32>
    %18 = arith.mulf %13, %17 : vector<24x128xf32>
    %c0_5 = arith.constant 0 : index
    %c0_6 = arith.constant 0 : index
    %19 = vector.load %arg3[%c0_5, %c0_6] : memref<1x128xf32, #tpu.memory_space<vmem>>, vector<1x128xf32>
    %20 = vector.broadcast %19 : vector<1x128xf32> to vector<24x128xf32>
    %21 = arith.mulf %18, %20 : vector<24x128xf32>
    %c0_7 = arith.constant 0 : index
    %c0_8 = arith.constant 0 : index
    %22 = vector.load %arg4[%c0_7, %c0_8] : memref<1x128xf32, #tpu.memory_space<vmem>>, vector<1x128xf32>
    %23 = vector.broadcast %22 : vector<1x128xf32> to vector<24x128xf32>
    %24 = arith.addf %21, %23 : vector<24x128xf32>
    %25 = arith.truncf %24 : vector<24x128xf32> to vector<24x128xbf16>
    %c0_9 = arith.constant 0 : index
    %c0_10 = arith.constant 0 : index
    %26 = vector.load %arg5[%c0_9, %c0_10] : memref<128x512xbf16, #tpu.memory_space<vmem>>, vector<128x512xbf16>
    %cst_11 = arith.constant dense<0.000000e+00> : vector<24x512xf32>
    %27 = tpu.matmul %25, %26, %cst_11 {dimension_numbers = #tpu.dot_dimension_numbers<[1], [0], [0], [1], [0, 0, 1, 1], [], []>} : vector<24x128xbf16>, vector<128x512xbf16>, vector<24x512xf32> -> vector<24x512xf32>
    %c0_12 = arith.constant 0 : index
    %c0_13 = arith.constant 0 : index
    %28 = vector.load %arg6[%c0_12, %c0_13] : memref<1x512xf32, #tpu.memory_space<vmem>>, vector<1x512xf32>
    %29 = vector.broadcast %28 : vector<1x512xf32> to vector<24x512xf32>
    %30 = arith.addf %27, %29 : vector<24x512xf32>
    %cst_14 = arith.constant 1.702000e+00 : f32
    %31 = vector.broadcast %cst_14 : f32 to vector<24x512xf32>
    %32 = arith.mulf %31, %30 : vector<24x512xf32>
    %33 = arith.negf %32 : vector<24x512xf32>
    %34 = math.exp %33 : vector<24x512xf32>
    %cst_15 = arith.constant 1.000000e+00 : f32
    %35 = vector.broadcast %cst_15 : f32 to vector<24x512xf32>
    %36 = arith.addf %35, %34 : vector<24x512xf32>
    %37 = arith.divf %35, %36 : vector<24x512xf32>
    %38 = arith.mulf %30, %37 : vector<24x512xf32>
    %c0_16 = arith.constant 0 : index
    %c0_17 = arith.constant 0 : index
    %39 = vector.load %arg7[%c0_16, %c0_17] : memref<24x512xf32, #tpu.memory_space<vmem>>, vector<24x512xf32>
    tpu.vector_store %arg7[%c0_16, %c0_17], %38 {strides = array<i32>} : memref<24x512xf32, #tpu.memory_space<vmem>>, vector<24x512xf32>,
    return
  }
  func.func @transform_0(%arg0: i32, %arg1: i32) -> (i32, i32) {
    %c0_i32 = arith.constant 0 : i32
    %c0_i32_0 = arith.constant 0 : i32
    return %arg0, %c0_i32 : i32, i32
  }
  func.func @transform_1(%arg0: i32, %arg1: i32) -> (i32, i32) {
    %c0_i32 = arith.constant 0 : i32
    %c0_i32_0 = arith.constant 0 : i32
    %c0_i32_1 = arith.constant 0 : i32
    return %c0_i32, %c0_i32_0 : i32, i32
  }
  func.func @transform_2(%arg0: i32, %arg1: i32) -> (i32, i32) {
    %c0_i32 = arith.constant 0 : i32
    %c0_i32_0 = arith.constant 0 : i32
    %c0_i32_1 = arith.constant 0 : i32
    return %c0_i32, %c0_i32_0 : i32, i32
  }
  func.func @transform_3(%arg0: i32, %arg1: i32) -> (i32, i32) {
    %c0_i32 = arith.constant 0 : i32
    %c0_i32_0 = arith.constant 0 : i32
    return %c0_i32, %arg1 : i32, i32
  }
  func.func @transform_4(%arg0: i32, %arg1: i32) -> (i32, i32) {
    %c0_i32 = arith.constant 0 : i32
    %c0_i32_0 = arith.constant 0 : i32
    return %c0_i32, %arg1 : i32, i32
  }
  func.func @transform_5(%arg0: i32, %arg1: i32) -> (i32, i32) {
    %c0_i32 = arith.constant 0 : i32
    return %arg0, %arg1 : i32, i32
  }
}

module attributes {stable_mosaic.version = 11 : i64} {
  func.func @_ln_matmul_kernel(%arg0: i32, %arg1: i32, %arg2: memref<2x128xf32, #tpu.memory_space<vmem>>, %arg3: memref<1x128xf32, #tpu.memory_space<vmem>>, %arg4: memref<1x128xf32, #tpu.memory_space<vmem>>, %arg5: memref<128x128xbf16, #tpu.memory_space<vmem>>, %arg6: memref<2x128xf32, #tpu.memory_space<vmem>>) attributes {dimension_semantics = [#tpu.dimension_semantics<parallel>, #tpu.dimension_semantics<parallel>], iteration_bounds = array<i64: 1, 1>, scalar_prefetch = 0 : i64, scratch_operands = 0 : i64, tpu.core_type = #tpu.core_type<tc>, window_params = [{transform_indices = @transform_0, window_bounds = array<i64: 2, 128>}, {pipeline_mode = #tpu.pipeline_mode<synchronous>, transform_indices = @transform_1, window_bounds = array<i64: 1, 128>}, {pipeline_mode = #tpu.pipeline_mode<synchronous>, transform_indices = @transform_2, window_bounds = array<i64: 1, 128>}, {transform_indices = @transform_3, window_bounds = array<i64: 128, 128>}, {transform_indices = @transform_4, window_bounds = array<i64: 2, 128>}]} {
    %c0 = arith.constant 0 : index
    %c0_0 = arith.constant 0 : index
    %0 = vector.load %arg2[%c0, %c0_0] : memref<2x128xf32, #tpu.memory_space<vmem>>, vector<2x128xf32>
    %cst = arith.constant dense<0.000000e+00> : vector<2xf32>
    %1 = vector.multi_reduction <add>, %0, %cst [1] : vector<2x128xf32> to vector<2xf32>
    %2 = vector.shape_cast %1 : vector<2xf32> to vector<2x1xf32>
    %cst_1 = arith.constant 1.280000e+02 : f32
    %3 = vector.broadcast %cst_1 : f32 to vector<2x1xf32>
    %4 = arith.divf %2, %3 : vector<2x1xf32>
    %5 = vector.broadcast %4 : vector<2x1xf32> to vector<2x128xf32>
    %6 = arith.subf %0, %5 : vector<2x128xf32>
    %7 = arith.mulf %6, %6 : vector<2x128xf32>
    %cst_2 = arith.constant dense<0.000000e+00> : vector<2xf32>
    %8 = vector.multi_reduction <add>, %7, %cst_2 [1] : vector<2x128xf32> to vector<2xf32>
    %9 = vector.shape_cast %8 : vector<2xf32> to vector<2x1xf32>
    %cst_3 = arith.constant 1.280000e+02 : f32
    %10 = vector.broadcast %cst_3 : f32 to vector<2x1xf32>
    %11 = arith.divf %9, %10 : vector<2x1xf32>
    %12 = vector.broadcast %4 : vector<2x1xf32> to vector<2x128xf32>
    %13 = arith.subf %0, %12 : vector<2x128xf32>
    %cst_4 = arith.constant 9.99999974E-6 : f32
    %14 = vector.broadcast %cst_4 : f32 to vector<2x1xf32>
    %15 = arith.addf %11, %14 : vector<2x1xf32>
    %16 = math.rsqrt %15 : vector<2x1xf32>
    %17 = vector.broadcast %16 : vector<2x1xf32> to vector<2x128xf32>
    %18 = arith.mulf %13, %17 : vector<2x128xf32>
    %c0_5 = arith.constant 0 : index
    %c0_6 = arith.constant 0 : index
    %19 = vector.load %arg3[%c0_5, %c0_6] : memref<1x128xf32, #tpu.memory_space<vmem>>, vector<1x128xf32>
    %20 = vector.broadcast %19 : vector<1x128xf32> to vector<2x128xf32>
    %21 = arith.mulf %18, %20 : vector<2x128xf32>
    %c0_7 = arith.constant 0 : index
    %c0_8 = arith.constant 0 : index
    %22 = vector.load %arg4[%c0_7, %c0_8] : memref<1x128xf32, #tpu.memory_space<vmem>>, vector<1x128xf32>
    %23 = vector.broadcast %22 : vector<1x128xf32> to vector<2x128xf32>
    %24 = arith.addf %21, %23 : vector<2x128xf32>
    %25 = arith.truncf %24 : vector<2x128xf32> to vector<2x128xbf16>
    %c0_9 = arith.constant 0 : index
    %c0_10 = arith.constant 0 : index
    %26 = vector.load %arg5[%c0_9, %c0_10] : memref<128x128xbf16, #tpu.memory_space<vmem>>, vector<128x128xbf16>
    %cst_11 = arith.constant dense<0.000000e+00> : vector<2x128xf32>
    %27 = tpu.matmul %25, %26, %cst_11 {dimension_numbers = #tpu.dot_dimension_numbers<[1], [0], [0], [1], [0, 0, 1, 1], [], []>} : vector<2x128xbf16>, vector<128x128xbf16>, vector<2x128xf32> -> vector<2x128xf32>
    %c0_12 = arith.constant 0 : index
    %c0_13 = arith.constant 0 : index
    %28 = vector.load %arg6[%c0_12, %c0_13] : memref<2x128xf32, #tpu.memory_space<vmem>>, vector<2x128xf32>
    tpu.vector_store %arg6[%c0_12, %c0_13], %27 {strides = array<i32>} : memref<2x128xf32, #tpu.memory_space<vmem>>, vector<2x128xf32>,
    return
  }
  func.func @transform_0(%arg0: i32, %arg1: i32) -> (i32, i32) {
    %c0_i32 = arith.constant 0 : i32
    %c0_i32_0 = arith.constant 0 : i32
    return %arg0, %c0_i32 : i32, i32
  }
  func.func @transform_1(%arg0: i32, %arg1: i32) -> (i32, i32) {
    %c0_i32 = arith.constant 0 : i32
    %c0_i32_0 = arith.constant 0 : i32
    %c0_i32_1 = arith.constant 0 : i32
    return %c0_i32, %c0_i32_0 : i32, i32
  }
  func.func @transform_2(%arg0: i32, %arg1: i32) -> (i32, i32) {
    %c0_i32 = arith.constant 0 : i32
    %c0_i32_0 = arith.constant 0 : i32
    %c0_i32_1 = arith.constant 0 : i32
    return %c0_i32, %c0_i32_0 : i32, i32
  }
  func.func @transform_3(%arg0: i32, %arg1: i32) -> (i32, i32) {
    %c0_i32 = arith.constant 0 : i32
    %c0_i32_0 = arith.constant 0 : i32
    return %c0_i32, %arg1 : i32, i32
  }
  func.func @transform_4(%arg0: i32, %arg1: i32) -> (i32, i32) {
    %c0_i32 = arith.constant 0 : i32
    return %arg0, %arg1 : i32, i32
  }
}

module attributes {stable_mosaic.version = 11 : i64} {
  func.func @_matmul_kernel(%arg0: i32, %arg1: i32, %arg2: i32, %arg3: memref<24x512xf32, #tpu.memory_space<vmem>>, %arg4: memref<512x128xbf16, #tpu.memory_space<vmem>>, %arg5: memref<1x128xf32, #tpu.memory_space<vmem>>, %arg6: memref<24x128xf32, #tpu.memory_space<vmem>>, %arg7: memref<24x128xf32, #tpu.memory_space<vmem>>, %arg8: memref<24x128xf32, #tpu.memory_space<vmem>>) attributes {dimension_semantics = [#tpu.dimension_semantics<parallel>, #tpu.dimension_semantics<parallel>, #tpu.dimension_semantics<arbitrary>], iteration_bounds = array<i64: 2, 1, 1>, scalar_prefetch = 0 : i64, scratch_operands = 1 : i64, tpu.core_type = #tpu.core_type<tc>, window_params = [{transform_indices = @transform_0, window_bounds = array<i64: 24, 512>}, {transform_indices = @transform_1, window_bounds = array<i64: 512, 128>}, {transform_indices = @transform_2, window_bounds = array<i64: 1, 128>}, {transform_indices = @transform_3, window_bounds = array<i64: 24, 128>}, {transform_indices = @transform_4, window_bounds = array<i64: 24, 128>}]} {
    %c0_i32 = arith.constant 0 : i32
    %0 = arith.cmpi eq, %arg2, %c0_i32 : i32
    %1 = arith.extui %0 : i1 to i32
    %c0_i32_0 = arith.constant 0 : i32
    %2 = arith.cmpi ne, %1, %c0_i32_0 : i32
    scf.if %2 {
      %cst_10 = arith.constant 0.000000e+00 : f32
      %13 = vector.broadcast %cst_10 : f32 to vector<24x128xf32>
      %c0_11 = arith.constant 0 : index
      %c0_12 = arith.constant 0 : index
      %14 = vector.load %arg8[%c0_11, %c0_12] : memref<24x128xf32, #tpu.memory_space<vmem>>, vector<24x128xf32>
      tpu.vector_store %arg8[%c0_11, %c0_12], %13 {strides = array<i32>} : memref<24x128xf32, #tpu.memory_space<vmem>>, vector<24x128xf32>,
    } else {
    }
    %c0 = arith.constant 0 : index
    %c0_1 = arith.constant 0 : index
    %3 = vector.load %arg8[%c0, %c0_1] : memref<24x128xf32, #tpu.memory_space<vmem>>, vector<24x128xf32>
    %c0_2 = arith.constant 0 : index
    %c0_3 = arith.constant 0 : index
    %4 = vector.load %arg3[%c0_2, %c0_3] : memref<24x512xf32, #tpu.memory_space<vmem>>, vector<24x512xf32>
    %5 = arith.truncf %4 : vector<24x512xf32> to vector<24x512xbf16>
    %c0_4 = arith.constant 0 : index
    %c0_5 = arith.constant 0 : index
    %6 = vector.load %arg4[%c0_4, %c0_5] : memref<512x128xbf16, #tpu.memory_space<vmem>>, vector<512x128xbf16>
    %cst = arith.constant dense<0.000000e+00> : vector<24x128xf32>
    %7 = tpu.matmul %5, %6, %cst {dimension_numbers = #tpu.dot_dimension_numbers<[1], [0], [0], [1], [0, 0, 1, 1], [], []>} : vector<24x512xbf16>, vector<512x128xbf16>, vector<24x128xf32> -> vector<24x128xf32>
    %8 = arith.addf %3, %7 : vector<24x128xf32>
    %c0_6 = arith.constant 0 : index
    %c0_7 = arith.constant 0 : index
    %9 = vector.load %arg8[%c0_6, %c0_7] : memref<24x128xf32, #tpu.memory_space<vmem>>, vector<24x128xf32>
    tpu.vector_store %arg8[%c0_6, %c0_7], %8 {strides = array<i32>} : memref<24x128xf32, #tpu.memory_space<vmem>>, vector<24x128xf32>,
    %c0_i32_8 = arith.constant 0 : i32
    %10 = arith.cmpi eq, %arg2, %c0_i32_8 : i32
    %11 = arith.extui %10 : i1 to i32
    %c0_i32_9 = arith.constant 0 : i32
    %12 = arith.cmpi ne, %11, %c0_i32_9 : i32
    scf.if %12 {
      %c0_10 = arith.constant 0 : index
      %c0_11 = arith.constant 0 : index
      %13 = vector.load %arg8[%c0_10, %c0_11] : memref<24x128xf32, #tpu.memory_space<vmem>>, vector<24x128xf32>
      %c0_12 = arith.constant 0 : index
      %c0_13 = arith.constant 0 : index
      %14 = vector.load %arg5[%c0_12, %c0_13] : memref<1x128xf32, #tpu.memory_space<vmem>>, vector<1x128xf32>
      %15 = vector.broadcast %14 : vector<1x128xf32> to vector<24x128xf32>
      %16 = arith.addf %13, %15 : vector<24x128xf32>
      %c0_14 = arith.constant 0 : index
      %c0_15 = arith.constant 0 : index
      %17 = vector.load %arg6[%c0_14, %c0_15] : memref<24x128xf32, #tpu.memory_space<vmem>>, vector<24x128xf32>
      %18 = arith.addf %16, %17 : vector<24x128xf32>
      %c0_16 = arith.constant 0 : index
      %c0_17 = arith.constant 0 : index
      %19 = vector.load %arg7[%c0_16, %c0_17] : memref<24x128xf32, #tpu.memory_space<vmem>>, vector<24x128xf32>
      tpu.vector_store %arg7[%c0_16, %c0_17], %18 {strides = array<i32>} : memref<24x128xf32, #tpu.memory_space<vmem>>, vector<24x128xf32>,
    } else {
    }
    return
  }
  func.func @transform_0(%arg0: i32, %arg1: i32, %arg2: i32) -> (i32, i32) {
    %c0_i32 = arith.constant 0 : i32
    return %arg0, %arg2 : i32, i32
  }
  func.func @transform_1(%arg0: i32, %arg1: i32, %arg2: i32) -> (i32, i32) {
    %c0_i32 = arith.constant 0 : i32
    return %arg2, %arg1 : i32, i32
  }
  func.func @transform_2(%arg0: i32, %arg1: i32, %arg2: i32) -> (i32, i32) {
    %c0_i32 = arith.constant 0 : i32
    %c0_i32_0 = arith.constant 0 : i32
    return %c0_i32, %arg1 : i32, i32
  }
  func.func @transform_3(%arg0: i32, %arg1: i32, %arg2: i32) -> (i32, i32) {
    %c0_i32 = arith.constant 0 : i32
    return %arg0, %arg1 : i32, i32
  }
  func.func @transform_4(%arg0: i32, %arg1: i32, %arg2: i32) -> (i32, i32) {
    %c0_i32 = arith.constant 0 : i32
    return %arg0, %arg1 : i32, i32
  }
}

</mosaic_0001>

<llo_original>
// kernel: encode_image.15
$region0: #{encode_image.15}
  #allocation0 [shape = 'u32[]', space=smem, size = 0x4, offset = 0x4, fixed_abs, tag = 'smem constant byte address 0x4 - core index']
  #allocation1 [shape = 'u32[144,128]{1,0:T(1,128)}', space=vmem, size = 0x12000, scoped, tag = 'internal scratch']
  #allocation2 [shape = 'f32[24,128]{1,0:T(8,128)}', space=vmem, size = 0x3000, scoped, tag = 'scratch operand']
  %s0 = inlined_call_operand.vmem [shape: f32[34,128], index: 0, kind: input, shape index: {}]
  %s1 = inlined_call_operand.vmem [shape: bf16[128,128], index: 1, kind: input, shape index: {}]
  %s2 = inlined_call_operand.vmem [shape: f32[1,128], index: 2, kind: input, shape index: {}]
  %s3 = inlined_call_operand.vmem [shape: f32[34,128], index: 3, kind: input, shape index: {}]
  %s4 = inlined_call_operand.vmem [shape: f32[34,128], index: 4, kind: output, shape index: {}]
  %s5 = sld [smem:[#allocation0]]
  $region105: #{encode_image.15} parent=0
    _
  %s7 = ssub.s32 1, %s5
  %s8 = scalar_select 0, %s7, %s5
  $region1: #{encode_image.15} parent=0
    #allocation3 [shape = 'u8[24576]{0}', space=vmem, size = 0x6000, scoped, tag = 'output window, operand 0']
    loop: start=0, step=1, limit=4
    $region2: #{encode_image.15} parent=1 // loop_pre_header
      _
    $region3: #{encode_image.15} parent=1 // loop_header
      %s10 = sphi 0, %s14
      %p11 = scmp.ge.s32.totalorder %s10, 4
      %s17 = sphi 0, %s36
      %s18 = sphi 0, %s32
      %s19 = sphi 0, %s28
      %s20 = sphi 0, %s17
      %s21 = sphi 0, %s18
      %s22 = sphi 0, %s19
      %s23 = sphi 0, %s20
      %s24 = sphi 0, %s21
      %s25 = sphi 0, %s22
      %s41 = sphi 0, %s43
      %s44 = sphi 0, %s41
      %s45 = sphi 0, %s44
      %s61 = sphi 0, %s45
      %s69 = sphi 0, %s71
      %s72 = sphi 0, %s69
      %s73 = sphi 0, %s72
      %s89 = sphi 0, %s73
      %s95 = sphi 0, %s97
      %s98 = sphi 0, %s95
      %s99 = sphi 0, %s98
      %s115 = sphi 0, %s99
      %s123 = sphi 0, %s125
      %s126 = sphi 0, %s123
      %s127 = sphi 0, %s126
      %s143 = sphi 0, %s127
      %s151 = sphi 0, %s153
      %s154 = sphi 0, %s151
      %s155 = sphi 0, %s154
      %s171 = sphi 0, %s155
    $region4: #{encode_image.15} parent=1 // loop_header_branch
      %13 = sbr.rel (%p11) target = $region8
    $region5: #{encode_image.15} parent=1 // loop_body
      %s15 = ssub.s32 %s10, 1
      %s16 = ssub.s32 %s10, 2
      %s26 = sadd.s32 1, %s19
      %p27 = scmp.ge.s32.totalorder %s26, 1
      %s28 = scalar_select %p27, 0, %s26
      %s29 = sadd.s32 1, %s18
      %s30 = scalar_select %p27, %s29, %s18
      %p31 = scmp.ge.s32.totalorder %s30, 1
      %s32 = scalar_select %p31, 0, %s30
      %s33 = sadd.s32 1, %s17
      %s34 = scalar_select %p31, %s33, %s17
      %p35 = scmp.ge.s32.totalorder %s34, 2
      %s36 = scalar_select %p35, 0, %s34
      %s37 = ssub.s32 %s17, %s36
      %s38 = ssub.s32 %s19, %s28
      %s39 = sor.u32 %s37, %s38
      %p40 = scmp.eq.s32.totalorder %s39, 0
      %s42 = sadd.s32 %s41, 1
      %s43 = scalar_select %p40, %s41, %s42
      %p46 = pneg %p40
      %p47 = scmp.eq.s32.totalorder %s10, 1
      %p48 = por %p46, %p47
      %p49 = scmp.ne.s32.totalorder %s41, %s44
      %p50 = scmp.eq.s32.totalorder %s10, 0
      %p51 = por %p49, %p50
      %p52 = scmp.ne.s32.totalorder %s41, %s44
      %p53 = scmp.eq.s32.totalorder %s15, 1
      %p54 = por %p52, %p53
      %p55 = scmp.ne.s32.totalorder %s44, %s45
      %p56 = scmp.eq.s32.totalorder %s15, 0
      %p57 = por %p55, %p56
      %p58 = scmp.ne.s32.totalorder %s44, %s45
      %p59 = scmp.eq.s32.totalorder %s16, 1
      %p60 = por %p58, %p59
      %p62 = scmp.ne.s32.totalorder %s45, %s61
      %p63 = scmp.eq.s32.totalorder %s16, 0
      %p64 = por %p62, %p63
      %s65 = ssub.s32 %s19, %s28
      %s66 = ssub.s32 %s18, %s32
      %s67 = sor.u32 %s65, %s66
      %p68 = scmp.eq.s32.totalorder %s67, 0
      %s70 = sadd.s32 %s69, 1
      %s71 = scalar_select %p68, %s69, %s70
      %p74 = pneg %p68
      %p75 = scmp.eq.s32.totalorder %s10, 1
      %p76 = por %p74, %p75
      %p77 = scmp.ne.s32.totalorder %s69, %s72
      %p78 = scmp.eq.s32.totalorder %s10, 0
      %p79 = por %p77, %p78
      %p80 = scmp.ne.s32.totalorder %s69, %s72
      %p81 = scmp.eq.s32.totalorder %s15, 1
      %p82 = por %p80, %p81
      %p83 = scmp.ne.s32.totalorder %s72, %s73
      %p84 = scmp.eq.s32.totalorder %s15, 0
      %p85 = por %p83, %p84
      %p86 = scmp.ne.s32.totalorder %s72, %s73
      %p87 = scmp.eq.s32.totalorder %s16, 1
      %p88 = por %p86, %p87
      %p90 = scmp.ne.s32.totalorder %s73, %s89
      %p91 = scmp.eq.s32.totalorder %s16, 0
      %p92 = por %p90, %p91
      %s93 = ssub.s32 %s18, %s32
      %p94 = scmp.eq.s32.totalorder %s93, 0
      %s96 = sadd.s32 %s95, 1
      %s97 = scalar_select %p94, %s95, %s96
      %p100 = pneg %p94
      %p101 = scmp.eq.s32.totalorder %s10, 1
      %p102 = por %p100, %p101
      %p103 = scmp.ne.s32.totalorder %s95, %s98
      %p104 = scmp.eq.s32.totalorder %s10, 0
      %p105 = por %p103, %p104
      %p106 = scmp.ne.s32.totalorder %s95, %s98
      %p107 = scmp.eq.s32.totalorder %s15, 1
      %p108 = por %p106, %p107
      %p109 = scmp.ne.s32.totalorder %s98, %s99
      %p110 = scmp.eq.s32.totalorder %s15, 0
      %p111 = por %p109, %p110
      %p112 = scmp.ne.s32.totalorder %s98, %s99
      %p113 = scmp.eq.s32.totalorder %s16, 1
      %p114 = por %p112, %p113
      %p116 = scmp.ne.s32.totalorder %s99, %s115
      %p117 = scmp.eq.s32.totalorder %s16, 0
      %p118 = por %p116, %p117
      %s119 = ssub.s32 %s17, %s36
      %s120 = ssub.s32 %s18, %s32
      %s121 = sor.u32 %s119, %s120
      %p122 = scmp.eq.s32.totalorder %s121, 0
      %s124 = sadd.s32 %s123, 1
      %s125 = scalar_select %p122, %s123, %s124
      %p128 = pneg %p122
      %p129 = scmp.eq.s32.totalorder %s10, 1
      %p130 = por %p128, %p129
      %p131 = scmp.ne.s32.totalorder %s123, %s126
      %p132 = scmp.eq.s32.totalorder %s10, 0
      %p133 = por %p131, %p132
      %p134 = scmp.ne.s32.totalorder %s123, %s126
      %p135 = scmp.eq.s32.totalorder %s15, 1
      %p136 = por %p134, %p135
      %p137 = scmp.ne.s32.totalorder %s126, %s127
      %p138 = scmp.eq.s32.totalorder %s15, 0
      %p139 = por %p137, %p138
      %p140 = scmp.ne.s32.totalorder %s126, %s127
      %p141 = scmp.eq.s32.totalorder %s16, 1
      %p142 = por %p140, %p141
      %p144 = scmp.ne.s32.totalorder %s127, %s143
      %p145 = scmp.eq.s32.totalorder %s16, 0
      %p146 = por %p144, %p145
      %s147 = ssub.s32 %s17, %s36
      %s148 = ssub.s32 %s18, %s32
      %s149 = sor.u32 %s147, %s148
      %p150 = scmp.eq.s32.totalorder %s149, 0
      %s152 = sadd.s32 %s151, 1
      %s153 = scalar_select %p150, %s151, %s152
      %p156 = pneg %p150
      %p157 = scmp.eq.s32.totalorder %s10, 1
      %p158 = por %p156, %p157
      %p159 = scmp.ne.s32.totalorder %s151, %s154
      %p160 = scmp.eq.s32.totalorder %s10, 0
      %p161 = por %p159, %p160
      %p162 = scmp.ne.s32.totalorder %s151, %s154
      %p163 = scmp.eq.s32.totalorder %s15, 1
      %p164 = por %p162, %p163
      %p165 = scmp.ne.s32.totalorder %s154, %s155
      %p166 = scmp.eq.s32.totalorder %s15, 0
      %p167 = por %p165, %p166
      %p168 = scmp.ne.s32.totalorder %s154, %s155
      %p169 = scmp.eq.s32.totalorder %s16, 1
      %p170 = por %p168, %p169
      %p172 = scmp.ne.s32.totalorder %s155, %s171
      %p173 = scmp.eq.s32.totalorder %s16, 0
      %p174 = por %p172, %p173
      %p175 = scmp.le.s32.totalorder 1, %s10
      %p176 = scmp.lt.s32.totalorder %s10, 3
      %p177 = pnand %p175, %p176
      %p178 = pneg %p177
      // Predicated region
      $region9: #{encode_image.15} parent=5 // pred_check
        _
      $region10: #{encode_image.15} parent=5 // pred_check_branch
        %180 = sbr.rel (%p177) target = $region12
      $region11: #{encode_image.15} parent=5 // pred_region
        %s181 = ssub.s32 %s10, 1
        // Predicated region
        $region13: #{encode_image.15} parent=11 // pred_check
          %p182 = pneg %p85
        $region14: #{encode_image.15} parent=11 // pred_check_branch
          %184 = sbr.rel (%p182) target = $region16
        $region15: #{encode_image.15} parent=11 // pred_region
          %s185 = smul.u32 16, %s22
          %p186 = scmp.lt.s32.totalorder %s185, 15
          %s187 = scalar_select %p186, %s185, 15
          %p188 = scmp.lt.s32.totalorder %s21, 0
          %s189 = scalar_select %p188, %s21, 0
          %s190 = sadd.s32 %s189, %s187
          %s191 = smul.addr %s190, 4
          %s192 = scalar_lea.vmem %s1, %s191
          %s193 = smul.u32 16, %s22
        $region16: #{encode_image.15} parent=11 // pred_fallthru
          _
        // Predicated region
        $region17: #{encode_image.15} parent=11 // pred_check
          %p194 = pneg %p111
        $region18: #{encode_image.15} parent=11 // pred_check_branch
          %196 = sbr.rel (%p194) target = $region20
        $region19: #{encode_image.15} parent=11 // pred_region
          %p197 = scmp.lt.s32.totalorder %s21, 0
          %s198 = scalar_select %p197, %s21, 0
          %s199 = scalar_lea.vmem %s2, %s198
        $region20: #{encode_image.15} parent=11 // pred_fallthru
          _
      $region12: #{encode_image.15} parent=5 // pred_fallthru
        _
      %p200 = scmp.lt.s32.totalorder %s10, 2
      // Predicated region
      $region21: #{encode_image.15} parent=5 // pred_check
        %p201 = pneg %p200
      $region22: #{encode_image.15} parent=5 // pred_check_branch
        %203 = sbr.rel (%p201) target = $region24
      $region23: #{encode_image.15} parent=5 // pred_region
        // Predicated region
        $region25: #{encode_image.15} parent=23 // pred_check
          %p204 = pneg %p51
        $region26: #{encode_image.15} parent=23 // pred_check_branch
          %206 = sbr.rel (%p204) target = $region28
        $region27: #{encode_image.15} parent=23 // pred_region
          %s207 = smul.u32 3, %s17
          %s208 = ssub.s32 5, %s207
          %p209 = scmp.lt.s32.totalorder %s208, 3
          %s210 = scalar_select %p209, %s208, 3
          %s211 = smul.u32 128, %s210
          %p212 = scmp.lt.s32.totalorder %s207, 4
          %s213 = scalar_select %p212, %s207, 4
          %p214 = scmp.lt.s32.totalorder %s19, 0
          %s215 = scalar_select %p214, %s19, 0
          %s216 = sadd.s32 %s215, %s213
          %s217 = smul.addr %s216, 8
          %s218 = scalar_lea.vmem %s0, %s217
          %s219 = smul.u32 3, %s17
          %s220 = ssub.s32 5, %s219
          %p221 = scmp.lt.s32.totalorder %s220, 3
          %s222 = scalar_select %p221, %s220, 3
          %s223 = smul.u32 128, %s222
        $region28: #{encode_image.15} parent=23 // pred_fallthru
          _
        // Predicated region
        $region29: #{encode_image.15} parent=23 // pred_check
          %p224 = pneg %p133
        $region30: #{encode_image.15} parent=23 // pred_check_branch
          %226 = sbr.rel (%p224) target = $region32
        $region31: #{encode_image.15} parent=23 // pred_region
          %s227 = smul.u32 3, %s17
          %s228 = ssub.s32 5, %s227
          %p229 = scmp.lt.s32.totalorder %s228, 3
          %s230 = scalar_select %p229, %s228, 3
          %s231 = smul.u32 128, %s230
          %p232 = scmp.lt.s32.totalorder %s227, 4
          %s233 = scalar_select %p232, %s227, 4
          %p234 = scmp.lt.s32.totalorder %s18, 0
          %s235 = scalar_select %p234, %s18, 0
          %s236 = sadd.s32 %s235, %s233
          %s237 = smul.addr %s236, 8
          %s238 = scalar_lea.vmem %s3, %s237
          %s239 = smul.u32 3, %s17
          %s240 = ssub.s32 5, %s239
          %p241 = scmp.lt.s32.totalorder %s240, 3
          %s242 = scalar_select %p241, %s240, 3
          %s243 = smul.u32 128, %s242
        $region32: #{encode_image.15} parent=23 // pred_fallthru
          _
      $region24: #{encode_image.15} parent=5 // pred_fallthru
        _
      %p244 = scmp.le.s32.totalorder 1, %s10
      %p245 = scmp.lt.s32.totalorder %s10, 3
      %p246 = pnand %p244, %p245
      %p247 = pneg %p246
      // Predicated region
      $region33: #{encode_image.15} parent=5 // pred_check
        _
      $region34: #{encode_image.15} parent=5 // pred_check_branch
        %249 = sbr.rel (%p246) target = $region36
      $region35: #{encode_image.15} parent=5 // pred_region
        %s250 = ssub.s32 %s10, 1
        %s251 = smul.u32 3, %s20
        %s252 = ssub.s32 5, %s251
        %p253 = scmp.lt.s32.totalorder %s252, 3
        %s254 = scalar_select %p253, %s252, 3
        %s255 = smul.u32 128, %s254
        %p256 = scmp.lt.s32.totalorder %s251, 4
        %s257 = scalar_select %p256, %s251, 4
        %p258 = scmp.lt.s32.totalorder %s22, 0
        %s259 = scalar_select %p258, %s22, 0
        %s260 = sadd.s32 %s259, %s257
        %s261 = smul.addr %s260, 8
        %s262 = scalar_lea.vmem %s0, %s261
        %p263 = pneg %p57
        %p264 = pneg %p54
        %s265 = smul.u32 16, %s22
        %p266 = scmp.lt.s32.totalorder %s265, 15
        %s267 = scalar_select %p266, %s265, 15
        %p268 = scmp.lt.s32.totalorder %s21, 0
        %s269 = scalar_select %p268, %s21, 0
        %s270 = sadd.s32 %s269, %s267
        %s271 = smul.addr %s270, 4
        %s272 = scalar_lea.vmem %s1, %s271
        %p273 = pneg %p85
        %p274 = pneg %p82
        %p275 = scmp.lt.s32.totalorder %s21, 0
        %s276 = scalar_select %p275, %s21, 0
        %s277 = scalar_lea.vmem %s2, %s276
        %p278 = pneg %p111
        %p279 = pneg %p108
        %s280 = smul.u32 3, %s20
        %s281 = ssub.s32 5, %s280
        %p282 = scmp.lt.s32.totalorder %s281, 3
        %s283 = scalar_select %p282, %s281, 3
        %s284 = smul.u32 128, %s283
        %p285 = scmp.lt.s32.totalorder %s280, 4
        %s286 = scalar_select %p285, %s280, 4
        %p287 = scmp.lt.s32.totalorder %s21, 0
        %s288 = scalar_select %p287, %s21, 0
        %s289 = sadd.s32 %s288, %s286
        %s290 = smul.addr %s289, 8
        %s291 = scalar_lea.vmem %s3, %s290
        %p292 = pneg %p139
        %p293 = pneg %p136
        %p294 = pneg %p167
        %p295 = pneg %p164
        %s296 = sand.u32 %s154, 1
        %s297 = sand.u32 %s154, 1
        %s298 = smul.addr %s297, 24
        %s299 = scalar_lea.vmem [#allocation3], %s298
        %s300 = smul.u32 3, %s20
        %s301 = ssub.s32 5, %s300
        %p302 = scmp.lt.s32.totalorder %s301, 3
        %s303 = scalar_select %p302, %s301, 3
        %s304 = smul.u32 128, %s303
        %p305 = scmp.lt.s32.totalorder %s300, 4
        %s306 = scalar_select %p305, %s300, 4
        %p307 = scmp.lt.s32.totalorder %s22, 0
        %s308 = scalar_select %p307, %s22, 0
        %s309 = sadd.s32 %s308, %s306
        %s310 = smul.addr %s309, 8
        %s311 = scalar_lea.vmem %s0, %s310
        %s312 = smul.u32 3, %s20
        %s313 = ssub.s32 5, %s312
        %p314 = scmp.lt.s32.totalorder %s313, 3
        %s315 = scalar_select %p314, %s313, 3
        %s316 = smul.u32 128, %s315
        %s317 = smul.u32 16, %s22
        %p318 = scmp.lt.s32.totalorder %s317, 15
        %s319 = scalar_select %p318, %s317, 15
        %p320 = scmp.lt.s32.totalorder %s21, 0
        %s321 = scalar_select %p320, %s21, 0
        %s322 = sadd.s32 %s321, %s319
        %s323 = smul.addr %s322, 4
        %s324 = scalar_lea.vmem %s1, %s323
        %s325 = smul.u32 16, %s22
        %p326 = scmp.lt.s32.totalorder %s21, 0
        %s327 = scalar_select %p326, %s21, 0
        %s328 = scalar_lea.vmem %s2, %s327
        %s329 = smul.u32 3, %s20
        %s330 = ssub.s32 5, %s329
        %p331 = scmp.lt.s32.totalorder %s330, 3
        %s332 = scalar_select %p331, %s330, 3
        %s333 = smul.u32 128, %s332
        %p334 = scmp.lt.s32.totalorder %s329, 4
        %s335 = scalar_select %p334, %s329, 4
        %p336 = scmp.lt.s32.totalorder %s21, 0
        %s337 = scalar_select %p336, %s21, 0
        %s338 = sadd.s32 %s337, %s335
        %s339 = smul.addr %s338, 8
        %s340 = scalar_lea.vmem %s3, %s339
        %s341 = smul.u32 3, %s20
        %s342 = ssub.s32 5, %s341
        %p343 = scmp.lt.s32.totalorder %s342, 3
        %s344 = scalar_select %p343, %s342, 3
        %s345 = smul.u32 128, %s344
        %s346 = smul.u32 3, %s20
        %s347 = ssub.s32 5, %s346
        %p348 = scmp.lt.s32.totalorder %s347, 3
        %s349 = scalar_select %p348, %s347, 3
        %s350 = smul.u32 128, %s349
        %p352 = scmp.eq.s32.totalorder %s22, 0
        // Predicated region
        $region37: #{encode_image.15} parent=35 // pred_check
          %p353 = pneg %p352
        $region38: #{encode_image.15} parent=35 // pred_check_branch
          %355 = sbr.rel (%p353) target = $region40
        $region39: #{encode_image.15} parent=35 // pred_region
          %356 = vst [vmem:[#allocation2] sm:$0xff] 0.0
          %357 = vst [vmem:[#allocation2 + $0x8] sm:$0xff] 0.0
          %358 = vst [vmem:[#allocation2 + $0x10] sm:$0xff] 0.0
        $region40: #{encode_image.15} parent=35 // pred_fallthru
          _
        %v359 = vld [vmem:[#allocation2] sm:$0xff]
        %v360 = vld [vmem:[#allocation2 + $0x8] sm:$0xff]
        %v361 = vld [vmem:[#allocation2 + $0x10] sm:$0xff]
        %v362 = vld [vmem:[%s311] sm:$0xff]
        %v363 = vld [vmem:[%s311 + $0x8] sm:$0xff]
        %v364 = vld [vmem:[%s311 + $0x10] sm:$0xff]
        %v365 = vpack.c.bf16 %v363, %v362
        %v366 = vpack.c.bf16 %v364, %v364
        %v367 = vld [vmem:[%s324] sm:$0xf]
        %v368 = vld [vmem:[%s324 + $0x4] sm:$0xf]
        %v369 = vld [vmem:[%s324 + $0x8] sm:$0xf]
        %v370 = vld [vmem:[%s324 + $0xc] sm:$0xf]
        %v371 = vld [vmem:[%s324 + $0x10] sm:$0xf]
        %v372 = vld [vmem:[%s324 + $0x14] sm:$0xf]
        %v373 = vld [vmem:[%s324 + $0x18] sm:$0xf]
        %v374 = vld [vmem:[%s324 + $0x1c] sm:$0xf]
        %v375 = vld [vmem:[%s324 + $0x20] sm:$0xf]
        %v376 = vld [vmem:[%s324 + $0x24] sm:$0xf]
        %v377 = vld [vmem:[%s324 + $0x28] sm:$0xf]
        %v378 = vld [vmem:[%s324 + $0x2c] sm:$0xf]
        %v379 = vld [vmem:[%s324 + $0x30] sm:$0xf]
        %v380 = vld [vmem:[%s324 + $0x34] sm:$0xf]
        %v381 = vld [vmem:[%s324 + $0x38] sm:$0xf]
        %v382 = vld [vmem:[%s324 + $0x3c] sm:$0xf]
        %v399 = vunpack.c.l.b16 %v367
        %v400 = vunpack.c.l.b16 %v368
        %v401 = vunpack.c.l.b16 %v369
        %v402 = vunpack.c.l.b16 %v370
        %v403 = vunpack.c.l.b16 %v371
        %v404 = vunpack.c.l.b16 %v372
        %v405 = vunpack.c.l.b16 %v373
        %v406 = vunpack.c.l.b16 %v374
        %v407 = vunpack.c.l.b16 %v375
        %v408 = vunpack.c.l.b16 %v376
        %v409 = vunpack.c.l.b16 %v377
        %v410 = vunpack.c.l.b16 %v378
        %v411 = vunpack.c.l.b16 %v379
        %v412 = vunpack.c.l.b16 %v380
        %v413 = vunpack.c.l.b16 %v381
        %v414 = vunpack.c.l.b16 %v382
        %v415 = vpack.c.b16 %v400, %v399
        %v416 = vpack.c.b16 %v402, %v401
        %v417 = vpack.c.b16 %v404, %v403
        %v418 = vpack.c.b16 %v406, %v405
        %v419 = vpack.c.b16 %v408, %v407
        %v420 = vpack.c.b16 %v410, %v409
        %v421 = vpack.c.b16 %v412, %v411
        %v422 = vpack.c.b16 %v414, %v413
        %431 = vmatprep.subr.bf16.mxu0 0
        %432 = vmatpush1.bf16.msra.mxu0 %v415
        %433 = vmatprep.subr.bf16.mxu0 0
        %434 = vmatpush1.bf16.msra.mxu0 %v416
        %435 = vmatprep.subr.bf16.mxu0 0
        %436 = vmatpush1.bf16.msra.mxu0 %v417
        %437 = vmatprep.subr.bf16.mxu0 0
        %438 = vmatpush1.bf16.msra.mxu0 %v418
        %439 = vmatprep.subr.bf16.mxu0 0
        %440 = vmatpush1.bf16.msra.mxu0 %v419
        %441 = vmatprep.subr.bf16.mxu0 0
        %442 = vmatpush1.bf16.msra.mxu0 %v420
        %443 = vmatprep.subr.bf16.mxu0 0
        %444 = vmatpush1.bf16.msra.mxu0 %v421
        %445 = vmatprep.subr.bf16.mxu0 0
        %446 = vmatpush1.bf16.msra.mxu0 %v422
        %447 = vmatprep.subr.bf16.mxu0 0
        %448 = vmatpush1.bf16.msra.mxu0 0
        %449 = vmatprep.subr.bf16.mxu0 0
        %450 = vmatpush1.bf16.msra.mxu0 0
        %451 = vmatprep.subr.bf16.mxu0 0
        %452 = vmatpush1.bf16.msra.mxu0 0
        %453 = vmatprep.subr.bf16.mxu0 0
        %454 = vmatpush1.bf16.msra.mxu0 0
        %455 = vmatprep.subr.bf16.mxu0 0
        %456 = vmatpush1.bf16.msra.mxu0 0
        %457 = vmatprep.subr.bf16.mxu0 0
        %458 = vmatpush1.bf16.msra.mxu0 0
        %459 = vmatprep.subr.bf16.mxu0 0
        %460 = vmatpush1.bf16.msra.mxu0 0
        %461 = vmatprep.subr.bf16.mxu0 0
        %462 = vmatpush1.bf16.msra.mxu0 0
        %463 = vmatprep.mubr.bf16.mxu0 0
        %464 = vmatmul.mubr.bf16.gmra.mrb[0].mxu0 %v365
        %v465 = vpop.f32.mrb[0].mxu0
        %v466 = vadd.f32 0.0, %v465
        %v467 = vpop.f32.mrb[0].mxu0
        %v468 = vpop.f32.mrb[0].mxu0
        %v469 = vadd.f32 0.0, %v468
        %v470 = vpop.f32.mrb[0].mxu0
        %471 = vmatprep.mubr.bf16.mxu0 0
        %472 = vmatmul.mubr.bf16.gmra.mrb[0].mxu0 %v366
        %v473 = vpop.f32.mrb[0].mxu0
        %v474 = vadd.f32 0.0, %v473
        %v475 = vpop.f32.mrb[0].mxu0
        %v476 = vpop.f32.mrb[0].mxu0
        %v477 = vpop.f32.mrb[0].mxu0
        %478 = vdwg.mxu0
        %v479 = vadd.f32 %v359, %v466
        %v480 = vadd.f32 %v360, %v469
        %v481 = vadd.f32 %v361, %v474
        %482 = vst [vmem:[#allocation2] sm:$0xff] %v479
        %483 = vst [vmem:[#allocation2 + $0x8] sm:$0xff] %v480
        %484 = vst [vmem:[#allocation2 + $0x10] sm:$0xff] %v481
        // Predicated region
        $region41: #{encode_image.15} parent=35 // pred_check
          %p485 = pneg %p352
        $region42: #{encode_image.15} parent=35 // pred_check_branch
          %487 = sbr.rel (%p485) target = $region44
        $region43: #{encode_image.15} parent=35 // pred_region
          %v488 = vld [vmem:[#allocation2] sm:$0xff]
          %v489 = vld [vmem:[#allocation2 + $0x8] sm:$0xff]
          %v490 = vld [vmem:[#allocation2 + $0x10] sm:$0xff]
          %v491 = vld [vmem:[%s328] sm:$0x1]
          %v493 = vlaneseq
          %v494 = vshrl.u32 %v493, 7
          %v495 = vsub.s32 0, %v494
          %v496 = vrot.slane %v491, %v495
          %v498 = vadd.f32 %v488, %v496
          %v499 = vadd.f32 %v489, %v496
          %v500 = vadd.f32 %v490, %v496
          %v501 = vld [vmem:[%s340] sm:$0xff]
          %v502 = vld [vmem:[%s340 + $0x8] sm:$0xff]
          %v503 = vld [vmem:[%s340 + $0x10] sm:$0xff]
          %v504 = vadd.f32 %v498, %v501
          %v505 = vadd.f32 %v499, %v502
          %v506 = vadd.f32 %v500, %v503
          %507 = vst [vmem:[%s299] sm:$0xff] %v504
          %508 = vst [vmem:[%s299 + $0x8] sm:$0xff] %v505
          %509 = vst [vmem:[%s299 + $0x10] sm:$0xff] %v506
        $region44: #{encode_image.15} parent=35 // pred_fallthru
          _
        %s510 = sand.u32 %s154, 1
        %s511 = sand.u32 %s154, 1
        %s512 = smul.addr %s511, 24
        %s513 = scalar_lea.vmem [#allocation3], %s512
        // Predicated region
        $region45: #{encode_image.15} parent=35 // pred_check
          %p514 = pneg %p164
        $region46: #{encode_image.15} parent=35 // pred_check_branch
          %516 = sbr.rel (%p514) target = $region48
        $region47: #{encode_image.15} parent=35 // pred_region
          %s517 = smul.u32 3, %s20
          %s518 = ssub.s32 5, %s517
          %p519 = scmp.lt.s32.totalorder %s518, 3
          %s520 = scalar_select %p519, %s518, 3
          %s521 = smul.u32 128, %s520
          %p522 = scmp.ne.s32.totalorder 0, %s521
          %s523 = sadd.s32 %s21, %s517
          %s524 = smul.addr %s523, 8
          %s525 = scalar_lea.vmem %s4, %s524
          // Predicated region
          $region49: #{encode_image.15} parent=47 // pred_check
            %p526 = pneg %p522
          $region50: #{encode_image.15} parent=47 // pred_check_branch
            %528 = sbr.rel (%p526) target = $region52
          $region51: #{encode_image.15} parent=47 // pred_region
            // Predicated region
            $region53: #{encode_image.15} parent=51 // pred_check
              _
            $region54: #{encode_image.15} parent=51 // pred_check_branch
              %530 = sbr.rel (0) target = $region56
            $region55: #{encode_image.15} parent=51 // pred_region
              // Predicated region
              $region75: #{encode_image.15} parent=55 // pred_check
                _
              $region76: #{encode_image.15} parent=55 // pred_check_branch
                %584 = sbr.rel (0) target = $region78
              $region77: #{encode_image.15} parent=55 // pred_region
                %s585 = sdiv.u32.pop %s520, 3
                %s586 = srem.u32.pop %s520, 3
                // While loop
                $region79: #{encode_image.15} parent=77 // loop_pre_header
                  _
                $region80: #{encode_image.15} parent=77 // loop_header
                  %s588 = sphi 0, %s590
                  %p589 = scmp.ge.s32.totalorder %s588, %s585
                  %s593 = sphi 0, %s604
                  %s594 = sphi %s513, %s607
                  %s595 = sphi %s525, %s608
                $region81: #{encode_image.15} parent=77 // loop_header_branch
                  %592 = sbr.rel (%p589) target = $region85
                $region82: #{encode_image.15} parent=77 // loop_body
                  %v596 = vld [vmem:[%s594] sm:$0xff]
                  %597 = vst [vmem:[%s595] sm:$0xff] %v596
                  %v598 = vld [vmem:[%s594 + $0x8] sm:$0xff]
                  %599 = vst [vmem:[%s595 + $0x8] sm:$0xff] %v598
                  %v600 = vld [vmem:[%s594 + $0x10] sm:$0xff]
                  %601 = vst [vmem:[%s595 + $0x10] sm:$0xff] %v600
                  %s602 = sadd.s32 1, %s593
                  %p603 = scmp.ge.s32.totalorder %s602, %s585
                  %s604 = scalar_select %p603, 0, %s602
                  %s605 = smul.u32 %s604, 24
                  %s606 = smul.u32 %s604, 24
                  %s607 = scalar_lea.vmem %s513, %s605 [#allocation3]
                  %s608 = scalar_lea.vmem %s525, %s606
                $region83: #{encode_image.15} parent=77 // loop_footer
                  %s590 = sadd.s32 %s588, 1
                $region84: #{encode_image.15} parent=77 // loop_footer_branch
                  %587 = sbr.rel target = $region80
                $region85: #{encode_image.15} parent=77 // loop_exit
                  _
                %s609 = sdiv.u32.pop %s520, 3
                %s610 = srem.u32.pop %s520, 3
                %s611 = smul.u32 %s609, 3
                %s612 = smul.u32 8, %s611
                %s613 = scalar_lea.vmem %s513, %s612 [#allocation3]
                %s614 = smul.u32 8, %s611
                %s615 = scalar_lea.vmem %s525, %s614
                // While loop
                $region86: #{encode_image.15} parent=77 // loop_pre_header
                  _
                $region87: #{encode_image.15} parent=77 // loop_header
                  %s617 = sphi 0, %s619
                  %p618 = scmp.ge.s32.totalorder %s617, %s610
                  %s622 = sphi 0, %s629
                  %s623 = sphi %s613, %s632
                  %s624 = sphi %s615, %s633
                $region88: #{encode_image.15} parent=77 // loop_header_branch
                  %621 = sbr.rel (%p618) target = $region92
                $region89: #{encode_image.15} parent=77 // loop_body
                  %v625 = vld [vmem:[%s623] sm:$0xff]
                  %626 = vst [vmem:[%s624] sm:$0xff] %v625
                  %s627 = sadd.s32 1, %s622
                  %p628 = scmp.ge.s32.totalorder %s627, %s610
                  %s629 = scalar_select %p628, 0, %s627
                  %s630 = smul.u32 %s629, 8
                  %s631 = smul.u32 %s629, 8
                  %s632 = scalar_lea.vmem %s613, %s630 [#allocation3]
                  %s633 = scalar_lea.vmem %s615, %s631
                $region90: #{encode_image.15} parent=77 // loop_footer
                  %s619 = sadd.s32 %s617, 1
                $region91: #{encode_image.15} parent=77 // loop_footer_branch
                  %616 = sbr.rel target = $region87
                $region92: #{encode_image.15} parent=77 // loop_exit
                  _
              $region78: #{encode_image.15} parent=55 // pred_fallthru
                _
              // Predicated region
              $region93: #{encode_image.15} parent=55 // pred_check
                _
              $region94: #{encode_image.15} parent=55 // pred_check_branch
                %635 = sbr.rel target = $region96
              $region95: #{encode_image.15} parent=55 // pred_region
                _
              $region96: #{encode_image.15} parent=55 // pred_fallthru
                _
            $region56: #{encode_image.15} parent=51 // pred_fallthru
              _
            // Predicated region
            $region57: #{encode_image.15} parent=51 // pred_check
              _
            $region58: #{encode_image.15} parent=51 // pred_check_branch
              %532 = sbr.rel target = $region60
            $region59: #{encode_image.15} parent=51 // pred_region
              %s534 = sdiv.u32.pop %s520, 3
              %s535 = srem.u32.pop %s520, 3
              // While loop
              $region61: #{encode_image.15} parent=59 // loop_pre_header
                _
              $region62: #{encode_image.15} parent=59 // loop_header
                %s537 = sphi 0, %s539
                %p538 = scmp.ge.s32.totalorder %s537, %s534
                %s542 = sphi 0, %s553
                %s543 = sphi %s513, %s556
                %s544 = sphi %s525, %s557
              $region63: #{encode_image.15} parent=59 // loop_header_branch
                %541 = sbr.rel (%p538) target = $region67
              $region64: #{encode_image.15} parent=59 // loop_body
                %v545 = vld [vmem:[%s543] sm:$0xff]
                %546 = vst [vmem:[%s544] sm:$0xff] %v545
                %v547 = vld [vmem:[%s543 + $0x8] sm:$0xff]
                %548 = vst [vmem:[%s544 + $0x8] sm:$0xff] %v547
                %v549 = vld [vmem:[%s543 + $0x10] sm:$0xff]
                %550 = vst [vmem:[%s544 + $0x10] sm:$0xff] %v549
                %s551 = sadd.s32 1, %s542
                %p552 = scmp.ge.s32.totalorder %s551, %s534
                %s553 = scalar_select %p552, 0, %s551
                %s554 = smul.u32 %s553, 24
                %s555 = smul.u32 %s553, 24
                %s556 = scalar_lea.vmem %s513, %s554 [#allocation3]
                %s557 = scalar_lea.vmem %s525, %s555
              $region65: #{encode_image.15} parent=59 // loop_footer
                %s539 = sadd.s32 %s537, 1
              $region66: #{encode_image.15} parent=59 // loop_footer_branch
                %536 = sbr.rel target = $region62
              $region67: #{encode_image.15} parent=59 // loop_exit
                _
              %s558 = sdiv.u32.pop %s520, 3
              %s559 = srem.u32.pop %s520, 3
              %s560 = smul.u32 %s558, 3
              %s561 = smul.u32 8, %s560
              %s562 = scalar_lea.vmem %s513, %s561 [#allocation3]
              %s563 = smul.u32 8, %s560
              %s564 = scalar_lea.vmem %s525, %s563
              // While loop
              $region68: #{encode_image.15} parent=59 // loop_pre_header
                _
              $region69: #{encode_image.15} parent=59 // loop_header
                %s566 = sphi 0, %s568
                %p567 = scmp.ge.s32.totalorder %s566, %s559
                %s571 = sphi 0, %s578
                %s572 = sphi %s562, %s581
                %s573 = sphi %s564, %s582
              $region70: #{encode_image.15} parent=59 // loop_header_branch
                %570 = sbr.rel (%p567) target = $region74
              $region71: #{encode_image.15} parent=59 // loop_body
                %v574 = vld [vmem:[%s572] sm:$0xff]
                %575 = vst [vmem:[%s573] sm:$0xff] %v574
                %s576 = sadd.s32 1, %s571
                %p577 = scmp.ge.s32.totalorder %s576, %s559
                %s578 = scalar_select %p577, 0, %s576
                %s579 = smul.u32 %s578, 8
                %s580 = smul.u32 %s578, 8
                %s581 = scalar_lea.vmem %s562, %s579 [#allocation3]
                %s582 = scalar_lea.vmem %s564, %s580
              $region72: #{encode_image.15} parent=59 // loop_footer
                %s568 = sadd.s32 %s566, 1
              $region73: #{encode_image.15} parent=59 // loop_footer_branch
                %565 = sbr.rel target = $region69
              $region74: #{encode_image.15} parent=59 // loop_exit
                _
            $region60: #{encode_image.15} parent=51 // pred_fallthru
              _
          $region52: #{encode_image.15} parent=47 // pred_fallthru
            _
          %636 = vnop
        $region48: #{encode_image.15} parent=35 // pred_fallthru
          _
      $region36: #{encode_image.15} parent=5 // pred_fallthru
        _
      %p637 = scmp.le.s32.totalorder 2, %s10
      // Predicated region
      $region97: #{encode_image.15} parent=5 // pred_check
        %p638 = pneg %p637
      $region98: #{encode_image.15} parent=5 // pred_check_branch
        %640 = sbr.rel (%p638) target = $region100
      $region99: #{encode_image.15} parent=5 // pred_region
        %s641 = ssub.s32 %s10, 2
        // Predicated region
        $region101: #{encode_image.15} parent=99 // pred_check
          %p642 = pneg %p170
        $region102: #{encode_image.15} parent=99 // pred_check_branch
          %644 = sbr.rel (%p642) target = $region104
        $region103: #{encode_image.15} parent=99 // pred_region
          %s645 = sand.u32 %s155, 1
          %s646 = sand.u32 %s155, 1
          %s647 = smul.addr %s646, 24
          %s648 = scalar_lea.vmem [#allocation3], %s647
        $region104: #{encode_image.15} parent=99 // pred_fallthru
          _
      $region100: #{encode_image.15} parent=5 // pred_fallthru
        _
    $region6: #{encode_image.15} parent=1 // loop_footer
      %s14 = sadd.s32 1, %s10
    $region7: #{encode_image.15} parent=1 // loop_footer_branch
      %9 = sbr.rel target = $region3
    $region8: #{encode_image.15} parent=1 // loop_exit
      _

// kernel: encode_image.12
$region0: #{encode_image.12}
  #allocation0 [shape = 'u32[]', space=smem, size = 0x4, offset = 0x4, fixed_abs, tag = 'smem constant byte address 0x4 - core index']
  #allocation1 [shape = 'u32[144,128]{1,0:T(1,128)}', space=vmem, size = 0x12000, scoped, tag = 'internal scratch']
  %s0 = inlined_call_operand.vmem [shape: f32[2,17,192], index: 0, kind: input, shape index: {}]
  %s1 = inlined_call_operand.vmem [shape: bf16[192,128], index: 1, kind: input, shape index: {}]
  %s2 = inlined_call_operand.vmem [shape: f32[17,128], index: 2, kind: input, shape index: {}]
  %s3 = inlined_call_operand.vmem [shape: f32[1,128], index: 3, kind: input, shape index: {}]
  %s4 = inlined_call_operand.vmem [shape: f32[1,128], index: 4, kind: input, shape index: {}]
  %s5 = inlined_call_operand.vmem [shape: f32[2,17,128], index: 5, kind: output, shape index: {}]
  %s6 = sld [smem:[#allocation0]]
  $region53: #{encode_image.12} parent=0
    _
  %s8 = ssub.s32 1, %s6
  %s9 = scalar_select 0, %s8, %s6
  loop: start=0, step=1, limit=4
  $region2: #{encode_image.12} parent=0 // loop_pre_header
    _
  $region3: #{encode_image.12} parent=0 // loop_header
    %s11 = sphi 0, %s15
    %p12 = scmp.ge.s32.totalorder %s11, 4
    %s21 = sphi 0, %s23
    %s24 = sphi 0, %s21
    %s25 = sphi 0, %s24
    %s41 = sphi 0, %s25
    %s45 = sphi 0, %s45
    %s47 = sphi 0, %s45
    %s48 = sphi 0, %s47
    %s62 = sphi 0, %s48
    %s66 = sphi 0, %s66
    %s68 = sphi 0, %s66
    %s69 = sphi 0, %s68
    %s83 = sphi 0, %s69
    %s87 = sphi 0, %s87
    %s89 = sphi 0, %s87
    %s90 = sphi 0, %s89
    %s104 = sphi 0, %s90
    %s108 = sphi 0, %s108
    %s110 = sphi 0, %s108
    %s111 = sphi 0, %s110
    %s125 = sphi 0, %s111
    %s131 = sphi 0, %s133
    %s134 = sphi 0, %s131
    %s135 = sphi 0, %s134
    %s151 = sphi 0, %s135
  $region4: #{encode_image.12} parent=0 // loop_header_branch
    %14 = sbr.rel (%p12) target = $region8
  $region5: #{encode_image.12} parent=0 // loop_body
    %s16 = ssub.s32 %s11, 1
    %s17 = ssub.s32 %s11, 2
    %s18 = sadd.s32 %s11, 1
    %s19 = ssub.s32 %s11, %s18
    %p20 = scmp.eq.s32.totalorder %s19, 0
    %s22 = sadd.s32 %s21, 1
    %s23 = scalar_select %p20, %s21, %s22
    %p26 = pneg %p20
    %p27 = scmp.eq.s32.totalorder %s11, 1
    %p28 = por %p26, %p27
    %p29 = scmp.ne.s32.totalorder %s21, %s24
    %p30 = scmp.eq.s32.totalorder %s11, 0
    %p31 = por %p29, %p30
    %p32 = scmp.ne.s32.totalorder %s21, %s24
    %p33 = scmp.eq.s32.totalorder %s16, 1
    %p34 = por %p32, %p33
    %p35 = scmp.ne.s32.totalorder %s24, %s25
    %p36 = scmp.eq.s32.totalorder %s16, 0
    %p37 = por %p35, %p36
    %p38 = scmp.ne.s32.totalorder %s24, %s25
    %p39 = scmp.eq.s32.totalorder %s17, 1
    %p40 = por %p38, %p39
    %p42 = scmp.ne.s32.totalorder %s25, %s41
    %p43 = scmp.eq.s32.totalorder %s17, 0
    %p44 = por %p42, %p43
    %s46 = sadd.s32 %s45, 1
    %p49 = scmp.eq.s32.totalorder %s11, 1
    %p50 = scmp.ne.s32.totalorder %s45, %s47
    %p51 = scmp.eq.s32.totalorder %s11, 0
    %p52 = por %p50, %p51
    %p53 = scmp.ne.s32.totalorder %s45, %s47
    %p54 = scmp.eq.s32.totalorder %s16, 1
    %p55 = por %p53, %p54
    %p56 = scmp.ne.s32.totalorder %s47, %s48
    %p57 = scmp.eq.s32.totalorder %s16, 0
    %p58 = por %p56, %p57
    %p59 = scmp.ne.s32.totalorder %s47, %s48
    %p60 = scmp.eq.s32.totalorder %s17, 1
    %p61 = por %p59, %p60
    %p63 = scmp.ne.s32.totalorder %s48, %s62
    %p64 = scmp.eq.s32.totalorder %s17, 0
    %p65 = por %p63, %p64
    %s67 = sadd.s32 %s66, 1
    %p70 = scmp.eq.s32.totalorder %s11, 1
    %p71 = scmp.ne.s32.totalorder %s66, %s68
    %p72 = scmp.eq.s32.totalorder %s11, 0
    %p73 = por %p71, %p72
    %p74 = scmp.ne.s32.totalorder %s66, %s68
    %p75 = scmp.eq.s32.totalorder %s16, 1
    %p76 = por %p74, %p75
    %p77 = scmp.ne.s32.totalorder %s68, %s69
    %p78 = scmp.eq.s32.totalorder %s16, 0
    %p79 = por %p77, %p78
    %p80 = scmp.ne.s32.totalorder %s68, %s69
    %p81 = scmp.eq.s32.totalorder %s17, 1
    %p82 = por %p80, %p81
    %p84 = scmp.ne.s32.totalorder %s69, %s83
    %p85 = scmp.eq.s32.totalorder %s17, 0
    %p86 = por %p84, %p85
    %s88 = sadd.s32 %s87, 1
    %p91 = scmp.eq.s32.totalorder %s11, 1
    %p92 = scmp.ne.s32.totalorder %s87, %s89
    %p93 = scmp.eq.s32.totalorder %s11, 0
    %p94 = por %p92, %p93
    %p95 = scmp.ne.s32.totalorder %s87, %s89
    %p96 = scmp.eq.s32.totalorder %s16, 1
    %p97 = por %p95, %p96
    %p98 = scmp.ne.s32.totalorder %s89, %s90
    %p99 = scmp.eq.s32.totalorder %s16, 0
    %p100 = por %p98, %p99
    %p101 = scmp.ne.s32.totalorder %s89, %s90
    %p102 = scmp.eq.s32.totalorder %s17, 1
    %p103 = por %p101, %p102
    %p105 = scmp.ne.s32.totalorder %s90, %s104
    %p106 = scmp.eq.s32.totalorder %s17, 0
    %p107 = por %p105, %p106
    %s109 = sadd.s32 %s108, 1
    %p112 = scmp.eq.s32.totalorder %s11, 1
    %p113 = scmp.ne.s32.totalorder %s108, %s110
    %p114 = scmp.eq.s32.totalorder %s11, 0
    %p115 = por %p113, %p114
    %p116 = scmp.ne.s32.totalorder %s108, %s110
    %p117 = scmp.eq.s32.totalorder %s16, 1
    %p118 = por %p116, %p117
    %p119 = scmp.ne.s32.totalorder %s110, %s111
    %p120 = scmp.eq.s32.totalorder %s16, 0
    %p121 = por %p119, %p120
    %p122 = scmp.ne.s32.totalorder %s110, %s111
    %p123 = scmp.eq.s32.totalorder %s17, 1
    %p124 = por %p122, %p123
    %p126 = scmp.ne.s32.totalorder %s111, %s125
    %p127 = scmp.eq.s32.totalorder %s17, 0
    %p128 = por %p126, %p127
    %s129 = ssub.s32 %s11, %s18
    %p130 = scmp.eq.s32.totalorder %s129, 0
    %s132 = sadd.s32 %s131, 1
    %s133 = scalar_select %p130, %s131, %s132
    %p136 = pneg %p130
    %p137 = scmp.eq.s32.totalorder %s11, 1
    %p138 = por %p136, %p137
    %p139 = scmp.ne.s32.totalorder %s131, %s134
    %p140 = scmp.eq.s32.totalorder %s11, 0
    %p141 = por %p139, %p140
    %p142 = scmp.ne.s32.totalorder %s131, %s134
    %p143 = scmp.eq.s32.totalorder %s16, 1
    %p144 = por %p142, %p143
    %p145 = scmp.ne.s32.totalorder %s134, %s135
    %p146 = scmp.eq.s32.totalorder %s16, 0
    %p147 = por %p145, %p146
    %p148 = scmp.ne.s32.totalorder %s134, %s135
    %p149 = scmp.eq.s32.totalorder %s17, 1
    %p150 = por %p148, %p149
    %p152 = scmp.ne.s32.totalorder %s135, %s151
    %p153 = scmp.eq.s32.totalorder %s17, 0
    %p154 = por %p152, %p153
    %p155 = scmp.le.s32.totalorder 1, %s11
    %p156 = scmp.lt.s32.totalorder %s11, 3
    %p157 = pnand %p155, %p156
    %p158 = pneg %p157
    // Predicated region
    $region9: #{encode_image.12} parent=5 // pred_check
      _
    $region10: #{encode_image.12} parent=5 // pred_check_branch
      %160 = sbr.rel (%p157) target = $region12
    $region11: #{encode_image.12} parent=5 // pred_region
      %s161 = ssub.s32 %s11, 1
      // Predicated region
      $region13: #{encode_image.12} parent=11 // pred_check
        %p162 = pneg %p58
      $region14: #{encode_image.12} parent=11 // pred_check_branch
        %164 = sbr.rel (%p162) target = $region16
      $region15: #{encode_image.12} parent=11 // pred_region
        _
      $region16: #{encode_image.12} parent=11 // pred_fallthru
        _
      // Predicated region
      $region17: #{encode_image.12} parent=11 // pred_check
        %p165 = pneg %p79
      $region18: #{encode_image.12} parent=11 // pred_check_branch
        %167 = sbr.rel (%p165) target = $region20
      $region19: #{encode_image.12} parent=11 // pred_region
        _
      $region20: #{encode_image.12} parent=11 // pred_fallthru
        _
      // Predicated region
      $region21: #{encode_image.12} parent=11 // pred_check
        %p168 = pneg %p100
      $region22: #{encode_image.12} parent=11 // pred_check_branch
        %170 = sbr.rel (%p168) target = $region24
      $region23: #{encode_image.12} parent=11 // pred_region
        _
      $region24: #{encode_image.12} parent=11 // pred_fallthru
        _
      // Predicated region
      $region25: #{encode_image.12} parent=11 // pred_check
        %p171 = pneg %p121
      $region26: #{encode_image.12} parent=11 // pred_check_branch
        %173 = sbr.rel (%p171) target = $region28
      $region27: #{encode_image.12} parent=11 // pred_region
        _
      $region28: #{encode_image.12} parent=11 // pred_fallthru
        _
    $region12: #{encode_image.12} parent=5 // pred_fallthru
      _
    %p174 = scmp.lt.s32.totalorder %s11, 2
    // Predicated region
    $region29: #{encode_image.12} parent=5 // pred_check
      %p175 = pneg %p174
    $region30: #{encode_image.12} parent=5 // pred_check_branch
      %177 = sbr.rel (%p175) target = $region32
    $region31: #{encode_image.12} parent=5 // pred_region
      // Predicated region
      $region33: #{encode_image.12} parent=31 // pred_check
        %p178 = pneg %p31
      $region34: #{encode_image.12} parent=31 // pred_check_branch
        %180 = sbr.rel (%p178) target = $region36
      $region35: #{encode_image.12} parent=31 // pred_region
        %p181 = scmp.lt.s32.totalorder %s11, 1
        %s182 = scalar_select %p181, %s11, 1
        %s183 = smul.addr %s182, 6
        %s184 = smul.addr %s183, 8
        %s185 = scalar_lea.vmem %s0, %s184
      $region36: #{encode_image.12} parent=31 // pred_fallthru
        _
    $region32: #{encode_image.12} parent=5 // pred_fallthru
      _
    %p186 = scmp.le.s32.totalorder 1, %s11
    %p187 = scmp.lt.s32.totalorder %s11, 3
    %p188 = pnand %p186, %p187
    %p189 = pneg %p188
    // Predicated region
    $region37: #{encode_image.12} parent=5 // pred_check
      _
    $region38: #{encode_image.12} parent=5 // pred_check_branch
      %191 = sbr.rel (%p188) target = $region40
    $region39: #{encode_image.12} parent=5 // pred_region
      %s192 = ssub.s32 %s11, 1
      %p193 = scmp.lt.s32.totalorder %s16, 1
      %s194 = scalar_select %p193, %s16, 1
      %s195 = smul.addr %s194, 6
      %s196 = smul.addr %s195, 8
      %s197 = scalar_lea.vmem %s0, %s196
      %p198 = pneg %p37
      %p199 = pneg %p34
      %p200 = pneg %p58
      %p201 = pneg %p55
      %p202 = pneg %p79
      %p203 = pneg %p76
      %p204 = pneg %p100
      %p205 = pneg %p97
      %p206 = pneg %p121
      %p207 = pneg %p118
      %p208 = pneg %p147
      %p209 = pneg %p144
      %p210 = scmp.lt.s32.totalorder %s16, 1
      %s211 = scalar_select %p210, %s16, 1
      %s212 = smul.addr %s211, 3
      %s213 = smul.addr %s212, 8
      %s214 = scalar_lea.vmem %s5, %s213
      %p215 = scmp.lt.s32.totalorder %s16, 1
      %s216 = scalar_select %p215, %s16, 1
      %s217 = smul.addr %s216, 6
      %s218 = smul.addr %s217, 8
      %s219 = scalar_lea.vmem %s0, %s218
      %p220 = scmp.lt.s32.totalorder %s16, 1
      %s221 = scalar_select %p220, %s16, 1
      %s222 = smul.addr %s221, 3
      %s223 = smul.addr %s222, 8
      %s224 = scalar_lea.vmem %s5, %s223
      %v226 = vld [vmem:[%s219] sm:$0xff]
      %v227 = vld [vmem:[%s219 + $0x8] sm:$0xff]
      %v228 = vld [vmem:[%s219 + $0x10] sm:$0xff]
      %v229 = vld [vmem:[%s219 + $0x18] sm:$0xff]
      %v230 = vld [vmem:[%s219 + $0x20] sm:$0x1]
      %v231 = vld [vmem:[%s219 + $0x28] sm:$0x1]
      %v232 = vpack.c.bf16 %v228, %v226
      %v233 = vpack.c.bf16 %v229, %v227
      %v234 = vpack.c.bf16 %v230, %v230
      %v235 = vpack.c.bf16 %v231, %v231
      %v236 = vld [vmem:[%s1] sm:$0xf]
      %v237 = vld [vmem:[%s1 + $0x4] sm:$0xf]
      %v238 = vld [vmem:[%s1 + $0x8] sm:$0xf]
      %v239 = vld [vmem:[%s1 + $0xc] sm:$0xf]
      %v240 = vld [vmem:[%s1 + $0x10] sm:$0xf]
      %v241 = vld [vmem:[%s1 + $0x14] sm:$0xf]
      %v242 = vld [vmem:[%s1 + $0x18] sm:$0xf]
      %v243 = vld [vmem:[%s1 + $0x1c] sm:$0xf]
      %v244 = vld [vmem:[%s1 + $0x20] sm:$0xf]
      %v245 = vld [vmem:[%s1 + $0x24] sm:$0xf]
      %v246 = vld [vmem:[%s1 + $0x28] sm:$0xf]
      %v247 = vld [vmem:[%s1 + $0x2c] sm:$0xf]
      %v248 = vld [vmem:[%s1 + $0x30] sm:$0xf]
      %v249 = vld [vmem:[%s1 + $0x34] sm:$0xf]
      %v250 = vld [vmem:[%s1 + $0x38] sm:$0xf]
      %v251 = vld [vmem:[%s1 + $0x3c] sm:$0xf]
      %v252 = vld [vmem:[%s1 + $0x40] sm:$0xf]
      %v253 = vld [vmem:[%s1 + $0x44] sm:$0xf]
      %v254 = vld [vmem:[%s1 + $0x48] sm:$0xf]
      %v255 = vld [vmem:[%s1 + $0x4c] sm:$0xf]
      %v256 = vld [vmem:[%s1 + $0x50] sm:$0xf]
      %v257 = vld [vmem:[%s1 + $0x54] sm:$0xf]
      %v258 = vld [vmem:[%s1 + $0x58] sm:$0xf]
      %v259 = vld [vmem:[%s1 + $0x5c] sm:$0xf]
      %v260 = vld [vmem:[%s2] sm:$0xff]
      %v261 = vld [vmem:[%s2 + $0x8] sm:$0xff]
      %v262 = vld [vmem:[%s2 + $0x10] sm:$0x1]
      %v287 = vunpack.c.l.b16 %v236
      %v288 = vunpack.c.l.b16 %v237
      %v289 = vunpack.c.l.b16 %v238
      %v290 = vunpack.c.l.b16 %v239
      %v291 = vunpack.c.l.b16 %v240
      %v292 = vunpack.c.l.b16 %v241
      %v293 = vunpack.c.l.b16 %v242
      %v294 = vunpack.c.l.b16 %v243
      %v295 = vunpack.c.l.b16 %v244
      %v296 = vunpack.c.l.b16 %v245
      %v297 = vunpack.c.l.b16 %v246
      %v298 = vunpack.c.l.b16 %v247
      %v299 = vunpack.c.l.b16 %v248
      %v300 = vunpack.c.l.b16 %v249
      %v301 = vunpack.c.l.b16 %v250
      %v302 = vunpack.c.l.b16 %v251
      %v303 = vunpack.c.l.b16 %v252
      %v304 = vunpack.c.l.b16 %v253
      %v305 = vunpack.c.l.b16 %v254
      %v306 = vunpack.c.l.b16 %v255
      %v307 = vunpack.c.l.b16 %v256
      %v308 = vunpack.c.l.b16 %v257
      %v309 = vunpack.c.l.b16 %v258
      %v310 = vunpack.c.l.b16 %v259
      %v311 = vpack.c.b16 %v288, %v287
      %v312 = vpack.c.b16 %v290, %v289
      %v313 = vpack.c.b16 %v292, %v291
      %v314 = vpack.c.b16 %v294, %v293
      %v315 = vpack.c.b16 %v296, %v295
      %v316 = vpack.c.b16 %v298, %v297
      %v317 = vpack.c.b16 %v300, %v299
      %v318 = vpack.c.b16 %v302, %v301
      %v319 = vpack.c.b16 %v304, %v303
      %v320 = vpack.c.b16 %v306, %v305
      %v321 = vpack.c.b16 %v308, %v307
      %v322 = vpack.c.b16 %v310, %v309
      %vm335 = vcmask 523264
      %v337 = vsel %vm335, %v233, 0
      %v340 = vsel %vm335, %v235, 0
      %342 = vmatprep.subr.bf16.mxu0 0
      %343 = vmatpush1.bf16.msra.mxu0 %v311
      %344 = vmatprep.subr.bf16.mxu0 0
      %345 = vmatpush1.bf16.msra.mxu0 %v312
      %346 = vmatprep.subr.bf16.mxu0 0
      %347 = vmatpush1.bf16.msra.mxu0 %v313
      %348 = vmatprep.subr.bf16.mxu0 0
      %349 = vmatpush1.bf16.msra.mxu0 %v314
      %350 = vmatprep.subr.bf16.mxu0 0
      %351 = vmatpush1.bf16.msra.mxu0 %v315
      %352 = vmatprep.subr.bf16.mxu0 0
      %353 = vmatpush1.bf16.msra.mxu0 %v316
      %354 = vmatprep.subr.bf16.mxu0 0
      %355 = vmatpush1.bf16.msra.mxu0 %v317
      %356 = vmatprep.subr.bf16.mxu0 0
      %357 = vmatpush1.bf16.msra.mxu0 %v318
      %358 = vmatprep.subr.bf16.mxu0 0
      %359 = vmatpush1.bf16.msra.mxu0 %v319
      %360 = vmatprep.subr.bf16.mxu0 0
      %361 = vmatpush1.bf16.msra.mxu0 %v320
      %362 = vmatprep.subr.bf16.mxu0 0
      %363 = vmatpush1.bf16.msra.mxu0 %v321
      %364 = vmatprep.subr.bf16.mxu0 0
      %365 = vmatpush1.bf16.msra.mxu0 %v322
      %366 = vmatprep.subr.bf16.mxu0 0
      %367 = vmatpush1.bf16.msra.mxu0 0
      %368 = vmatprep.subr.bf16.mxu0 0
      %369 = vmatpush1.bf16.msra.mxu0 0
      %370 = vmatprep.subr.bf16.mxu0 0
      %371 = vmatpush1.bf16.msra.mxu0 0
      %372 = vmatprep.subr.bf16.mxu0 0
      %373 = vmatpush1.bf16.msra.mxu0 0
      %374 = vmatprep.mubr.bf16.mxu0 %v337
      %375 = vmatmul.mubr.bf16.gmra.mrb[0].mxu0 %v232
      %v376 = vpop.f32.mrb[0].mxu0
      %v377 = vadd.f32 %v260, %v376
      %v378 = vpop.f32.mrb[0].mxu0
      %v379 = vpop.f32.mrb[0].mxu0
      %v380 = vadd.f32 %v261, %v379
      %v381 = vpop.f32.mrb[0].mxu0
      %382 = vmatprep.mubr.bf16.mxu0 %v340
      %383 = vmatmul.mubr.bf16.gmra.mrb[0].mxu0 %v234
      %v384 = vpop.f32.mrb[0].mxu0
      %v385 = vadd.f32 %v262, %v384
      %v386 = vpop.f32.mrb[0].mxu0
      %v387 = vpop.f32.mrb[0].mxu0
      %v388 = vpop.f32.mrb[0].mxu0
      %389 = vdwg.mxu0
      %390 = vadd.xlane.f32.xlu0 %v377
      %v391 = vpop.xlane.xlu0 %390
      %392 = vadd.xlane.f32.xlu0 %v380
      %v393 = vpop.xlane.xlu0 %392
      %vm394 = vcmask 1040384
      %v395 = vsel %vm394, %v385, 0.0
      %396 = vadd.xlane.f32.xlu0 %v395
      %v397 = vpop.xlane.xlu0 %396
      %v398 = vrcp.pop 128.0
      %v399 = vmul.f32 %v391, %v398
      %v400 = vmul.f32 %v393, %v398
      %v401 = vmul.f32 %v397, %v398
      %v402 = vsub.f32 %v377, %v399
      %v403 = vsub.f32 %v380, %v400
      %v404 = vsub.f32 %v385, %v401
      %v405 = vmul.f32 %v402, %v402
      %v406 = vmul.f32 %v403, %v403
      %v407 = vmul.f32 %v404, %v404
      %408 = vadd.xlane.f32.xlu0 %v405
      %v409 = vpop.xlane.xlu0 %408
      %410 = vadd.xlane.f32.xlu0 %v406
      %v411 = vpop.xlane.xlu0 %410
      %v412 = vsel %vm394, %v407, 0.0
      %413 = vadd.xlane.f32.xlu0 %v412
      %v414 = vpop.xlane.xlu0 %413
      %v415 = vmul.f32 %v409, %v398
      %v416 = vmul.f32 %v411, %v398
      %v417 = vmul.f32 %v414, %v398
      %v418 = vadd.f32 %v415, 1e-05
      %v419 = vadd.f32 %v416, 1e-05
      %v420 = vadd.f32 %v417, 1e-05
      %v421 = vrsqrt.pop %v418
      %v422 = vrsqrt.pop %v419
      %v423 = vrsqrt.pop %v420
      %v424 = vmul.f32 %v402, %v421
      %v425 = vmul.f32 %v403, %v422
      %v426 = vmul.f32 %v404, %v423
      %v427 = vld [vmem:[%s3] sm:$0x1]
      %v429 = vlaneseq
      %v430 = vshrl.u32 %v429, 7
      %v431 = vsub.s32 0, %v430
      %v432 = vrot.slane %v427, %v431
      %v434 = vmul.f32 %v424, %v432
      %v435 = vmul.f32 %v425, %v432
      %v436 = vmul.f32 %v426, %v432
      %v437 = vld [vmem:[%s4] sm:$0x1]
      %v439 = vlaneseq
      %v440 = vshrl.u32 %v439, 7
      %v441 = vsub.s32 0, %v440
      %v442 = vrot.slane %v437, %v441
      %v444 = vadd.f32 %v434, %v442
      %v445 = vadd.f32 %v435, %v442
      %v446 = vadd.f32 %v436, %v442
      %447 = vst [vmem:[%s224] sm:$0xff] %v444
      %448 = vst [vmem:[%s224 + $0x8] sm:$0xff] %v445
      %449 = vst [vmem:[%s224 + $0x10] sm:$0x1] %v446
      %p450 = scmp.lt.s32.totalorder %s16, 1
      %s451 = scalar_select %p450, %s16, 1
      %s452 = smul.addr %s451, 3
      %s453 = smul.addr %s452, 8
      %s454 = scalar_lea.vmem %s5, %s453
      // Predicated region
      $region41: #{encode_image.12} parent=39 // pred_check
        %p455 = pneg %p144
      $region42: #{encode_image.12} parent=39 // pred_check_branch
        %457 = sbr.rel (%p455) target = $region44
      $region43: #{encode_image.12} parent=39 // pred_region
        _
      $region44: #{encode_image.12} parent=39 // pred_fallthru
        _
    $region40: #{encode_image.12} parent=5 // pred_fallthru
      _
    %p458 = scmp.le.s32.totalorder 2, %s11
    // Predicated region
    $region45: #{encode_image.12} parent=5 // pred_check
      %p459 = pneg %p458
    $region46: #{encode_image.12} parent=5 // pred_check_branch
      %461 = sbr.rel (%p459) target = $region48
    $region47: #{encode_image.12} parent=5 // pred_region
      %s462 = ssub.s32 %s11, 2
      // Predicated region
      $region49: #{encode_image.12} parent=47 // pred_check
        %p463 = pneg %p150
      $region50: #{encode_image.12} parent=47 // pred_check_branch
        %465 = sbr.rel (%p463) target = $region52
      $region51: #{encode_image.12} parent=47 // pred_region
        %p466 = scmp.lt.s32.totalorder %s17, 1
        %s467 = scalar_select %p466, %s17, 1
        %s468 = smul.addr %s467, 3
        %s469 = smul.addr %s468, 8
        %s470 = scalar_lea.vmem %s5, %s469
      $region52: #{encode_image.12} parent=47 // pred_fallthru
        _
    $region48: #{encode_image.12} parent=5 // pred_fallthru
      _
  $region6: #{encode_image.12} parent=0 // loop_footer
    %s15 = sadd.s32 1, %s11
  $region7: #{encode_image.12} parent=0 // loop_footer_branch
    %10 = sbr.rel target = $region3
  $region8: #{encode_image.12} parent=0 // loop_exit
    _

// kernel: encode_image.14
$region0: #{encode_image.14}
  #allocation0 [shape = 'u32[]', space=smem, size = 0x4, offset = 0x4, fixed_abs, tag = 'smem constant byte address 0x4 - core index']
  #allocation1 [shape = 'u32[144,128]{1,0:T(1,128)}', space=vmem, size = 0x12000, scoped, tag = 'internal scratch']
  %s0 = inlined_call_operand.vmem [shape: f32[2,17,384], index: 0, kind: input, shape index: {}]
  %s1 = inlined_call_operand.vmem [shape: f32[2,17,128], index: 1, kind: output, shape index: {}]
  %s2 = sld [smem:[#allocation0]]
  $region37: #{encode_image.14} parent=0
    _
  %s4 = ssub.s32 1, %s2
  %s5 = scalar_select 0, %s4, %s2
  loop: start=0, step=1, limit=4
  $region2: #{encode_image.14} parent=0 // loop_pre_header
    _
  $region3: #{encode_image.14} parent=0 // loop_header
    %s7 = sphi 0, %s11
    %p8 = scmp.ge.s32.totalorder %s7, 4
    %s17 = sphi 0, %s19
    %s20 = sphi 0, %s17
    %s21 = sphi 0, %s20
    %s37 = sphi 0, %s21
    %s43 = sphi 0, %s45
    %s46 = sphi 0, %s43
    %s47 = sphi 0, %s46
    %s63 = sphi 0, %s47
  $region4: #{encode_image.14} parent=0 // loop_header_branch
    %10 = sbr.rel (%p8) target = $region8
  $region5: #{encode_image.14} parent=0 // loop_body
    %s12 = ssub.s32 %s7, 1
    %s13 = ssub.s32 %s7, 2
    %s14 = sadd.s32 %s7, 1
    %s15 = ssub.s32 %s7, %s14
    %p16 = scmp.eq.s32.totalorder %s15, 0
    %s18 = sadd.s32 %s17, 1
    %s19 = scalar_select %p16, %s17, %s18
    %p22 = pneg %p16
    %p23 = scmp.eq.s32.totalorder %s7, 1
    %p24 = por %p22, %p23
    %p25 = scmp.ne.s32.totalorder %s17, %s20
    %p26 = scmp.eq.s32.totalorder %s7, 0
    %p27 = por %p25, %p26
    %p28 = scmp.ne.s32.totalorder %s17, %s20
    %p29 = scmp.eq.s32.totalorder %s12, 1
    %p30 = por %p28, %p29
    %p31 = scmp.ne.s32.totalorder %s20, %s21
    %p32 = scmp.eq.s32.totalorder %s12, 0
    %p33 = por %p31, %p32
    %p34 = scmp.ne.s32.totalorder %s20, %s21
    %p35 = scmp.eq.s32.totalorder %s13, 1
    %p36 = por %p34, %p35
    %p38 = scmp.ne.s32.totalorder %s21, %s37
    %p39 = scmp.eq.s32.totalorder %s13, 0
    %p40 = por %p38, %p39
    %s41 = ssub.s32 %s7, %s14
    %p42 = scmp.eq.s32.totalorder %s41, 0
    %s44 = sadd.s32 %s43, 1
    %s45 = scalar_select %p42, %s43, %s44
    %p48 = pneg %p42
    %p49 = scmp.eq.s32.totalorder %s7, 1
    %p50 = por %p48, %p49
    %p51 = scmp.ne.s32.totalorder %s43, %s46
    %p52 = scmp.eq.s32.totalorder %s7, 0
    %p53 = por %p51, %p52
    %p54 = scmp.ne.s32.totalorder %s43, %s46
    %p55 = scmp.eq.s32.totalorder %s12, 1
    %p56 = por %p54, %p55
    %p57 = scmp.ne.s32.totalorder %s46, %s47
    %p58 = scmp.eq.s32.totalorder %s12, 0
    %p59 = por %p57, %p58
    %p60 = scmp.ne.s32.totalorder %s46, %s47
    %p61 = scmp.eq.s32.totalorder %s13, 1
    %p62 = por %p60, %p61
    %p64 = scmp.ne.s32.totalorder %s47, %s63
    %p65 = scmp.eq.s32.totalorder %s13, 0
    %p66 = por %p64, %p65
    %p67 = scmp.le.s32.totalorder 1, %s7
    %p68 = scmp.lt.s32.totalorder %s7, 3
    %p69 = pnand %p67, %p68
    %p70 = pneg %p69
    // Predicated region
    $region9: #{encode_image.14} parent=5 // pred_check
      _
    $region10: #{encode_image.14} parent=5 // pred_check_branch
      %72 = sbr.rel (%p69) target = $region12
    $region11: #{encode_image.14} parent=5 // pred_region
      %s73 = ssub.s32 %s7, 1
    $region12: #{encode_image.14} parent=5 // pred_fallthru
      _
    %p74 = scmp.lt.s32.totalorder %s7, 2
    // Predicated region
    $region13: #{encode_image.14} parent=5 // pred_check
      %p75 = pneg %p74
    $region14: #{encode_image.14} parent=5 // pred_check_branch
      %77 = sbr.rel (%p75) target = $region16
    $region15: #{encode_image.14} parent=5 // pred_region
      // Predicated region
      $region17: #{encode_image.14} parent=15 // pred_check
        %p78 = pneg %p27
      $region18: #{encode_image.14} parent=15 // pred_check_branch
        %80 = sbr.rel (%p78) target = $region20
      $region19: #{encode_image.14} parent=15 // pred_region
        %p81 = scmp.lt.s32.totalorder %s7, 1
        %s82 = scalar_select %p81, %s7, 1
        %s83 = smul.addr %s82, 9
        %s84 = smul.addr %s83, 8
        %s85 = scalar_lea.vmem %s0, %s84
      $region20: #{encode_image.14} parent=15 // pred_fallthru
        _
    $region16: #{encode_image.14} parent=5 // pred_fallthru
      _
    %p86 = scmp.le.s32.totalorder 1, %s7
    %p87 = scmp.lt.s32.totalorder %s7, 3
    %p88 = pnand %p86, %p87
    %p89 = pneg %p88
    // Predicated region
    $region21: #{encode_image.14} parent=5 // pred_check
      _
    $region22: #{encode_image.14} parent=5 // pred_check_branch
      %91 = sbr.rel (%p88) target = $region24
    $region23: #{encode_image.14} parent=5 // pred_region
      %s92 = ssub.s32 %s7, 1
      %p93 = scmp.lt.s32.totalorder %s12, 1
      %s94 = scalar_select %p93, %s12, 1
      %s95 = smul.addr %s94, 9
      %s96 = smul.addr %s95, 8
      %s97 = scalar_lea.vmem %s0, %s96
      %p98 = pneg %p33
      %p99 = pneg %p30
      %p100 = pneg %p59
      %p101 = pneg %p56
      %p102 = scmp.lt.s32.totalorder %s12, 1
      %s103 = scalar_select %p102, %s12, 1
      %s104 = smul.addr %s103, 3
      %s105 = smul.addr %s104, 8
      %s106 = scalar_lea.vmem %s1, %s105
      %p107 = scmp.lt.s32.totalorder %s12, 1
      %s108 = scalar_select %p107, %s12, 1
      %s109 = smul.addr %s108, 9
      %s110 = smul.addr %s109, 8
      %s111 = scalar_lea.vmem %s0, %s110
      %p112 = scmp.lt.s32.totalorder %s12, 1
      %s113 = scalar_select %p112, %s12, 1
      %s114 = smul.addr %s113, 3
      %s115 = smul.addr %s114, 8
      %s116 = scalar_lea.vmem %s1, %s115
      %v118 = vld [vmem:[%s111] sm:$0xff]
      %v119 = vld [vmem:[%s111 + $0x8] sm:$0xff]
      %v120 = vld [vmem:[%s111 + $0x10] sm:$0xff]
      %v121 = vld [vmem:[%s111 + $0x18] sm:$0xff]
      %v122 = vld [vmem:[%s111 + $0x20] sm:$0xff]
      %v123 = vld [vmem:[%s111 + $0x28] sm:$0xff]
      %v124 = vld [vmem:[%s111 + $0x30] sm:$0x1]
      %v125 = vld [vmem:[%s111 + $0x38] sm:$0x1]
      %v126 = vld [vmem:[%s111 + $0x40] sm:$0x1]
      %v127 = vpack.c.bf16 %v121, %v118
      %v128 = vpack.c.bf16 %v124, %v124
      %v129 = vpack.c.bf16 %v122, %v119
      %v130 = vpack.c.bf16 %v125, %v125
      %vm131 = vcmask 523264
      %v133 = vsel %vm131, %v127, 0
      %v136 = vsel %vm131, %v128, 0
      %v139 = vsel %vm131, %v129, 0
      %v142 = vsel %vm131, %v130, 0
      %144 = vmatprep.subr.bf16.mxu0 0
      %145 = vmatpush1.bf16.xpose.msra.mxu0 %v139
      %146 = vmatprep.subr.bf16.mxu0 0
      %147 = vmatpush1.bf16.xpose.msra.mxu0 %v142
      %148 = vmatprep.subr.bf16.mxu0 0
      %149 = vmatpush1.bf16.xpose.msra.mxu0 0
      %150 = vmatprep.subr.bf16.mxu0 0
      %151 = vmatpush1.bf16.xpose.msra.mxu0 0
      %152 = vmatprep.subr.bf16.mxu0 0
      %153 = vmatpush1.bf16.xpose.msra.mxu0 0
      %154 = vmatprep.subr.bf16.mxu0 0
      %155 = vmatpush1.bf16.xpose.msra.mxu0 0
      %156 = vmatprep.subr.bf16.mxu0 0
      %157 = vmatpush1.bf16.xpose.msra.mxu0 0
      %158 = vmatprep.subr.bf16.mxu0 0
      %159 = vmatpush1.bf16.xpose.msra.mxu0 0
      %160 = vmatprep.subr.bf16.mxu0 0
      %161 = vmatpush1.bf16.xpose.msra.mxu0 0
      %162 = vmatprep.subr.bf16.mxu0 0
      %163 = vmatpush1.bf16.xpose.msra.mxu0 0
      %164 = vmatprep.subr.bf16.mxu0 0
      %165 = vmatpush1.bf16.xpose.msra.mxu0 0
      %166 = vmatprep.subr.bf16.mxu0 0
      %167 = vmatpush1.bf16.xpose.msra.mxu0 0
      %168 = vmatprep.subr.bf16.mxu0 0
      %169 = vmatpush1.bf16.xpose.msra.mxu0 0
      %170 = vmatprep.subr.bf16.mxu0 0
      %171 = vmatpush1.bf16.xpose.msra.mxu0 0
      %172 = vmatprep.subr.bf16.mxu0 0
      %173 = vmatpush1.bf16.xpose.msra.mxu0 0
      %174 = vmatprep.subr.bf16.mxu0 0
      %175 = vmatpush1.bf16.xpose.msra.mxu0 0
      %176 = vmatprep.mubr.bf16.mxu0 0
      %177 = vmatmul.mubr.bf16.gmra.mrb[0].mxu0 %v133
      %v178 = vpop.f32.mrb[0].mxu0
      %v179 = vadd.f32 0.0, %v178
      %v180 = vpop.f32.mrb[0].mxu0
      %v181 = vpop.f32.mrb[0].mxu0
      %v182 = vadd.f32 0.0, %v181
      %v183 = vpop.f32.mrb[0].mxu0
      %184 = vmatprep.mubr.bf16.mxu0 0
      %185 = vmatmul.mubr.bf16.gmra.mrb[0].mxu0 %v136
      %v186 = vpop.f32.mrb[0].mxu0
      %v187 = vadd.f32 0.0, %v186
      %v188 = vpop.f32.mrb[0].mxu0
      %v189 = vpop.f32.mrb[0].mxu0
      %v190 = vpop.f32.mrb[0].mxu0
      %191 = vdwg.mxu0
      %v192 = vmul.f32 %v179, 0.125
      %v193 = vmul.f32 %v182, 0.125
      %v194 = vmul.f32 %v187, 0.125
      %vm195 = vcmask 138240
      %v196 = vsel %vm195, %v192, -inf
      %197 = vmax.xlane.f32.xlu0 %v196
      %v198 = vpop.xlane.xlu0 %197
      %v199 = vsel %vm195, %v193, -inf
      %200 = vmax.xlane.f32.xlu0 %v199
      %v201 = vpop.xlane.xlu0 %200
      %vm202 = vcmask 131072
      %v203 = vsel %vm202, %v194, -inf
      %204 = vmax.xlane.f32.xlu0 %v203
      %v205 = vpop.xlane.xlu0 %204
      %v206 = vsub.f32 %v192, %v198
      %v207 = vsub.f32 %v193, %v201
      %v208 = vsub.f32 %v194, %v205
      %v209 = vmul.f32 %v206, 1.442695
      %v210 = vpow.pop %v209
      %v211 = vmul.f32 %v207, 1.442695
      %v212 = vpow.pop %v211
      %v213 = vmul.f32 %v208, 1.442695
      %v214 = vpow.pop %v213
      %v215 = vsel %vm195, %v210, 0.0
      %216 = vadd.xlane.f32.xlu0 %v215
      %v217 = vpop.xlane.xlu0 %216
      %v218 = vsel %vm195, %v212, 0.0
      %219 = vadd.xlane.f32.xlu0 %v218
      %v220 = vpop.xlane.xlu0 %219
      %v221 = vsel %vm202, %v214, 0.0
      %222 = vadd.xlane.f32.xlu0 %v221
      %v223 = vpop.xlane.xlu0 %222
      %v224 = vrcp.pop %v217
      %v225 = vrcp.pop %v220
      %v226 = vrcp.pop %v223
      %v227 = vmul.f32 %v210, %v224
      %v228 = vmul.f32 %v212, %v225
      %v229 = vmul.f32 %v214, %v226
      %v230 = vpack.c.bf16 %v228, %v227
      %v231 = vpack.c.bf16 %v229, %v229
      %v232 = vpack.c.bf16 %v123, %v120
      %v233 = vpack.c.bf16 %v126, %v126
      %v235 = vsel %vm195, %v230, 0
      %v238 = vsel %vm195, %v231, 0
      %vm240 = vcmask 1040384
      %v241 = vsel 0, 4294967295, 65535
      %v242 = vsel %vm240, %v241, 0
      %v244 = vand.u32 %v233, %v242
      %246 = vmatprep.subr.bf16.mxu0 0
      %247 = vmatpush1.bf16.msra.mxu0 %v232
      %248 = vmatprep.subr.bf16.mxu0 0
      %249 = vmatpush1.bf16.msra.mxu0 %v244
      %250 = vmatprep.subr.bf16.mxu0 0
      %251 = vmatpush1.bf16.msra.mxu0 0
      %252 = vmatprep.subr.bf16.mxu0 0
      %253 = vmatpush1.bf16.msra.mxu0 0
      %254 = vmatprep.subr.bf16.mxu0 0
      %255 = vmatpush1.bf16.msra.mxu0 0
      %256 = vmatprep.subr.bf16.mxu0 0
      %257 = vmatpush1.bf16.msra.mxu0 0
      %258 = vmatprep.subr.bf16.mxu0 0
      %259 = vmatpush1.bf16.msra.mxu0 0
      %260 = vmatprep.subr.bf16.mxu0 0
      %261 = vmatpush1.bf16.msra.mxu0 0
      %262 = vmatprep.subr.bf16.mxu0 0
      %263 = vmatpush1.bf16.msra.mxu0 0
      %264 = vmatprep.subr.bf16.mxu0 0
      %265 = vmatpush1.bf16.msra.mxu0 0
      %266 = vmatprep.subr.bf16.mxu0 0
      %267 = vmatpush1.bf16.msra.mxu0 0
      %268 = vmatprep.subr.bf16.mxu0 0
      %269 = vmatpush1.bf16.msra.mxu0 0
      %270 = vmatprep.subr.bf16.mxu0 0
      %271 = vmatpush1.bf16.msra.mxu0 0
      %272 = vmatprep.subr.bf16.mxu0 0
      %273 = vmatpush1.bf16.msra.mxu0 0
      %274 = vmatprep.subr.bf16.mxu0 0
      %275 = vmatpush1.bf16.msra.mxu0 0
      %276 = vmatprep.subr.bf16.mxu0 0
      %277 = vmatpush1.bf16.msra.mxu0 0
      %278 = vmatprep.mubr.bf16.mxu0 0
      %279 = vmatmul.mubr.bf16.gmra.mrb[0].mxu0 %v235
      %v280 = vpop.f32.mrb[0].mxu0
      %v281 = vadd.f32 0.0, %v280
      %v282 = vpop.f32.mrb[0].mxu0
      %v283 = vpop.f32.mrb[0].mxu0
      %v284 = vadd.f32 0.0, %v283
      %v285 = vpop.f32.mrb[0].mxu0
      %286 = vmatprep.mubr.bf16.mxu0 0
      %287 = vmatmul.mubr.bf16.gmra.mrb[0].mxu0 %v238
      %v288 = vpop.f32.mrb[0].mxu0
      %v289 = vadd.f32 0.0, %v288
      %v290 = vpop.f32.mrb[0].mxu0
      %v291 = vpop.f32.mrb[0].mxu0
      %v292 = vpop.f32.mrb[0].mxu0
      %293 = vdwg.mxu0
      %294 = vst.msk [vmem:[%s116] sm:$0xff] %vm131, %v281
      %295 = vst.msk [vmem:[%s116 + $0x8] sm:$0xff] %vm131, %v284
      %vm296 = vcmask 516096
      %297 = vst.msk [vmem:[%s116 + $0x10] sm:$0x1] %vm296, %v289
      %300 = vrot.lane.b32.xlu0 %v127, 64
      %v301 = vpop.permute.xlu0 %300
      %302 = vrot.lane.b32.xlu0 %v128, 64
      %v303 = vpop.permute.xlu0 %302
      %306 = vrot.lane.b32.xlu0 %v129, 64
      %v307 = vpop.permute.xlu0 %306
      %308 = vrot.lane.b32.xlu0 %v130, 64
      %v309 = vpop.permute.xlu0 %308
      %v311 = vsel %vm131, %v301, 0
      %v314 = vsel %vm131, %v303, 0
      %v317 = vsel %vm131, %v307, 0
      %v320 = vsel %vm131, %v309, 0
      %322 = vmatprep.subr.bf16.mxu0 0
      %323 = vmatpush1.bf16.xpose.msra.mxu0 %v317
      %324 = vmatprep.subr.bf16.mxu0 0
      %325 = vmatpush1.bf16.xpose.msra.mxu0 %v320
      %326 = vmatprep.subr.bf16.mxu0 0
      %327 = vmatpush1.bf16.xpose.msra.mxu0 0
      %328 = vmatprep.subr.bf16.mxu0 0
      %329 = vmatpush1.bf16.xpose.msra.mxu0 0
      %330 = vmatprep.subr.bf16.mxu0 0
      %331 = vmatpush1.bf16.xpose.msra.mxu0 0
      %332 = vmatprep.subr.bf16.mxu0 0
      %333 = vmatpush1.bf16.xpose.msra.mxu0 0
      %334 = vmatprep.subr.bf16.mxu0 0
      %335 = vmatpush1.bf16.xpose.msra.mxu0 0
      %336 = vmatprep.subr.bf16.mxu0 0
      %337 = vmatpush1.bf16.xpose.msra.mxu0 0
      %338 = vmatprep.subr.bf16.mxu0 0
      %339 = vmatpush1.bf16.xpose.msra.mxu0 0
      %340 = vmatprep.subr.bf16.mxu0 0
      %341 = vmatpush1.bf16.xpose.msra.mxu0 0
      %342 = vmatprep.subr.bf16.mxu0 0
      %343 = vmatpush1.bf16.xpose.msra.mxu0 0
      %344 = vmatprep.subr.bf16.mxu0 0
      %345 = vmatpush1.bf16.xpose.msra.mxu0 0
      %346 = vmatprep.subr.bf16.mxu0 0
      %347 = vmatpush1.bf16.xpose.msra.mxu0 0
      %348 = vmatprep.subr.bf16.mxu0 0
      %349 = vmatpush1.bf16.xpose.msra.mxu0 0
      %350 = vmatprep.subr.bf16.mxu0 0
      %351 = vmatpush1.bf16.xpose.msra.mxu0 0
      %352 = vmatprep.subr.bf16.mxu0 0
      %353 = vmatpush1.bf16.xpose.msra.mxu0 0
      %354 = vmatprep.mubr.bf16.mxu0 0
      %355 = vmatmul.mubr.bf16.gmra.mrb[0].mxu0 %v311
      %v356 = vpop.f32.mrb[0].mxu0
      %v357 = vadd.f32 0.0, %v356
      %v358 = vpop.f32.mrb[0].mxu0
      %v359 = vpop.f32.mrb[0].mxu0
      %v360 = vadd.f32 0.0, %v359
      %v361 = vpop.f32.mrb[0].mxu0
      %362 = vmatprep.mubr.bf16.mxu0 0
      %363 = vmatmul.mubr.bf16.gmra.mrb[0].mxu0 %v314
      %v364 = vpop.f32.mrb[0].mxu0
      %v365 = vadd.f32 0.0, %v364
      %v366 = vpop.f32.mrb[0].mxu0
      %v367 = vpop.f32.mrb[0].mxu0
      %v368 = vpop.f32.mrb[0].mxu0
      %369 = vdwg.mxu0
      %v370 = vmul.f32 %v357, 0.125
      %v371 = vmul.f32 %v360, 0.125
      %v372 = vmul.f32 %v365, 0.125
      %v373 = vsel %vm195, %v370, -inf
      %374 = vmax.xlane.f32.xlu0 %v373
      %v375 = vpop.xlane.xlu0 %374
      %v376 = vsel %vm195, %v371, -inf
      %377 = vmax.xlane.f32.xlu0 %v376
      %v378 = vpop.xlane.xlu0 %377
      %v379 = vsel %vm202, %v372, -inf
      %380 = vmax.xlane.f32.xlu0 %v379
      %v381 = vpop.xlane.xlu0 %380
      %v382 = vsub.f32 %v370, %v375
      %v383 = vsub.f32 %v371, %v378
      %v384 = vsub.f32 %v372, %v381
      %v385 = vmul.f32 %v382, 1.442695
      %v386 = vpow.pop %v385
      %v387 = vmul.f32 %v383, 1.442695
      %v388 = vpow.pop %v387
      %v389 = vmul.f32 %v384, 1.442695
      %v390 = vpow.pop %v389
      %v391 = vsel %vm195, %v386, 0.0
      %392 = vadd.xlane.f32.xlu0 %v391
      %v393 = vpop.xlane.xlu0 %392
      %v394 = vsel %vm195, %v388, 0.0
      %395 = vadd.xlane.f32.xlu0 %v394
      %v396 = vpop.xlane.xlu0 %395
      %v397 = vsel %vm202, %v390, 0.0
      %398 = vadd.xlane.f32.xlu0 %v397
      %v399 = vpop.xlane.xlu0 %398
      %v400 = vrcp.pop %v393
      %v401 = vrcp.pop %v396
      %v402 = vrcp.pop %v399
      %v403 = vmul.f32 %v386, %v400
      %v404 = vmul.f32 %v388, %v401
      %v405 = vmul.f32 %v390, %v402
      %v406 = vpack.c.bf16 %v404, %v403
      %v407 = vpack.c.bf16 %v405, %v405
      %410 = vrot.lane.b32.xlu0 %v232, 64
      %v411 = vpop.permute.xlu0 %410
      %412 = vrot.lane.b32.xlu0 %v233, 64
      %v413 = vpop.permute.xlu0 %412
      %v416 = vsel %vm195, %v406, 0
      %v419 = vsel %vm195, %v407, 0
      %v422 = vand.u32 %v413, %v242
      %424 = vmatprep.subr.bf16.mxu0 0
      %425 = vmatpush1.bf16.msra.mxu0 %v411
      %426 = vmatprep.subr.bf16.mxu0 0
      %427 = vmatpush1.bf16.msra.mxu0 %v422
      %428 = vmatprep.subr.bf16.mxu0 0
      %429 = vmatpush1.bf16.msra.mxu0 0
      %430 = vmatprep.subr.bf16.mxu0 0
      %431 = vmatpush1.bf16.msra.mxu0 0
      %432 = vmatprep.subr.bf16.mxu0 0
      %433 = vmatpush1.bf16.msra.mxu0 0
      %434 = vmatprep.subr.bf16.mxu0 0
      %435 = vmatpush1.bf16.msra.mxu0 0
      %436 = vmatprep.subr.bf16.mxu0 0
      %437 = vmatpush1.bf16.msra.mxu0 0
      %438 = vmatprep.subr.bf16.mxu0 0
      %439 = vmatpush1.bf16.msra.mxu0 0
      %440 = vmatprep.subr.bf16.mxu0 0
      %441 = vmatpush1.bf16.msra.mxu0 0
      %442 = vmatprep.subr.bf16.mxu0 0
      %443 = vmatpush1.bf16.msra.mxu0 0
      %444 = vmatprep.subr.bf16.mxu0 0
      %445 = vmatpush1.bf16.msra.mxu0 0
      %446 = vmatprep.subr.bf16.mxu0 0
      %447 = vmatpush1.bf16.msra.mxu0 0
      %448 = vmatprep.subr.bf16.mxu0 0
      %449 = vmatpush1.bf16.msra.mxu0 0
      %450 = vmatprep.subr.bf16.mxu0 0
      %451 = vmatpush1.bf16.msra.mxu0 0
      %452 = vmatprep.subr.bf16.mxu0 0
      %453 = vmatpush1.bf16.msra.mxu0 0
      %454 = vmatprep.subr.bf16.mxu0 0
      %455 = vmatpush1.bf16.msra.mxu0 0
      %456 = vmatprep.mubr.bf16.mxu0 0
      %457 = vmatmul.mubr.bf16.gmra.mrb[0].mxu0 %v416
      %v458 = vpop.f32.mrb[0].mxu0
      %v459 = vadd.f32 0.0, %v458
      %v460 = vpop.f32.mrb[0].mxu0
      %v461 = vpop.f32.mrb[0].mxu0
      %v462 = vadd.f32 0.0, %v461
      %v463 = vpop.f32.mrb[0].mxu0
      %464 = vmatprep.mubr.bf16.mxu0 0
      %465 = vmatmul.mubr.bf16.gmra.mrb[0].mxu0 %v419
      %v466 = vpop.f32.mrb[0].mxu0
      %v467 = vadd.f32 0.0, %v466
      %v468 = vpop.f32.mrb[0].mxu0
      %v469 = vpop.f32.mrb[0].mxu0
      %v470 = vpop.f32.mrb[0].mxu0
      %471 = vdwg.mxu0
      %475 = vrot.lane.b32.xlu0 %v459, 64
      %v476 = vpop.permute.xlu0 %475
      %477 = vrot.lane.b32.xlu0 %v462, 64
      %v478 = vpop.permute.xlu0 %477
      %479 = vrot.lane.b32.xlu0 %v467, 64
      %v480 = vpop.permute.xlu0 %479
      %vm484 = vcmask 1048064
      %485 = vst.msk [vmem:[%s116] sm:$0xff] %vm484, %v476
      %486 = vst.msk [vmem:[%s116 + $0x8] sm:$0xff] %vm484, %v478
      %vm487 = vcmask 1040896
      %488 = vst.msk [vmem:[%s116 + $0x10] sm:$0x1] %vm487, %v480
      %p489 = scmp.lt.s32.totalorder %s12, 1
      %s490 = scalar_select %p489, %s12, 1
      %s491 = smul.addr %s490, 3
      %s492 = smul.addr %s491, 8
      %s493 = scalar_lea.vmem %s1, %s492
      // Predicated region
      $region25: #{encode_image.14} parent=23 // pred_check
        %p494 = pneg %p56
      $region26: #{encode_image.14} parent=23 // pred_check_branch
        %496 = sbr.rel (%p494) target = $region28
      $region27: #{encode_image.14} parent=23 // pred_region
        _
      $region28: #{encode_image.14} parent=23 // pred_fallthru
        _
    $region24: #{encode_image.14} parent=5 // pred_fallthru
      _
    %p497 = scmp.le.s32.totalorder 2, %s7
    // Predicated region
    $region29: #{encode_image.14} parent=5 // pred_check
      %p498 = pneg %p497
    $region30: #{encode_image.14} parent=5 // pred_check_branch
      %500 = sbr.rel (%p498) target = $region32
    $region31: #{encode_image.14} parent=5 // pred_region
      %s501 = ssub.s32 %s7, 2
      // Predicated region
      $region33: #{encode_image.14} parent=31 // pred_check
        %p502 = pneg %p62
      $region34: #{encode_image.14} parent=31 // pred_check_branch
        %504 = sbr.rel (%p502) target = $region36
      $region35: #{encode_image.14} parent=31 // pred_region
        %p505 = scmp.lt.s32.totalorder %s13, 1
        %s506 = scalar_select %p505, %s13, 1
        %s507 = smul.addr %s506, 3
        %s508 = smul.addr %s507, 8
        %s509 = scalar_lea.vmem %s1, %s508
      $region36: #{encode_image.14} parent=31 // pred_fallthru
        _
    $region32: #{encode_image.14} parent=5 // pred_fallthru
      _
  $region6: #{encode_image.14} parent=0 // loop_footer
    %s11 = sadd.s32 1, %s7
  $region7: #{encode_image.14} parent=0 // loop_footer_branch
    %6 = sbr.rel target = $region3
  $region8: #{encode_image.14} parent=0 // loop_exit
    _

// kernel: encode_image.13
$region0: #{encode_image.13}
  #allocation0 [shape = 'u32[]', space=smem, size = 0x4, offset = 0x4, fixed_abs, tag = 'smem constant byte address 0x4 - core index']
  #allocation1 [shape = 'u32[144,128]{1,0:T(1,128)}', space=vmem, size = 0x12000, scoped, tag = 'internal scratch']
  %s0 = inlined_call_operand.vmem [shape: f32[34,128], index: 0, kind: input, shape index: {}]
  %s1 = inlined_call_operand.vmem [shape: f32[1,128], index: 1, kind: input, shape index: {}]
  %s2 = inlined_call_operand.vmem [shape: f32[1,128], index: 2, kind: input, shape index: {}]
  %s3 = inlined_call_operand.vmem [shape: bf16[128,384], index: 3, kind: input, shape index: {}]
  %s4 = inlined_call_operand.vmem [shape: f32[1,384], index: 4, kind: input, shape index: {}]
  %s5 = inlined_call_operand.vmem [shape: f32[34,384], index: 5, kind: output, shape index: {}]
  %s6 = sld [smem:[#allocation0]]
  $region79: #{encode_image.13} parent=0
    _
  %s8 = ssub.s32 1, %s6
  %s9 = scalar_select 0, %s8, %s6
  $region1: #{encode_image.13} parent=0
    #allocation2 [shape = 'u8[73728]{0}', space=vmem, size = 0x12000, scoped, tag = 'output window, operand 0']
    loop: start=0, step=1, limit=4
    $region2: #{encode_image.13} parent=1 // loop_pre_header
      _
    $region3: #{encode_image.13} parent=1 // loop_header
      %s11 = sphi 0, %s15
      %p12 = scmp.ge.s32.totalorder %s11, 4
      %s18 = sphi 0, %s30
      %s19 = sphi 0, %s26
      %s20 = sphi 0, %s18
      %s21 = sphi 0, %s19
      %s22 = sphi 0, %s20
      %s23 = sphi 0, %s21
      %s33 = sphi 0, %s35
      %s36 = sphi 0, %s33
      %s37 = sphi 0, %s36
      %s53 = sphi 0, %s37
      %s57 = sphi 0, %s57
      %s59 = sphi 0, %s57
      %s60 = sphi 0, %s59
      %s74 = sphi 0, %s60
      %s78 = sphi 0, %s78
      %s80 = sphi 0, %s78
      %s81 = sphi 0, %s80
      %s95 = sphi 0, %s81
      %s101 = sphi 0, %s103
      %s104 = sphi 0, %s101
      %s105 = sphi 0, %s104
      %s121 = sphi 0, %s105
      %s127 = sphi 0, %s129
      %s130 = sphi 0, %s127
      %s131 = sphi 0, %s130
      %s147 = sphi 0, %s131
      %s155 = sphi 0, %s157
      %s158 = sphi 0, %s155
      %s159 = sphi 0, %s158
      %s175 = sphi 0, %s159
    $region4: #{encode_image.13} parent=1 // loop_header_branch
      %14 = sbr.rel (%p12) target = $region8
    $region5: #{encode_image.13} parent=1 // loop_body
      %s16 = ssub.s32 %s11, 1
      %s17 = ssub.s32 %s11, 2
      %s24 = sadd.s32 1, %s19
      %p25 = scmp.ge.s32.totalorder %s24, 1
      %s26 = scalar_select %p25, 0, %s24
      %s27 = sadd.s32 1, %s18
      %s28 = scalar_select %p25, %s27, %s18
      %p29 = scmp.ge.s32.totalorder %s28, 2
      %s30 = scalar_select %p29, 0, %s28
      %s31 = ssub.s32 %s18, %s30
      %p32 = scmp.eq.s32.totalorder %s31, 0
      %s34 = sadd.s32 %s33, 1
      %s35 = scalar_select %p32, %s33, %s34
      %p38 = pneg %p32
      %p39 = scmp.eq.s32.totalorder %s11, 1
      %p40 = por %p38, %p39
      %p41 = scmp.ne.s32.totalorder %s33, %s36
      %p42 = scmp.eq.s32.totalorder %s11, 0
      %p43 = por %p41, %p42
      %p44 = scmp.ne.s32.totalorder %s33, %s36
      %p45 = scmp.eq.s32.totalorder %s16, 1
      %p46 = por %p44, %p45
      %p47 = scmp.ne.s32.totalorder %s36, %s37
      %p48 = scmp.eq.s32.totalorder %s16, 0
      %p49 = por %p47, %p48
      %p50 = scmp.ne.s32.totalorder %s36, %s37
      %p51 = scmp.eq.s32.totalorder %s17, 1
      %p52 = por %p50, %p51
      %p54 = scmp.ne.s32.totalorder %s37, %s53
      %p55 = scmp.eq.s32.totalorder %s17, 0
      %p56 = por %p54, %p55
      %s58 = sadd.s32 %s57, 1
      %p61 = scmp.eq.s32.totalorder %s11, 1
      %p62 = scmp.ne.s32.totalorder %s57, %s59
      %p63 = scmp.eq.s32.totalorder %s11, 0
      %p64 = por %p62, %p63
      %p65 = scmp.ne.s32.totalorder %s57, %s59
      %p66 = scmp.eq.s32.totalorder %s16, 1
      %p67 = por %p65, %p66
      %p68 = scmp.ne.s32.totalorder %s59, %s60
      %p69 = scmp.eq.s32.totalorder %s16, 0
      %p70 = por %p68, %p69
      %p71 = scmp.ne.s32.totalorder %s59, %s60
      %p72 = scmp.eq.s32.totalorder %s17, 1
      %p73 = por %p71, %p72
      %p75 = scmp.ne.s32.totalorder %s60, %s74
      %p76 = scmp.eq.s32.totalorder %s17, 0
      %p77 = por %p75, %p76
      %s79 = sadd.s32 %s78, 1
      %p82 = scmp.eq.s32.totalorder %s11, 1
      %p83 = scmp.ne.s32.totalorder %s78, %s80
      %p84 = scmp.eq.s32.totalorder %s11, 0
      %p85 = por %p83, %p84
      %p86 = scmp.ne.s32.totalorder %s78, %s80
      %p87 = scmp.eq.s32.totalorder %s16, 1
      %p88 = por %p86, %p87
      %p89 = scmp.ne.s32.totalorder %s80, %s81
      %p90 = scmp.eq.s32.totalorder %s16, 0
      %p91 = por %p89, %p90
      %p92 = scmp.ne.s32.totalorder %s80, %s81
      %p93 = scmp.eq.s32.totalorder %s17, 1
      %p94 = por %p92, %p93
      %p96 = scmp.ne.s32.totalorder %s81, %s95
      %p97 = scmp.eq.s32.totalorder %s17, 0
      %p98 = por %p96, %p97
      %s99 = ssub.s32 %s19, %s26
      %p100 = scmp.eq.s32.totalorder %s99, 0
      %s102 = sadd.s32 %s101, 1
      %s103 = scalar_select %p100, %s101, %s102
      %p106 = pneg %p100
      %p107 = scmp.eq.s32.totalorder %s11, 1
      %p108 = por %p106, %p107
      %p109 = scmp.ne.s32.totalorder %s101, %s104
      %p110 = scmp.eq.s32.totalorder %s11, 0
      %p111 = por %p109, %p110
      %p112 = scmp.ne.s32.totalorder %s101, %s104
      %p113 = scmp.eq.s32.totalorder %s16, 1
      %p114 = por %p112, %p113
      %p115 = scmp.ne.s32.totalorder %s104, %s105
      %p116 = scmp.eq.s32.totalorder %s16, 0
      %p117 = por %p115, %p116
      %p118 = scmp.ne.s32.totalorder %s104, %s105
      %p119 = scmp.eq.s32.totalorder %s17, 1
      %p120 = por %p118, %p119
      %p122 = scmp.ne.s32.totalorder %s105, %s121
      %p123 = scmp.eq.s32.totalorder %s17, 0
      %p124 = por %p122, %p123
      %s125 = ssub.s32 %s19, %s26
      %p126 = scmp.eq.s32.totalorder %s125, 0
      %s128 = sadd.s32 %s127, 1
      %s129 = scalar_select %p126, %s127, %s128
      %p132 = pneg %p126
      %p133 = scmp.eq.s32.totalorder %s11, 1
      %p134 = por %p132, %p133
      %p135 = scmp.ne.s32.totalorder %s127, %s130
      %p136 = scmp.eq.s32.totalorder %s11, 0
      %p137 = por %p135, %p136
      %p138 = scmp.ne.s32.totalorder %s127, %s130
      %p139 = scmp.eq.s32.totalorder %s16, 1
      %p140 = por %p138, %p139
      %p141 = scmp.ne.s32.totalorder %s130, %s131
      %p142 = scmp.eq.s32.totalorder %s16, 0
      %p143 = por %p141, %p142
      %p144 = scmp.ne.s32.totalorder %s130, %s131
      %p145 = scmp.eq.s32.totalorder %s17, 1
      %p146 = por %p144, %p145
      %p148 = scmp.ne.s32.totalorder %s131, %s147
      %p149 = scmp.eq.s32.totalorder %s17, 0
      %p150 = por %p148, %p149
      %s151 = ssub.s32 %s18, %s30
      %s152 = ssub.s32 %s19, %s26
      %s153 = sor.u32 %s151, %s152
      %p154 = scmp.eq.s32.totalorder %s153, 0
      %s156 = sadd.s32 %s155, 1
      %s157 = scalar_select %p154, %s155, %s156
      %p160 = pneg %p154
      %p161 = scmp.eq.s32.totalorder %s11, 1
      %p162 = por %p160, %p161
      %p163 = scmp.ne.s32.totalorder %s155, %s158
      %p164 = scmp.eq.s32.totalorder %s11, 0
      %p165 = por %p163, %p164
      %p166 = scmp.ne.s32.totalorder %s155, %s158
      %p167 = scmp.eq.s32.totalorder %s16, 1
      %p168 = por %p166, %p167
      %p169 = scmp.ne.s32.totalorder %s158, %s159
      %p170 = scmp.eq.s32.totalorder %s16, 0
      %p171 = por %p169, %p170
      %p172 = scmp.ne.s32.totalorder %s158, %s159
      %p173 = scmp.eq.s32.totalorder %s17, 1
      %p174 = por %p172, %p173
      %p176 = scmp.ne.s32.totalorder %s159, %s175
      %p177 = scmp.eq.s32.totalorder %s17, 0
      %p178 = por %p176, %p177
      %p179 = scmp.le.s32.totalorder 1, %s11
      %p180 = scmp.lt.s32.totalorder %s11, 3
      %p181 = pnand %p179, %p180
      %p182 = pneg %p181
      // Predicated region
      $region9: #{encode_image.13} parent=5 // pred_check
        _
      $region10: #{encode_image.13} parent=5 // pred_check_branch
        %184 = sbr.rel (%p181) target = $region12
      $region11: #{encode_image.13} parent=5 // pred_region
        %s185 = ssub.s32 %s11, 1
        // Predicated region
        $region13: #{encode_image.13} parent=11 // pred_check
          %p186 = pneg %p70
        $region14: #{encode_image.13} parent=11 // pred_check_branch
          %188 = sbr.rel (%p186) target = $region16
        $region15: #{encode_image.13} parent=11 // pred_region
          _
        $region16: #{encode_image.13} parent=11 // pred_fallthru
          _
        // Predicated region
        $region17: #{encode_image.13} parent=11 // pred_check
          %p189 = pneg %p91
        $region18: #{encode_image.13} parent=11 // pred_check_branch
          %191 = sbr.rel (%p189) target = $region20
        $region19: #{encode_image.13} parent=11 // pred_region
          _
        $region20: #{encode_image.13} parent=11 // pred_fallthru
          _
        // Predicated region
        $region21: #{encode_image.13} parent=11 // pred_check
          %p192 = pneg %p117
        $region22: #{encode_image.13} parent=11 // pred_check_branch
          %194 = sbr.rel (%p192) target = $region24
        $region23: #{encode_image.13} parent=11 // pred_region
          %s195 = smul.u32 3, %s21
          %p196 = scmp.lt.s32.totalorder %s195, 2
          %s197 = scalar_select %p196, %s195, 2
          %s198 = smul.addr %s197, 4
          %s199 = scalar_lea.vmem %s3, %s198
          %s200 = smul.u32 3, %s21
        $region24: #{encode_image.13} parent=11 // pred_fallthru
          _
        // Predicated region
        $region25: #{encode_image.13} parent=11 // pred_check
          %p201 = pneg %p143
        $region26: #{encode_image.13} parent=11 // pred_check_branch
          %203 = sbr.rel (%p201) target = $region28
        $region27: #{encode_image.13} parent=11 // pred_region
          %s204 = smul.u32 3, %s21
          %p205 = scmp.lt.s32.totalorder %s204, 2
          %s206 = scalar_select %p205, %s204, 2
          %s207 = scalar_lea.vmem %s4, %s206
          %s208 = smul.u32 3, %s21
        $region28: #{encode_image.13} parent=11 // pred_fallthru
          _
      $region12: #{encode_image.13} parent=5 // pred_fallthru
        _
      %p209 = scmp.lt.s32.totalorder %s11, 2
      // Predicated region
      $region29: #{encode_image.13} parent=5 // pred_check
        %p210 = pneg %p209
      $region30: #{encode_image.13} parent=5 // pred_check_branch
        %212 = sbr.rel (%p210) target = $region32
      $region31: #{encode_image.13} parent=5 // pred_region
        // Predicated region
        $region33: #{encode_image.13} parent=31 // pred_check
          %p213 = pneg %p43
        $region34: #{encode_image.13} parent=31 // pred_check_branch
          %215 = sbr.rel (%p213) target = $region36
        $region35: #{encode_image.13} parent=31 // pred_region
          %s216 = smul.u32 3, %s18
          %s217 = ssub.s32 5, %s216
          %p218 = scmp.lt.s32.totalorder %s217, 3
          %s219 = scalar_select %p218, %s217, 3
          %s220 = smul.u32 128, %s219
          %p221 = scmp.lt.s32.totalorder %s216, 4
          %s222 = scalar_select %p221, %s216, 4
          %s223 = smul.addr %s222, 8
          %s224 = scalar_lea.vmem %s0, %s223
          %s225 = smul.u32 3, %s18
          %s226 = ssub.s32 5, %s225
          %p227 = scmp.lt.s32.totalorder %s226, 3
          %s228 = scalar_select %p227, %s226, 3
          %s229 = smul.u32 128, %s228
        $region36: #{encode_image.13} parent=31 // pred_fallthru
          _
      $region32: #{encode_image.13} parent=5 // pred_fallthru
        _
      %p230 = scmp.le.s32.totalorder 1, %s11
      %p231 = scmp.lt.s32.totalorder %s11, 3
      %p232 = pnand %p230, %p231
      %p233 = pneg %p232
      // Predicated region
      $region37: #{encode_image.13} parent=5 // pred_check
        _
      $region38: #{encode_image.13} parent=5 // pred_check_branch
        %235 = sbr.rel (%p232) target = $region40
      $region39: #{encode_image.13} parent=5 // pred_region
        %s236 = ssub.s32 %s11, 1
        %s237 = smul.u32 3, %s20
        %s238 = ssub.s32 5, %s237
        %p239 = scmp.lt.s32.totalorder %s238, 3
        %s240 = scalar_select %p239, %s238, 3
        %s241 = smul.u32 128, %s240
        %p242 = scmp.lt.s32.totalorder %s237, 4
        %s243 = scalar_select %p242, %s237, 4
        %s244 = smul.addr %s243, 8
        %s245 = scalar_lea.vmem %s0, %s244
        %p246 = pneg %p49
        %p247 = pneg %p46
        %p248 = pneg %p70
        %p249 = pneg %p67
        %p250 = pneg %p91
        %p251 = pneg %p88
        %s252 = smul.u32 3, %s21
        %p253 = scmp.lt.s32.totalorder %s252, 2
        %s254 = scalar_select %p253, %s252, 2
        %s255 = smul.addr %s254, 4
        %s256 = scalar_lea.vmem %s3, %s255
        %p257 = pneg %p117
        %p258 = pneg %p114
        %s259 = smul.u32 3, %s21
        %p260 = scmp.lt.s32.totalorder %s259, 2
        %s261 = scalar_select %p260, %s259, 2
        %s262 = scalar_lea.vmem %s4, %s261
        %p263 = pneg %p143
        %p264 = pneg %p140
        %p265 = pneg %p171
        %p266 = pneg %p168
        %s267 = sand.u32 %s158, 1
        %s268 = sand.u32 %s158, 1
        %s269 = smul.addr %s268, 72
        %s270 = scalar_lea.vmem [#allocation2], %s269
        %s271 = smul.u32 3, %s20
        %s272 = ssub.s32 5, %s271
        %p273 = scmp.lt.s32.totalorder %s272, 3
        %s274 = scalar_select %p273, %s272, 3
        %s275 = smul.u32 128, %s274
        %p276 = scmp.lt.s32.totalorder %s271, 4
        %s277 = scalar_select %p276, %s271, 4
        %s278 = smul.addr %s277, 8
        %s279 = scalar_lea.vmem %s0, %s278
        %s280 = smul.u32 3, %s20
        %s281 = ssub.s32 5, %s280
        %p282 = scmp.lt.s32.totalorder %s281, 3
        %s283 = scalar_select %p282, %s281, 3
        %s284 = smul.u32 128, %s283
        %s285 = smul.u32 3, %s21
        %p286 = scmp.lt.s32.totalorder %s285, 2
        %s287 = scalar_select %p286, %s285, 2
        %s288 = smul.addr %s287, 4
        %s289 = scalar_lea.vmem %s3, %s288
        %s290 = smul.u32 3, %s21
        %s291 = smul.u32 3, %s21
        %p292 = scmp.lt.s32.totalorder %s291, 2
        %s293 = scalar_select %p292, %s291, 2
        %s294 = scalar_lea.vmem %s4, %s293
        %s295 = smul.u32 3, %s21
        %s296 = smul.u32 3, %s20
        %s297 = smul.u32 3, %s21
        %s298 = ssub.s32 5, %s296
        %p299 = scmp.lt.s32.totalorder %s298, 3
        %s300 = scalar_select %p299, %s298, 3
        %s301 = smul.u32 128, %s300
        %s302 = smul.u32 %s301, 3
        %v304 = vld [vmem:[%s279] sm:$0xff]
        %v305 = vld [vmem:[%s279 + $0x8] sm:$0xff]
        %v306 = vld [vmem:[%s279 + $0x10] sm:$0xff]
        %307 = vadd.xlane.f32.xlu0 %v304
        %v308 = vpop.xlane.xlu0 %307
        %309 = vadd.xlane.f32.xlu0 %v305
        %v310 = vpop.xlane.xlu0 %309
        %311 = vadd.xlane.f32.xlu0 %v306
        %v312 = vpop.xlane.xlu0 %311
        %v313 = vrcp.pop 128.0
        %v314 = vmul.f32 %v308, %v313
        %v315 = vmul.f32 %v310, %v313
        %v316 = vmul.f32 %v312, %v313
        %v317 = vsub.f32 %v304, %v314
        %v318 = vsub.f32 %v305, %v315
        %v319 = vsub.f32 %v306, %v316
        %v320 = vmul.f32 %v317, %v317
        %v321 = vmul.f32 %v318, %v318
        %v322 = vmul.f32 %v319, %v319
        %323 = vadd.xlane.f32.xlu0 %v320
        %v324 = vpop.xlane.xlu0 %323
        %325 = vadd.xlane.f32.xlu0 %v321
        %v326 = vpop.xlane.xlu0 %325
        %327 = vadd.xlane.f32.xlu0 %v322
        %v328 = vpop.xlane.xlu0 %327
        %v329 = vmul.f32 %v324, %v313
        %v330 = vmul.f32 %v326, %v313
        %v331 = vmul.f32 %v328, %v313
        %v332 = vadd.f32 %v329, 1e-05
        %v333 = vadd.f32 %v330, 1e-05
        %v334 = vadd.f32 %v331, 1e-05
        %v335 = vrsqrt.pop %v332
        %v336 = vrsqrt.pop %v333
        %v337 = vrsqrt.pop %v334
        %v338 = vmul.f32 %v317, %v335
        %v339 = vmul.f32 %v318, %v336
        %v340 = vmul.f32 %v319, %v337
        %v341 = vld [vmem:[%s1] sm:$0x1]
        %v343 = vlaneseq
        %v344 = vshrl.u32 %v343, 7
        %v345 = vsub.s32 0, %v344
        %v346 = vrot.slane %v341, %v345
        %v348 = vmul.f32 %v338, %v346
        %v349 = vmul.f32 %v339, %v346
        %v350 = vmul.f32 %v340, %v346
        %v351 = vld [vmem:[%s2] sm:$0x1]
        %v353 = vlaneseq
        %v354 = vshrl.u32 %v353, 7
        %v355 = vsub.s32 0, %v354
        %v356 = vrot.slane %v351, %v355
        %v358 = vadd.f32 %v348, %v356
        %v359 = vadd.f32 %v349, %v356
        %v360 = vadd.f32 %v350, %v356
        %v361 = vpack.c.bf16 %v359, %v358
        %v362 = vpack.c.bf16 %v360, %v360
        %v363 = vld [vmem:[%s289] sm:$0xff]
        %v364 = vld [vmem:[%s289 + $0x8] sm:$0xf]
        %v365 = vld [vmem:[%s289 + $0xc] sm:$0xff]
        %v366 = vld [vmem:[%s289 + $0x14] sm:$0xf]
        %v367 = vld [vmem:[%s289 + $0x18] sm:$0xff]
        %v368 = vld [vmem:[%s289 + $0x20] sm:$0xf]
        %v369 = vld [vmem:[%s289 + $0x24] sm:$0xff]
        %v370 = vld [vmem:[%s289 + $0x2c] sm:$0xf]
        %v371 = vld [vmem:[%s289 + $0x30] sm:$0xff]
        %v372 = vld [vmem:[%s289 + $0x38] sm:$0xf]
        %v373 = vld [vmem:[%s289 + $0x3c] sm:$0xff]
        %v374 = vld [vmem:[%s289 + $0x44] sm:$0xf]
        %v375 = vld [vmem:[%s289 + $0x48] sm:$0xff]
        %v376 = vld [vmem:[%s289 + $0x50] sm:$0xf]
        %v377 = vld [vmem:[%s289 + $0x54] sm:$0xff]
        %v378 = vld [vmem:[%s289 + $0x5c] sm:$0xf]
        %v379 = vld [vmem:[%s289 + $0x60] sm:$0xff]
        %v380 = vld [vmem:[%s289 + $0x68] sm:$0xf]
        %v381 = vld [vmem:[%s289 + $0x6c] sm:$0xff]
        %v382 = vld [vmem:[%s289 + $0x74] sm:$0xf]
        %v383 = vld [vmem:[%s289 + $0x78] sm:$0xff]
        %v384 = vld [vmem:[%s289 + $0x80] sm:$0xf]
        %v385 = vld [vmem:[%s289 + $0x84] sm:$0xff]
        %v386 = vld [vmem:[%s289 + $0x8c] sm:$0xf]
        %v387 = vld [vmem:[%s289 + $0x90] sm:$0xff]
        %v388 = vld [vmem:[%s289 + $0x98] sm:$0xf]
        %v389 = vld [vmem:[%s289 + $0x9c] sm:$0xff]
        %v390 = vld [vmem:[%s289 + $0xa4] sm:$0xf]
        %v391 = vld [vmem:[%s289 + $0xa8] sm:$0xff]
        %v392 = vld [vmem:[%s289 + $0xb0] sm:$0xf]
        %v393 = vld [vmem:[%s289 + $0xb4] sm:$0xff]
        %v394 = vld [vmem:[%s289 + $0xbc] sm:$0xf]
        %v395 = vld [vmem:[%s294] sm:$0x7]
        %v397 = vlaneseq
        %v398 = vshrl.u32 %v397, 7
        %v399 = vsub.s32 0, %v398
        %v400 = vrot.slane %v395, %v399
        %v401 = vlaneseq
        %v402 = vshrl.u32 %v401, 7
        %v403 = vsub.s32 1, %v402
        %v404 = vrot.slane %v395, %v403
        %v405 = vlaneseq
        %v406 = vshrl.u32 %v405, 7
        %v407 = vsub.s32 2, %v406
        %v408 = vrot.slane %v395, %v407
        %v444 = vunpack.c.l.b16 %v363
        %v445 = vunpack.c.h.b16 %v363
        %v446 = vunpack.c.l.b16 %v364
        %v447 = vunpack.c.l.b16 %v365
        %v448 = vunpack.c.h.b16 %v365
        %v449 = vunpack.c.l.b16 %v366
        %v450 = vunpack.c.l.b16 %v367
        %v451 = vunpack.c.h.b16 %v367
        %v452 = vunpack.c.l.b16 %v368
        %v453 = vunpack.c.l.b16 %v369
        %v454 = vunpack.c.h.b16 %v369
        %v455 = vunpack.c.l.b16 %v370
        %v456 = vunpack.c.l.b16 %v371
        %v457 = vunpack.c.h.b16 %v371
        %v458 = vunpack.c.l.b16 %v372
        %v459 = vunpack.c.l.b16 %v373
        %v460 = vunpack.c.h.b16 %v373
        %v461 = vunpack.c.l.b16 %v374
        %v462 = vunpack.c.l.b16 %v375
        %v463 = vunpack.c.h.b16 %v375
        %v464 = vunpack.c.l.b16 %v376
        %v465 = vunpack.c.l.b16 %v377
        %v466 = vunpack.c.h.b16 %v377
        %v467 = vunpack.c.l.b16 %v378
        %v468 = vunpack.c.l.b16 %v379
        %v469 = vunpack.c.h.b16 %v379
        %v470 = vunpack.c.l.b16 %v380
        %v471 = vunpack.c.l.b16 %v381
        %v472 = vunpack.c.h.b16 %v381
        %v473 = vunpack.c.l.b16 %v382
        %v474 = vunpack.c.l.b16 %v383
        %v475 = vunpack.c.h.b16 %v383
        %v476 = vunpack.c.l.b16 %v384
        %v477 = vunpack.c.l.b16 %v385
        %v478 = vunpack.c.h.b16 %v385
        %v479 = vunpack.c.l.b16 %v386
        %v480 = vunpack.c.l.b16 %v387
        %v481 = vunpack.c.h.b16 %v387
        %v482 = vunpack.c.l.b16 %v388
        %v483 = vunpack.c.l.b16 %v389
        %v484 = vunpack.c.h.b16 %v389
        %v485 = vunpack.c.l.b16 %v390
        %v486 = vunpack.c.l.b16 %v391
        %v487 = vunpack.c.h.b16 %v391
        %v488 = vunpack.c.l.b16 %v392
        %v489 = vunpack.c.l.b16 %v393
        %v490 = vunpack.c.h.b16 %v393
        %v491 = vunpack.c.l.b16 %v394
        %v492 = vpack.c.b16 %v447, %v444
        %v493 = vpack.c.b16 %v448, %v445
        %v494 = vpack.c.b16 %v449, %v446
        %v495 = vpack.c.b16 %v453, %v450
        %v496 = vpack.c.b16 %v454, %v451
        %v497 = vpack.c.b16 %v455, %v452
        %v498 = vpack.c.b16 %v459, %v456
        %v499 = vpack.c.b16 %v460, %v457
        %v500 = vpack.c.b16 %v461, %v458
        %v501 = vpack.c.b16 %v465, %v462
        %v502 = vpack.c.b16 %v466, %v463
        %v503 = vpack.c.b16 %v467, %v464
        %v504 = vpack.c.b16 %v471, %v468
        %v505 = vpack.c.b16 %v472, %v469
        %v506 = vpack.c.b16 %v473, %v470
        %v507 = vpack.c.b16 %v477, %v474
        %v508 = vpack.c.b16 %v478, %v475
        %v509 = vpack.c.b16 %v479, %v476
        %v510 = vpack.c.b16 %v483, %v480
        %v511 = vpack.c.b16 %v484, %v481
        %v512 = vpack.c.b16 %v485, %v482
        %v513 = vpack.c.b16 %v489, %v486
        %v514 = vpack.c.b16 %v490, %v487
        %v515 = vpack.c.b16 %v491, %v488
        %540 = vmatprep.subr.bf16.mxu0 %v493
        %541 = vmatpush1.bf16.msra.mxu0 %v492
        %542 = vmatprep.subr.bf16.mxu0 %v496
        %543 = vmatpush1.bf16.msra.mxu0 %v495
        %544 = vmatprep.subr.bf16.mxu0 %v499
        %545 = vmatpush1.bf16.msra.mxu0 %v498
        %546 = vmatprep.subr.bf16.mxu0 %v502
        %547 = vmatpush1.bf16.msra.mxu0 %v501
        %548 = vmatprep.subr.bf16.mxu0 %v505
        %549 = vmatpush1.bf16.msra.mxu0 %v504
        %550 = vmatprep.subr.bf16.mxu0 %v508
        %551 = vmatpush1.bf16.msra.mxu0 %v507
        %552 = vmatprep.subr.bf16.mxu0 %v511
        %553 = vmatpush1.bf16.msra.mxu0 %v510
        %554 = vmatprep.subr.bf16.mxu0 %v514
        %555 = vmatpush1.bf16.msra.mxu0 %v513
        %556 = vmatprep.subr.bf16.mxu0 0
        %557 = vmatpush1.bf16.msra.mxu0 0
        %558 = vmatprep.subr.bf16.mxu0 0
        %559 = vmatpush1.bf16.msra.mxu0 0
        %560 = vmatprep.subr.bf16.mxu0 0
        %561 = vmatpush1.bf16.msra.mxu0 0
        %562 = vmatprep.subr.bf16.mxu0 0
        %563 = vmatpush1.bf16.msra.mxu0 0
        %564 = vmatprep.subr.bf16.mxu0 0
        %565 = vmatpush1.bf16.msra.mxu0 0
        %566 = vmatprep.subr.bf16.mxu0 0
        %567 = vmatpush1.bf16.msra.mxu0 0
        %568 = vmatprep.subr.bf16.mxu0 0
        %569 = vmatpush1.bf16.msra.mxu0 0
        %570 = vmatprep.subr.bf16.mxu0 0
        %571 = vmatpush1.bf16.msra.mxu0 0
        %572 = vmatprep.mubr.bf16.mxu0 0
        %573 = vmatmul.mubr.bf16.gmra.mrb[0].mxu0 %v361
        %v574 = vpop.f32.mrb[0].mxu0
        %v575 = vadd.f32 %v400, %v574
        %v576 = vpop.f32.mrb[0].mxu0
        %v577 = vadd.f32 %v404, %v576
        %v578 = vpop.f32.mrb[0].mxu0
        %v579 = vadd.f32 %v400, %v578
        %v580 = vpop.f32.mrb[0].mxu0
        %v581 = vadd.f32 %v404, %v580
        %582 = vmatprep.mubr.bf16.mxu0 0
        %583 = vmatmul.mubr.bf16.gmra.mrb[0].mxu0 %v362
        %v584 = vpop.f32.mrb[0].mxu0
        %v585 = vadd.f32 %v400, %v584
        %v586 = vpop.f32.mrb[0].mxu0
        %v587 = vadd.f32 %v404, %v586
        %v588 = vpop.f32.mrb[0].mxu0
        %v589 = vpop.f32.mrb[0].mxu0
        %590 = vdwg.mxu0
        %591 = vmatprep.subr.bf16.mxu0 0
        %592 = vmatpush1.bf16.msra.mxu0 %v494
        %593 = vmatprep.subr.bf16.mxu0 0
        %594 = vmatpush1.bf16.msra.mxu0 %v497
        %595 = vmatprep.subr.bf16.mxu0 0
        %596 = vmatpush1.bf16.msra.mxu0 %v500
        %597 = vmatprep.subr.bf16.mxu0 0
        %598 = vmatpush1.bf16.msra.mxu0 %v503
        %599 = vmatprep.subr.bf16.mxu0 0
        %600 = vmatpush1.bf16.msra.mxu0 %v506
        %601 = vmatprep.subr.bf16.mxu0 0
        %602 = vmatpush1.bf16.msra.mxu0 %v509
        %603 = vmatprep.subr.bf16.mxu0 0
        %604 = vmatpush1.bf16.msra.mxu0 %v512
        %605 = vmatprep.subr.bf16.mxu0 0
        %606 = vmatpush1.bf16.msra.mxu0 %v515
        %607 = vmatprep.subr.bf16.mxu0 0
        %608 = vmatpush1.bf16.msra.mxu0 0
        %609 = vmatprep.subr.bf16.mxu0 0
        %610 = vmatpush1.bf16.msra.mxu0 0
        %611 = vmatprep.subr.bf16.mxu0 0
        %612 = vmatpush1.bf16.msra.mxu0 0
        %613 = vmatprep.subr.bf16.mxu0 0
        %614 = vmatpush1.bf16.msra.mxu0 0
        %615 = vmatprep.subr.bf16.mxu0 0
        %616 = vmatpush1.bf16.msra.mxu0 0
        %617 = vmatprep.subr.bf16.mxu0 0
        %618 = vmatpush1.bf16.msra.mxu0 0
        %619 = vmatprep.subr.bf16.mxu0 0
        %620 = vmatpush1.bf16.msra.mxu0 0
        %621 = vmatprep.subr.bf16.mxu0 0
        %622 = vmatpush1.bf16.msra.mxu0 0
        %623 = vmatprep.mubr.bf16.mxu0 0
        %624 = vmatmul.mubr.bf16.gmra.mrb[0].mxu0 %v361
        %v625 = vpop.f32.mrb[0].mxu0
        %v626 = vadd.f32 %v408, %v625
        %v627 = vpop.f32.mrb[0].mxu0
        %v628 = vpop.f32.mrb[0].mxu0
        %v629 = vadd.f32 %v408, %v628
        %v630 = vpop.f32.mrb[0].mxu0
        %631 = vmatprep.mubr.bf16.mxu0 0
        %632 = vmatmul.mubr.bf16.gmra.mrb[0].mxu0 %v362
        %v633 = vpop.f32.mrb[0].mxu0
        %v634 = vadd.f32 %v408, %v633
        %v635 = vpop.f32.mrb[0].mxu0
        %v636 = vpop.f32.mrb[0].mxu0
        %v637 = vpop.f32.mrb[0].mxu0
        %638 = vdwg.mxu0
        %639 = vst [vmem:[%s270] sm:$0xff] %v575
        %640 = vst [vmem:[%s270 + $0x8] sm:$0xff] %v577
        %641 = vst [vmem:[%s270 + $0x10] sm:$0xff] %v626
        %642 = vst [vmem:[%s270 + $0x18] sm:$0xff] %v579
        %643 = vst [vmem:[%s270 + $0x20] sm:$0xff] %v581
        %644 = vst [vmem:[%s270 + $0x28] sm:$0xff] %v629
        %645 = vst [vmem:[%s270 + $0x30] sm:$0xff] %v585
        %646 = vst [vmem:[%s270 + $0x38] sm:$0xff] %v587
        %647 = vst [vmem:[%s270 + $0x40] sm:$0xff] %v634
        %s648 = sand.u32 %s158, 1
        %s649 = sand.u32 %s158, 1
        %s650 = smul.addr %s649, 72
        %s651 = scalar_lea.vmem [#allocation2], %s650
        // Predicated region
        $region41: #{encode_image.13} parent=39 // pred_check
          %p652 = pneg %p168
        $region42: #{encode_image.13} parent=39 // pred_check_branch
          %654 = sbr.rel (%p652) target = $region44
        $region43: #{encode_image.13} parent=39 // pred_region
          %s655 = smul.u32 3, %s20
          %s656 = smul.u32 3, %s21
          %s657 = ssub.s32 5, %s655
          %p658 = scmp.lt.s32.totalorder %s657, 3
          %s659 = scalar_select %p658, %s657, 3
          %s660 = smul.u32 128, %s659
          %s661 = smul.u32 %s660, 3
          %p662 = scmp.ne.s32.totalorder 0, %s661
          %s663 = smul.addr %s655, 3
          %s664 = sadd.s32 %s656, %s663
          %s665 = smul.addr %s664, 8
          %s666 = scalar_lea.vmem %s5, %s665
          // Predicated region
          $region45: #{encode_image.13} parent=43 // pred_check
            %p667 = pneg %p662
          $region46: #{encode_image.13} parent=43 // pred_check_branch
            %669 = sbr.rel (%p667) target = $region48
          $region47: #{encode_image.13} parent=43 // pred_region
            // Predicated region
            $region49: #{encode_image.13} parent=47 // pred_check
              _
            $region50: #{encode_image.13} parent=47 // pred_check_branch
              %671 = sbr.rel (0) target = $region52
            $region51: #{encode_image.13} parent=47 // pred_region
              %s672 = sdiv.u32.pop %s659, 3
              %s673 = srem.u32.pop %s659, 3
              // While loop
              $region53: #{encode_image.13} parent=51 // loop_pre_header
                _
              $region54: #{encode_image.13} parent=51 // loop_header
                %s675 = sphi 0, %s677
                %p676 = scmp.ge.s32.totalorder %s675, %s672
                %s680 = sphi 0, %s703
                %s681 = sphi %s651, %s706
                %s682 = sphi %s666, %s707
              $region55: #{encode_image.13} parent=51 // loop_header_branch
                %679 = sbr.rel (%p676) target = $region59
              $region56: #{encode_image.13} parent=51 // loop_body
                %v683 = vld [vmem:[%s681] sm:$0xff]
                %684 = vst [vmem:[%s682] sm:$0xff] %v683
                %v685 = vld [vmem:[%s681 + $0x18] sm:$0xff]
                %686 = vst [vmem:[%s682 + $0x18] sm:$0xff] %v685
                %v687 = vld [vmem:[%s681 + $0x30] sm:$0xff]
                %688 = vst [vmem:[%s682 + $0x30] sm:$0xff] %v687
                %v689 = vld [vmem:[%s681 + $0x8] sm:$0xff]
                %690 = vst [vmem:[%s682 + $0x8] sm:$0xff] %v689
                %v691 = vld [vmem:[%s681 + $0x20] sm:$0xff]
                %692 = vst [vmem:[%s682 + $0x20] sm:$0xff] %v691
                %v693 = vld [vmem:[%s681 + $0x38] sm:$0xff]
                %694 = vst [vmem:[%s682 + $0x38] sm:$0xff] %v693
                %v695 = vld [vmem:[%s681 + $0x10] sm:$0xff]
                %696 = vst [vmem:[%s682 + $0x10] sm:$0xff] %v695
                %v697 = vld [vmem:[%s681 + $0x28] sm:$0xff]
                %698 = vst [vmem:[%s682 + $0x28] sm:$0xff] %v697
                %v699 = vld [vmem:[%s681 + $0x40] sm:$0xff]
                %700 = vst [vmem:[%s682 + $0x40] sm:$0xff] %v699
                %s701 = sadd.s32 1, %s680
                %p702 = scmp.ge.s32.totalorder %s701, %s672
                %s703 = scalar_select %p702, 0, %s701
                %s704 = smul.u32 %s703, 72
                %s705 = smul.u32 %s703, 72
                %s706 = scalar_lea.vmem %s651, %s704 [#allocation2]
                %s707 = scalar_lea.vmem %s666, %s705
              $region57: #{encode_image.13} parent=51 // loop_footer
                %s677 = sadd.s32 %s675, 1
              $region58: #{encode_image.13} parent=51 // loop_footer_branch
                %674 = sbr.rel target = $region54
              $region59: #{encode_image.13} parent=51 // loop_exit
                _
              %s708 = sdiv.u32.pop %s659, 3
              %s709 = srem.u32.pop %s659, 3
              %s710 = smul.u32 %s708, 3
              %s711 = smul.u32 24, %s710
              %s712 = scalar_lea.vmem %s651, %s711 [#allocation2]
              %s713 = smul.u32 24, %s710
              %s714 = scalar_lea.vmem %s666, %s713
              // While loop
              $region60: #{encode_image.13} parent=51 // loop_pre_header
                _
              $region61: #{encode_image.13} parent=51 // loop_header
                %s716 = sphi 0, %s718
                %p717 = scmp.ge.s32.totalorder %s716, %s709
                %s721 = sphi 0, %s732
                %s722 = sphi %s712, %s735
                %s723 = sphi %s714, %s736
              $region62: #{encode_image.13} parent=51 // loop_header_branch
                %720 = sbr.rel (%p717) target = $region66
              $region63: #{encode_image.13} parent=51 // loop_body
                %v724 = vld [vmem:[%s722] sm:$0xff]
                %725 = vst [vmem:[%s723] sm:$0xff] %v724
                %v726 = vld [vmem:[%s722 + $0x8] sm:$0xff]
                %727 = vst [vmem:[%s723 + $0x8] sm:$0xff] %v726
                %v728 = vld [vmem:[%s722 + $0x10] sm:$0xff]
                %729 = vst [vmem:[%s723 + $0x10] sm:$0xff] %v728
                %s730 = sadd.s32 1, %s721
                %p731 = scmp.ge.s32.totalorder %s730, %s709
                %s732 = scalar_select %p731, 0, %s730
                %s733 = smul.u32 %s732, 24
                %s734 = smul.u32 %s732, 24
                %s735 = scalar_lea.vmem %s712, %s733 [#allocation2]
                %s736 = scalar_lea.vmem %s714, %s734
              $region64: #{encode_image.13} parent=51 // loop_footer
                %s718 = sadd.s32 %s716, 1
              $region65: #{encode_image.13} parent=51 // loop_footer_branch
                %715 = sbr.rel target = $region61
              $region66: #{encode_image.13} parent=51 // loop_exit
                _
            $region52: #{encode_image.13} parent=47 // pred_fallthru
              _
            // Predicated region
            $region67: #{encode_image.13} parent=47 // pred_check
              _
            $region68: #{encode_image.13} parent=47 // pred_check_branch
              %738 = sbr.rel target = $region70
            $region69: #{encode_image.13} parent=47 // pred_region
              _
            $region70: #{encode_image.13} parent=47 // pred_fallthru
              _
          $region48: #{encode_image.13} parent=43 // pred_fallthru
            _
          %739 = vnop
        $region44: #{encode_image.13} parent=39 // pred_fallthru
          _
      $region40: #{encode_image.13} parent=5 // pred_fallthru
        _
      %p740 = scmp.le.s32.totalorder 2, %s11
      // Predicated region
      $region71: #{encode_image.13} parent=5 // pred_check
        %p741 = pneg %p740
      $region72: #{encode_image.13} parent=5 // pred_check_branch
        %743 = sbr.rel (%p741) target = $region74
      $region73: #{encode_image.13} parent=5 // pred_region
        %s744 = ssub.s32 %s11, 2
        // Predicated region
        $region75: #{encode_image.13} parent=73 // pred_check
          %p745 = pneg %p174
        $region76: #{encode_image.13} parent=73 // pred_check_branch
          %747 = sbr.rel (%p745) target = $region78
        $region77: #{encode_image.13} parent=73 // pred_region
          %s748 = sand.u32 %s159, 1
          %s749 = sand.u32 %s159, 1
          %s750 = smul.addr %s749, 72
          %s751 = scalar_lea.vmem [#allocation2], %s750
        $region78: #{encode_image.13} parent=73 // pred_fallthru
          _
      $region74: #{encode_image.13} parent=5 // pred_fallthru
        _
    $region6: #{encode_image.13} parent=1 // loop_footer
      %s15 = sadd.s32 1, %s11
    $region7: #{encode_image.13} parent=1 // loop_footer_branch
      %10 = sbr.rel target = $region3
    $region8: #{encode_image.13} parent=1 // loop_exit
      _

// kernel: encode_image.23
$region0: #{encode_image.23}
  #allocation0 [shape = 'u32[]', space=smem, size = 0x4, offset = 0x4, fixed_abs, tag = 'smem constant byte address 0x4 - core index']
  #allocation1 [shape = 'u32[144,128]{1,0:T(1,128)}', space=vmem, size = 0x12000, scoped, tag = 'internal scratch']
  %s0 = inlined_call_operand.vmem [shape: f32[2,128], index: 0, kind: input, shape index: {}]
  %s1 = inlined_call_operand.vmem [shape: f32[1,128], index: 1, kind: input, shape index: {}]
  %s2 = inlined_call_operand.vmem [shape: f32[1,128], index: 2, kind: input, shape index: {}]
  %s3 = inlined_call_operand.vmem [shape: bf16[128,128], index: 3, kind: input, shape index: {}]
  %s4 = inlined_call_operand.hbm [shape: f32[2,128], index: 4, kind: output, shape index: {}]
  %s5 = sld [smem:[#allocation0]]
  $region26: #{encode_image.23} parent=0
    _
  %s7 = ssub.s32 1, %s5
  %s8 = scalar_select 0, %s7, %s5
  $region1: #{encode_image.23} parent=0
    #allocation2 [shape = 'u8[1024]{0}', space=vmem, size = 0x400, scoped, tag = 'output window, operand 0, single buffered']
    #allocation3 [shape = 's32[1]{0}', space=sflag, size = 0x4, scoped, tag = 'scoped memory for encode_image.23']
    %9 = vsyncpa [#allocation3], 0
    // Predicated region
    $region2: #{encode_image.23} parent=1 // pred_check
      _
    $region3: #{encode_image.23} parent=1 // pred_check_branch
      %11 = sbr.rel (0) target = $region5
    $region4: #{encode_image.23} parent=1 // pred_region
      _
    $region5: #{encode_image.23} parent=1 // pred_fallthru
      _
    // Predicated region
    $region6: #{encode_image.23} parent=1 // pred_check
      _
    $region7: #{encode_image.23} parent=1 // pred_check_branch
      %13 = sbr.rel (0) target = $region9
    $region8: #{encode_image.23} parent=1 // pred_region
      _
    $region9: #{encode_image.23} parent=1 // pred_fallthru
      _
    // Predicated region
    $region10: #{encode_image.23} parent=1 // pred_check
      _
    $region11: #{encode_image.23} parent=1 // pred_check_branch
      %15 = sbr.rel (0) target = $region13
    $region12: #{encode_image.23} parent=1 // pred_region
      _
    $region13: #{encode_image.23} parent=1 // pred_fallthru
      _
    // Predicated region
    $region14: #{encode_image.23} parent=1 // pred_check
      _
    $region15: #{encode_image.23} parent=1 // pred_check_branch
      %17 = sbr.rel (0) target = $region17
    $region16: #{encode_image.23} parent=1 // pred_region
      _
    $region17: #{encode_image.23} parent=1 // pred_fallthru
      _
    %v19 = vld [vmem:[%s0] sm:$0x3]
    %vm20 = vcmask 1041408
    %v21 = vsel %vm20, %v19, 0.0
    %22 = vadd.xlane.f32.xlu0 %v21
    %v23 = vpop.xlane.xlu0 %22
    %v24 = vrcp.pop 128.0
    %v25 = vmul.f32 %v23, %v24
    %v26 = vsub.f32 %v19, %v25
    %v27 = vmul.f32 %v26, %v26
    %v28 = vsel %vm20, %v27, 0.0
    %29 = vadd.xlane.f32.xlu0 %v28
    %v30 = vpop.xlane.xlu0 %29
    %v31 = vmul.f32 %v30, %v24
    %v32 = vadd.f32 %v31, 1e-05
    %v33 = vrsqrt.pop %v32
    %v34 = vmul.f32 %v26, %v33
    %v35 = vld [vmem:[%s1] sm:$0x1]
    %v37 = vlaneseq
    %v38 = vshrl.u32 %v37, 7
    %v39 = vsub.s32 0, %v38
    %v40 = vrot.slane %v35, %v39
    %v42 = vmul.f32 %v34, %v40
    %v43 = vld [vmem:[%s2] sm:$0x1]
    %v45 = vlaneseq
    %v46 = vshrl.u32 %v45, 7
    %v47 = vsub.s32 0, %v46
    %v48 = vrot.slane %v43, %v47
    %v50 = vadd.f32 %v42, %v48
    %v51 = vpack.c.bf16 %v50, %v50
    %v52 = vld [vmem:[%s3] sm:$0xf]
    %v53 = vld [vmem:[%s3 + $0x4] sm:$0xf]
    %v54 = vld [vmem:[%s3 + $0x8] sm:$0xf]
    %v55 = vld [vmem:[%s3 + $0xc] sm:$0xf]
    %v56 = vld [vmem:[%s3 + $0x10] sm:$0xf]
    %v57 = vld [vmem:[%s3 + $0x14] sm:$0xf]
    %v58 = vld [vmem:[%s3 + $0x18] sm:$0xf]
    %v59 = vld [vmem:[%s3 + $0x1c] sm:$0xf]
    %v60 = vld [vmem:[%s3 + $0x20] sm:$0xf]
    %v61 = vld [vmem:[%s3 + $0x24] sm:$0xf]
    %v62 = vld [vmem:[%s3 + $0x28] sm:$0xf]
    %v63 = vld [vmem:[%s3 + $0x2c] sm:$0xf]
    %v64 = vld [vmem:[%s3 + $0x30] sm:$0xf]
    %v65 = vld [vmem:[%s3 + $0x34] sm:$0xf]
    %v66 = vld [vmem:[%s3 + $0x38] sm:$0xf]
    %v67 = vld [vmem:[%s3 + $0x3c] sm:$0xf]
    %v84 = vunpack.c.l.b16 %v52
    %v85 = vunpack.c.l.b16 %v53
    %v86 = vunpack.c.l.b16 %v54
    %v87 = vunpack.c.l.b16 %v55
    %v88 = vunpack.c.l.b16 %v56
    %v89 = vunpack.c.l.b16 %v57
    %v90 = vunpack.c.l.b16 %v58
    %v91 = vunpack.c.l.b16 %v59
    %v92 = vunpack.c.l.b16 %v60
    %v93 = vunpack.c.l.b16 %v61
    %v94 = vunpack.c.l.b16 %v62
    %v95 = vunpack.c.l.b16 %v63
    %v96 = vunpack.c.l.b16 %v64
    %v97 = vunpack.c.l.b16 %v65
    %v98 = vunpack.c.l.b16 %v66
    %v99 = vunpack.c.l.b16 %v67
    %v100 = vpack.c.b16 %v85, %v84
    %v101 = vpack.c.b16 %v87, %v86
    %v102 = vpack.c.b16 %v89, %v88
    %v103 = vpack.c.b16 %v91, %v90
    %v104 = vpack.c.b16 %v93, %v92
    %v105 = vpack.c.b16 %v95, %v94
    %v106 = vpack.c.b16 %v97, %v96
    %v107 = vpack.c.b16 %v99, %v98
    %116 = vmatprep.subr.bf16.mxu0 0
    %117 = vmatpush1.bf16.msra.mxu0 %v100
    %118 = vmatprep.subr.bf16.mxu0 0
    %119 = vmatpush1.bf16.msra.mxu0 %v101
    %120 = vmatprep.subr.bf16.mxu0 0
    %121 = vmatpush1.bf16.msra.mxu0 %v102
    %122 = vmatprep.subr.bf16.mxu0 0
    %123 = vmatpush1.bf16.msra.mxu0 %v103
    %124 = vmatprep.subr.bf16.mxu0 0
    %125 = vmatpush1.bf16.msra.mxu0 %v104
    %126 = vmatprep.subr.bf16.mxu0 0
    %127 = vmatpush1.bf16.msra.mxu0 %v105
    %128 = vmatprep.subr.bf16.mxu0 0
    %129 = vmatpush1.bf16.msra.mxu0 %v106
    %130 = vmatprep.subr.bf16.mxu0 0
    %131 = vmatpush1.bf16.msra.mxu0 %v107
    %132 = vmatprep.subr.bf16.mxu0 0
    %133 = vmatpush1.bf16.msra.mxu0 0
    %134 = vmatprep.subr.bf16.mxu0 0
    %135 = vmatpush1.bf16.msra.mxu0 0
    %136 = vmatprep.subr.bf16.mxu0 0
    %137 = vmatpush1.bf16.msra.mxu0 0
    %138 = vmatprep.subr.bf16.mxu0 0
    %139 = vmatpush1.bf16.msra.mxu0 0
    %140 = vmatprep.subr.bf16.mxu0 0
    %141 = vmatpush1.bf16.msra.mxu0 0
    %142 = vmatprep.subr.bf16.mxu0 0
    %143 = vmatpush1.bf16.msra.mxu0 0
    %144 = vmatprep.subr.bf16.mxu0 0
    %145 = vmatpush1.bf16.msra.mxu0 0
    %146 = vmatprep.subr.bf16.mxu0 0
    %147 = vmatpush1.bf16.msra.mxu0 0
    %148 = vmatprep.mubr.bf16.mxu0 0
    %149 = vmatmul.mubr.bf16.gmra.mrb[0].mxu0 %v51
    %v150 = vpop.f32.mrb[0].mxu0
    %v151 = vadd.f32 0.0, %v150
    %v152 = vpop.f32.mrb[0].mxu0
    %v153 = vpop.f32.mrb[0].mxu0
    %v154 = vpop.f32.mrb[0].mxu0
    %155 = vdwg.mxu0
    %156 = vst [vmem:[#allocation2] sm:$0x3] %v151
    // Predicated region
    $region18: #{encode_image.23} parent=1 // pred_check
      _
    $region19: #{encode_image.23} parent=1 // pred_check_branch
      %158 = sbr.rel (0) target = $region21
    $region20: #{encode_image.23} parent=1 // pred_region
      %s160 = ssub.s32 32, 32
      %161 = vsyncadd [#allocation3], %s160
      %s163 = sshll.u32 [#allocation2], 4
      %s164 = int_to_ptr.vmem [resolvable:$true] %s163
      %166 = dma.vmem_to_hbm [thread:$0]  %s164, 32, %s4, [#allocation3]
    $region21: #{encode_image.23} parent=1 // pred_fallthru
      _
    // Predicated region
    $region22: #{encode_image.23} parent=1 // pred_check
      _
    $region23: #{encode_image.23} parent=1 // pred_check_branch
      %168 = sbr.rel (0) target = $region25
    $region24: #{encode_image.23} parent=1 // pred_region
      %169 = dma.done [#allocation3], 32
    $region25: #{encode_image.23} parent=1 // pred_fallthru
      _
    %170 = vsyncpa [#allocation3], 1

// kernel: encode_image.16
$region0: #{encode_image.16}
  #allocation0 [shape = 'u32[]', space=smem, size = 0x4, offset = 0x4, fixed_abs, tag = 'smem constant byte address 0x4 - core index']
  #allocation1 [shape = 'u32[144,128]{1,0:T(1,128)}', space=vmem, size = 0x12000, scoped, tag = 'internal scratch']
  %s0 = inlined_call_operand.vmem [shape: f32[34,128], index: 0, kind: input, shape index: {}]
  %s1 = inlined_call_operand.vmem [shape: f32[1,128], index: 1, kind: input, shape index: {}]
  %s2 = inlined_call_operand.vmem [shape: f32[1,128], index: 2, kind: input, shape index: {}]
  %s3 = inlined_call_operand.vmem [shape: bf16[128,512], index: 3, kind: input, shape index: {}]
  %s4 = inlined_call_operand.vmem [shape: f32[1,512], index: 4, kind: input, shape index: {}]
  %s5 = inlined_call_operand.vmem [shape: f32[34,512], index: 5, kind: output, shape index: {}]
  %s6 = sld [smem:[#allocation0]]
  $region79: #{encode_image.16} parent=0
    _
  %s8 = ssub.s32 1, %s6
  %s9 = scalar_select 0, %s8, %s6
  $region1: #{encode_image.16} parent=0
    #allocation2 [shape = 'u8[98304]{0}', space=vmem, size = 0x18000, scoped, tag = 'output window, operand 0']
    loop: start=0, step=1, limit=4
    $region2: #{encode_image.16} parent=1 // loop_pre_header
      _
    $region3: #{encode_image.16} parent=1 // loop_header
      %s11 = sphi 0, %s15
      %p12 = scmp.ge.s32.totalorder %s11, 4
      %s18 = sphi 0, %s30
      %s19 = sphi 0, %s26
      %s20 = sphi 0, %s18
      %s21 = sphi 0, %s19
      %s22 = sphi 0, %s20
      %s23 = sphi 0, %s21
      %s33 = sphi 0, %s35
      %s36 = sphi 0, %s33
      %s37 = sphi 0, %s36
      %s53 = sphi 0, %s37
      %s57 = sphi 0, %s57
      %s59 = sphi 0, %s57
      %s60 = sphi 0, %s59
      %s74 = sphi 0, %s60
      %s78 = sphi 0, %s78
      %s80 = sphi 0, %s78
      %s81 = sphi 0, %s80
      %s95 = sphi 0, %s81
      %s101 = sphi 0, %s103
      %s104 = sphi 0, %s101
      %s105 = sphi 0, %s104
      %s121 = sphi 0, %s105
      %s127 = sphi 0, %s129
      %s130 = sphi 0, %s127
      %s131 = sphi 0, %s130
      %s147 = sphi 0, %s131
      %s155 = sphi 0, %s157
      %s158 = sphi 0, %s155
      %s159 = sphi 0, %s158
      %s175 = sphi 0, %s159
    $region4: #{encode_image.16} parent=1 // loop_header_branch
      %14 = sbr.rel (%p12) target = $region8
    $region5: #{encode_image.16} parent=1 // loop_body
      %s16 = ssub.s32 %s11, 1
      %s17 = ssub.s32 %s11, 2
      %s24 = sadd.s32 1, %s19
      %p25 = scmp.ge.s32.totalorder %s24, 1
      %s26 = scalar_select %p25, 0, %s24
      %s27 = sadd.s32 1, %s18
      %s28 = scalar_select %p25, %s27, %s18
      %p29 = scmp.ge.s32.totalorder %s28, 2
      %s30 = scalar_select %p29, 0, %s28
      %s31 = ssub.s32 %s18, %s30
      %p32 = scmp.eq.s32.totalorder %s31, 0
      %s34 = sadd.s32 %s33, 1
      %s35 = scalar_select %p32, %s33, %s34
      %p38 = pneg %p32
      %p39 = scmp.eq.s32.totalorder %s11, 1
      %p40 = por %p38, %p39
      %p41 = scmp.ne.s32.totalorder %s33, %s36
      %p42 = scmp.eq.s32.totalorder %s11, 0
      %p43 = por %p41, %p42
      %p44 = scmp.ne.s32.totalorder %s33, %s36
      %p45 = scmp.eq.s32.totalorder %s16, 1
      %p46 = por %p44, %p45
      %p47 = scmp.ne.s32.totalorder %s36, %s37
      %p48 = scmp.eq.s32.totalorder %s16, 0
      %p49 = por %p47, %p48
      %p50 = scmp.ne.s32.totalorder %s36, %s37
      %p51 = scmp.eq.s32.totalorder %s17, 1
      %p52 = por %p50, %p51
      %p54 = scmp.ne.s32.totalorder %s37, %s53
      %p55 = scmp.eq.s32.totalorder %s17, 0
      %p56 = por %p54, %p55
      %s58 = sadd.s32 %s57, 1
      %p61 = scmp.eq.s32.totalorder %s11, 1
      %p62 = scmp.ne.s32.totalorder %s57, %s59
      %p63 = scmp.eq.s32.totalorder %s11, 0
      %p64 = por %p62, %p63
      %p65 = scmp.ne.s32.totalorder %s57, %s59
      %p66 = scmp.eq.s32.totalorder %s16, 1
      %p67 = por %p65, %p66
      %p68 = scmp.ne.s32.totalorder %s59, %s60
      %p69 = scmp.eq.s32.totalorder %s16, 0
      %p70 = por %p68, %p69
      %p71 = scmp.ne.s32.totalorder %s59, %s60
      %p72 = scmp.eq.s32.totalorder %s17, 1
      %p73 = por %p71, %p72
      %p75 = scmp.ne.s32.totalorder %s60, %s74
      %p76 = scmp.eq.s32.totalorder %s17, 0
      %p77 = por %p75, %p76
      %s79 = sadd.s32 %s78, 1
      %p82 = scmp.eq.s32.totalorder %s11, 1
      %p83 = scmp.ne.s32.totalorder %s78, %s80
      %p84 = scmp.eq.s32.totalorder %s11, 0
      %p85 = por %p83, %p84
      %p86 = scmp.ne.s32.totalorder %s78, %s80
      %p87 = scmp.eq.s32.totalorder %s16, 1
      %p88 = por %p86, %p87
      %p89 = scmp.ne.s32.totalorder %s80, %s81
      %p90 = scmp.eq.s32.totalorder %s16, 0
      %p91 = por %p89, %p90
      %p92 = scmp.ne.s32.totalorder %s80, %s81
      %p93 = scmp.eq.s32.totalorder %s17, 1
      %p94 = por %p92, %p93
      %p96 = scmp.ne.s32.totalorder %s81, %s95
      %p97 = scmp.eq.s32.totalorder %s17, 0
      %p98 = por %p96, %p97
      %s99 = ssub.s32 %s19, %s26
      %p100 = scmp.eq.s32.totalorder %s99, 0
      %s102 = sadd.s32 %s101, 1
      %s103 = scalar_select %p100, %s101, %s102
      %p106 = pneg %p100
      %p107 = scmp.eq.s32.totalorder %s11, 1
      %p108 = por %p106, %p107
      %p109 = scmp.ne.s32.totalorder %s101, %s104
      %p110 = scmp.eq.s32.totalorder %s11, 0
      %p111 = por %p109, %p110
      %p112 = scmp.ne.s32.totalorder %s101, %s104
      %p113 = scmp.eq.s32.totalorder %s16, 1
      %p114 = por %p112, %p113
      %p115 = scmp.ne.s32.totalorder %s104, %s105
      %p116 = scmp.eq.s32.totalorder %s16, 0
      %p117 = por %p115, %p116
      %p118 = scmp.ne.s32.totalorder %s104, %s105
      %p119 = scmp.eq.s32.totalorder %s17, 1
      %p120 = por %p118, %p119
      %p122 = scmp.ne.s32.totalorder %s105, %s121
      %p123 = scmp.eq.s32.totalorder %s17, 0
      %p124 = por %p122, %p123
      %s125 = ssub.s32 %s19, %s26
      %p126 = scmp.eq.s32.totalorder %s125, 0
      %s128 = sadd.s32 %s127, 1
      %s129 = scalar_select %p126, %s127, %s128
      %p132 = pneg %p126
      %p133 = scmp.eq.s32.totalorder %s11, 1
      %p134 = por %p132, %p133
      %p135 = scmp.ne.s32.totalorder %s127, %s130
      %p136 = scmp.eq.s32.totalorder %s11, 0
      %p137 = por %p135, %p136
      %p138 = scmp.ne.s32.totalorder %s127, %s130
      %p139 = scmp.eq.s32.totalorder %s16, 1
      %p140 = por %p138, %p139
      %p141 = scmp.ne.s32.totalorder %s130, %s131
      %p142 = scmp.eq.s32.totalorder %s16, 0
      %p143 = por %p141, %p142
      %p144 = scmp.ne.s32.totalorder %s130, %s131
      %p145 = scmp.eq.s32.totalorder %s17, 1
      %p146 = por %p144, %p145
      %p148 = scmp.ne.s32.totalorder %s131, %s147
      %p149 = scmp.eq.s32.totalorder %s17, 0
      %p150 = por %p148, %p149
      %s151 = ssub.s32 %s18, %s30
      %s152 = ssub.s32 %s19, %s26
      %s153 = sor.u32 %s151, %s152
      %p154 = scmp.eq.s32.totalorder %s153, 0
      %s156 = sadd.s32 %s155, 1
      %s157 = scalar_select %p154, %s155, %s156
      %p160 = pneg %p154
      %p161 = scmp.eq.s32.totalorder %s11, 1
      %p162 = por %p160, %p161
      %p163 = scmp.ne.s32.totalorder %s155, %s158
      %p164 = scmp.eq.s32.totalorder %s11, 0
      %p165 = por %p163, %p164
      %p166 = scmp.ne.s32.totalorder %s155, %s158
      %p167 = scmp.eq.s32.totalorder %s16, 1
      %p168 = por %p166, %p167
      %p169 = scmp.ne.s32.totalorder %s158, %s159
      %p170 = scmp.eq.s32.totalorder %s16, 0
      %p171 = por %p169, %p170
      %p172 = scmp.ne.s32.totalorder %s158, %s159
      %p173 = scmp.eq.s32.totalorder %s17, 1
      %p174 = por %p172, %p173
      %p176 = scmp.ne.s32.totalorder %s159, %s175
      %p177 = scmp.eq.s32.totalorder %s17, 0
      %p178 = por %p176, %p177
      %p179 = scmp.le.s32.totalorder 1, %s11
      %p180 = scmp.lt.s32.totalorder %s11, 3
      %p181 = pnand %p179, %p180
      %p182 = pneg %p181
      // Predicated region
      $region9: #{encode_image.16} parent=5 // pred_check
        _
      $region10: #{encode_image.16} parent=5 // pred_check_branch
        %184 = sbr.rel (%p181) target = $region12
      $region11: #{encode_image.16} parent=5 // pred_region
        %s185 = ssub.s32 %s11, 1
        // Predicated region
        $region13: #{encode_image.16} parent=11 // pred_check
          %p186 = pneg %p70
        $region14: #{encode_image.16} parent=11 // pred_check_branch
          %188 = sbr.rel (%p186) target = $region16
        $region15: #{encode_image.16} parent=11 // pred_region
          _
        $region16: #{encode_image.16} parent=11 // pred_fallthru
          _
        // Predicated region
        $region17: #{encode_image.16} parent=11 // pred_check
          %p189 = pneg %p91
        $region18: #{encode_image.16} parent=11 // pred_check_branch
          %191 = sbr.rel (%p189) target = $region20
        $region19: #{encode_image.16} parent=11 // pred_region
          _
        $region20: #{encode_image.16} parent=11 // pred_fallthru
          _
        // Predicated region
        $region21: #{encode_image.16} parent=11 // pred_check
          %p192 = pneg %p117
        $region22: #{encode_image.16} parent=11 // pred_check_branch
          %194 = sbr.rel (%p192) target = $region24
        $region23: #{encode_image.16} parent=11 // pred_region
          %s195 = smul.u32 4, %s21
          %p196 = scmp.lt.s32.totalorder %s195, 3
          %s197 = scalar_select %p196, %s195, 3
          %s198 = smul.addr %s197, 4
          %s199 = scalar_lea.vmem %s3, %s198
          %s200 = smul.u32 4, %s21
        $region24: #{encode_image.16} parent=11 // pred_fallthru
          _
        // Predicated region
        $region25: #{encode_image.16} parent=11 // pred_check
          %p201 = pneg %p143
        $region26: #{encode_image.16} parent=11 // pred_check_branch
          %203 = sbr.rel (%p201) target = $region28
        $region27: #{encode_image.16} parent=11 // pred_region
          %s204 = smul.u32 4, %s21
          %p205 = scmp.lt.s32.totalorder %s204, 3
          %s206 = scalar_select %p205, %s204, 3
          %s207 = scalar_lea.vmem %s4, %s206
          %s208 = smul.u32 4, %s21
        $region28: #{encode_image.16} parent=11 // pred_fallthru
          _
      $region12: #{encode_image.16} parent=5 // pred_fallthru
        _
      %p209 = scmp.lt.s32.totalorder %s11, 2
      // Predicated region
      $region29: #{encode_image.16} parent=5 // pred_check
        %p210 = pneg %p209
      $region30: #{encode_image.16} parent=5 // pred_check_branch
        %212 = sbr.rel (%p210) target = $region32
      $region31: #{encode_image.16} parent=5 // pred_region
        // Predicated region
        $region33: #{encode_image.16} parent=31 // pred_check
          %p213 = pneg %p43
        $region34: #{encode_image.16} parent=31 // pred_check_branch
          %215 = sbr.rel (%p213) target = $region36
        $region35: #{encode_image.16} parent=31 // pred_region
          %s216 = smul.u32 3, %s18
          %s217 = ssub.s32 5, %s216
          %p218 = scmp.lt.s32.totalorder %s217, 3
          %s219 = scalar_select %p218, %s217, 3
          %s220 = smul.u32 128, %s219
          %p221 = scmp.lt.s32.totalorder %s216, 4
          %s222 = scalar_select %p221, %s216, 4
          %s223 = smul.addr %s222, 8
          %s224 = scalar_lea.vmem %s0, %s223
          %s225 = smul.u32 3, %s18
          %s226 = ssub.s32 5, %s225
          %p227 = scmp.lt.s32.totalorder %s226, 3
          %s228 = scalar_select %p227, %s226, 3
          %s229 = smul.u32 128, %s228
        $region36: #{encode_image.16} parent=31 // pred_fallthru
          _
      $region32: #{encode_image.16} parent=5 // pred_fallthru
        _
      %p230 = scmp.le.s32.totalorder 1, %s11
      %p231 = scmp.lt.s32.totalorder %s11, 3
      %p232 = pnand %p230, %p231
      %p233 = pneg %p232
      // Predicated region
      $region37: #{encode_image.16} parent=5 // pred_check
        _
      $region38: #{encode_image.16} parent=5 // pred_check_branch
        %235 = sbr.rel (%p232) target = $region40
      $region39: #{encode_image.16} parent=5 // pred_region
        %s236 = ssub.s32 %s11, 1
        %s237 = smul.u32 3, %s20
        %s238 = ssub.s32 5, %s237
        %p239 = scmp.lt.s32.totalorder %s238, 3
        %s240 = scalar_select %p239, %s238, 3
        %s241 = smul.u32 128, %s240
        %p242 = scmp.lt.s32.totalorder %s237, 4
        %s243 = scalar_select %p242, %s237, 4
        %s244 = smul.addr %s243, 8
        %s245 = scalar_lea.vmem %s0, %s244
        %p246 = pneg %p49
        %p247 = pneg %p46
        %p248 = pneg %p70
        %p249 = pneg %p67
        %p250 = pneg %p91
        %p251 = pneg %p88
        %s252 = smul.u32 4, %s21
        %p253 = scmp.lt.s32.totalorder %s252, 3
        %s254 = scalar_select %p253, %s252, 3
        %s255 = smul.addr %s254, 4
        %s256 = scalar_lea.vmem %s3, %s255
        %p257 = pneg %p117
        %p258 = pneg %p114
        %s259 = smul.u32 4, %s21
        %p260 = scmp.lt.s32.totalorder %s259, 3
        %s261 = scalar_select %p260, %s259, 3
        %s262 = scalar_lea.vmem %s4, %s261
        %p263 = pneg %p143
        %p264 = pneg %p140
        %p265 = pneg %p171
        %p266 = pneg %p168
        %s267 = sand.u32 %s158, 1
        %s268 = sand.u32 %s158, 1
        %s269 = smul.addr %s268, 96
        %s270 = scalar_lea.vmem [#allocation2], %s269
        %s271 = smul.u32 3, %s20
        %s272 = ssub.s32 5, %s271
        %p273 = scmp.lt.s32.totalorder %s272, 3
        %s274 = scalar_select %p273, %s272, 3
        %s275 = smul.u32 128, %s274
        %p276 = scmp.lt.s32.totalorder %s271, 4
        %s277 = scalar_select %p276, %s271, 4
        %s278 = smul.addr %s277, 8
        %s279 = scalar_lea.vmem %s0, %s278
        %s280 = smul.u32 3, %s20
        %s281 = ssub.s32 5, %s280
        %p282 = scmp.lt.s32.totalorder %s281, 3
        %s283 = scalar_select %p282, %s281, 3
        %s284 = smul.u32 128, %s283
        %s285 = smul.u32 4, %s21
        %p286 = scmp.lt.s32.totalorder %s285, 3
        %s287 = scalar_select %p286, %s285, 3
        %s288 = smul.addr %s287, 4
        %s289 = scalar_lea.vmem %s3, %s288
        %s290 = smul.u32 4, %s21
        %s291 = smul.u32 4, %s21
        %p292 = scmp.lt.s32.totalorder %s291, 3
        %s293 = scalar_select %p292, %s291, 3
        %s294 = scalar_lea.vmem %s4, %s293
        %s295 = smul.u32 4, %s21
        %s296 = smul.u32 3, %s20
        %s297 = smul.u32 4, %s21
        %s298 = ssub.s32 5, %s296
        %p299 = scmp.lt.s32.totalorder %s298, 3
        %s300 = scalar_select %p299, %s298, 3
        %s301 = smul.u32 128, %s300
        %s302 = smul.u32 %s301, 4
        %v304 = vld [vmem:[%s279] sm:$0xff]
        %v305 = vld [vmem:[%s279 + $0x8] sm:$0xff]
        %v306 = vld [vmem:[%s279 + $0x10] sm:$0xff]
        %307 = vadd.xlane.f32.xlu0 %v304
        %v308 = vpop.xlane.xlu0 %307
        %309 = vadd.xlane.f32.xlu0 %v305
        %v310 = vpop.xlane.xlu0 %309
        %311 = vadd.xlane.f32.xlu0 %v306
        %v312 = vpop.xlane.xlu0 %311
        %v313 = vrcp.pop 128.0
        %v314 = vmul.f32 %v308, %v313
        %v315 = vmul.f32 %v310, %v313
        %v316 = vmul.f32 %v312, %v313
        %v317 = vsub.f32 %v304, %v314
        %v318 = vsub.f32 %v305, %v315
        %v319 = vsub.f32 %v306, %v316
        %v320 = vmul.f32 %v317, %v317
        %v321 = vmul.f32 %v318, %v318
        %v322 = vmul.f32 %v319, %v319
        %323 = vadd.xlane.f32.xlu0 %v320
        %v324 = vpop.xlane.xlu0 %323
        %325 = vadd.xlane.f32.xlu0 %v321
        %v326 = vpop.xlane.xlu0 %325
        %327 = vadd.xlane.f32.xlu0 %v322
        %v328 = vpop.xlane.xlu0 %327
        %v329 = vmul.f32 %v324, %v313
        %v330 = vmul.f32 %v326, %v313
        %v331 = vmul.f32 %v328, %v313
        %v332 = vadd.f32 %v329, 1e-05
        %v333 = vadd.f32 %v330, 1e-05
        %v334 = vadd.f32 %v331, 1e-05
        %v335 = vrsqrt.pop %v332
        %v336 = vrsqrt.pop %v333
        %v337 = vrsqrt.pop %v334
        %v338 = vmul.f32 %v317, %v335
        %v339 = vmul.f32 %v318, %v336
        %v340 = vmul.f32 %v319, %v337
        %v341 = vld [vmem:[%s1] sm:$0x1]
        %v343 = vlaneseq
        %v344 = vshrl.u32 %v343, 7
        %v345 = vsub.s32 0, %v344
        %v346 = vrot.slane %v341, %v345
        %v348 = vmul.f32 %v338, %v346
        %v349 = vmul.f32 %v339, %v346
        %v350 = vmul.f32 %v340, %v346
        %v351 = vld [vmem:[%s2] sm:$0x1]
        %v353 = vlaneseq
        %v354 = vshrl.u32 %v353, 7
        %v355 = vsub.s32 0, %v354
        %v356 = vrot.slane %v351, %v355
        %v358 = vadd.f32 %v348, %v356
        %v359 = vadd.f32 %v349, %v356
        %v360 = vadd.f32 %v350, %v356
        %v361 = vpack.c.bf16 %v359, %v358
        %v362 = vpack.c.bf16 %v360, %v360
        %v363 = vld [vmem:[%s289] sm:$0xff]
        %v364 = vld [vmem:[%s289 + $0x8] sm:$0xff]
        %v365 = vld [vmem:[%s289 + $0x10] sm:$0xff]
        %v366 = vld [vmem:[%s289 + $0x18] sm:$0xff]
        %v367 = vld [vmem:[%s289 + $0x20] sm:$0xff]
        %v368 = vld [vmem:[%s289 + $0x28] sm:$0xff]
        %v369 = vld [vmem:[%s289 + $0x30] sm:$0xff]
        %v370 = vld [vmem:[%s289 + $0x38] sm:$0xff]
        %v371 = vld [vmem:[%s289 + $0x40] sm:$0xff]
        %v372 = vld [vmem:[%s289 + $0x48] sm:$0xff]
        %v373 = vld [vmem:[%s289 + $0x50] sm:$0xff]
        %v374 = vld [vmem:[%s289 + $0x58] sm:$0xff]
        %v375 = vld [vmem:[%s289 + $0x60] sm:$0xff]
        %v376 = vld [vmem:[%s289 + $0x68] sm:$0xff]
        %v377 = vld [vmem:[%s289 + $0x70] sm:$0xff]
        %v378 = vld [vmem:[%s289 + $0x78] sm:$0xff]
        %v379 = vld [vmem:[%s289 + $0x80] sm:$0xff]
        %v380 = vld [vmem:[%s289 + $0x88] sm:$0xff]
        %v381 = vld [vmem:[%s289 + $0x90] sm:$0xff]
        %v382 = vld [vmem:[%s289 + $0x98] sm:$0xff]
        %v383 = vld [vmem:[%s289 + $0xa0] sm:$0xff]
        %v384 = vld [vmem:[%s289 + $0xa8] sm:$0xff]
        %v385 = vld [vmem:[%s289 + $0xb0] sm:$0xff]
        %v386 = vld [vmem:[%s289 + $0xb8] sm:$0xff]
        %v387 = vld [vmem:[%s289 + $0xc0] sm:$0xff]
        %v388 = vld [vmem:[%s289 + $0xc8] sm:$0xff]
        %v389 = vld [vmem:[%s289 + $0xd0] sm:$0xff]
        %v390 = vld [vmem:[%s289 + $0xd8] sm:$0xff]
        %v391 = vld [vmem:[%s289 + $0xe0] sm:$0xff]
        %v392 = vld [vmem:[%s289 + $0xe8] sm:$0xff]
        %v393 = vld [vmem:[%s289 + $0xf0] sm:$0xff]
        %v394 = vld [vmem:[%s289 + $0xf8] sm:$0xff]
        %v395 = vld [vmem:[%s294] sm:$0xf]
        %v397 = vlaneseq
        %v398 = vshrl.u32 %v397, 7
        %v399 = vsub.s32 0, %v398
        %v400 = vrot.slane %v395, %v399
        %v401 = vlaneseq
        %v402 = vshrl.u32 %v401, 7
        %v403 = vsub.s32 1, %v402
        %v404 = vrot.slane %v395, %v403
        %v405 = vlaneseq
        %v406 = vshrl.u32 %v405, 7
        %v407 = vsub.s32 2, %v406
        %v408 = vrot.slane %v395, %v407
        %v409 = vlaneseq
        %v410 = vshrl.u32 %v409, 7
        %v411 = vsub.s32 3, %v410
        %v412 = vrot.slane %v395, %v411
        %v449 = vunpack.c.l.b16 %v363
        %v450 = vunpack.c.h.b16 %v363
        %v451 = vunpack.c.l.b16 %v364
        %v452 = vunpack.c.h.b16 %v364
        %v453 = vunpack.c.l.b16 %v365
        %v454 = vunpack.c.h.b16 %v365
        %v455 = vunpack.c.l.b16 %v366
        %v456 = vunpack.c.h.b16 %v366
        %v457 = vunpack.c.l.b16 %v367
        %v458 = vunpack.c.h.b16 %v367
        %v459 = vunpack.c.l.b16 %v368
        %v460 = vunpack.c.h.b16 %v368
        %v461 = vunpack.c.l.b16 %v369
        %v462 = vunpack.c.h.b16 %v369
        %v463 = vunpack.c.l.b16 %v370
        %v464 = vunpack.c.h.b16 %v370
        %v465 = vunpack.c.l.b16 %v371
        %v466 = vunpack.c.h.b16 %v371
        %v467 = vunpack.c.l.b16 %v372
        %v468 = vunpack.c.h.b16 %v372
        %v469 = vunpack.c.l.b16 %v373
        %v470 = vunpack.c.h.b16 %v373
        %v471 = vunpack.c.l.b16 %v374
        %v472 = vunpack.c.h.b16 %v374
        %v473 = vunpack.c.l.b16 %v375
        %v474 = vunpack.c.h.b16 %v375
        %v475 = vunpack.c.l.b16 %v376
        %v476 = vunpack.c.h.b16 %v376
        %v477 = vunpack.c.l.b16 %v377
        %v478 = vunpack.c.h.b16 %v377
        %v479 = vunpack.c.l.b16 %v378
        %v480 = vunpack.c.h.b16 %v378
        %v481 = vunpack.c.l.b16 %v379
        %v482 = vunpack.c.h.b16 %v379
        %v483 = vunpack.c.l.b16 %v380
        %v484 = vunpack.c.h.b16 %v380
        %v485 = vunpack.c.l.b16 %v381
        %v486 = vunpack.c.h.b16 %v381
        %v487 = vunpack.c.l.b16 %v382
        %v488 = vunpack.c.h.b16 %v382
        %v489 = vunpack.c.l.b16 %v383
        %v490 = vunpack.c.h.b16 %v383
        %v491 = vunpack.c.l.b16 %v384
        %v492 = vunpack.c.h.b16 %v384
        %v493 = vunpack.c.l.b16 %v385
        %v494 = vunpack.c.h.b16 %v385
        %v495 = vunpack.c.l.b16 %v386
        %v496 = vunpack.c.h.b16 %v386
        %v497 = vunpack.c.l.b16 %v387
        %v498 = vunpack.c.h.b16 %v387
        %v499 = vunpack.c.l.b16 %v388
        %v500 = vunpack.c.h.b16 %v388
        %v501 = vunpack.c.l.b16 %v389
        %v502 = vunpack.c.h.b16 %v389
        %v503 = vunpack.c.l.b16 %v390
        %v504 = vunpack.c.h.b16 %v390
        %v505 = vunpack.c.l.b16 %v391
        %v506 = vunpack.c.h.b16 %v391
        %v507 = vunpack.c.l.b16 %v392
        %v508 = vunpack.c.h.b16 %v392
        %v509 = vunpack.c.l.b16 %v393
        %v510 = vunpack.c.h.b16 %v393
        %v511 = vunpack.c.l.b16 %v394
        %v512 = vunpack.c.h.b16 %v394
        %v513 = vpack.c.b16 %v453, %v449
        %v514 = vpack.c.b16 %v454, %v450
        %v515 = vpack.c.b16 %v455, %v451
        %v516 = vpack.c.b16 %v456, %v452
        %v517 = vpack.c.b16 %v461, %v457
        %v518 = vpack.c.b16 %v462, %v458
        %v519 = vpack.c.b16 %v463, %v459
        %v520 = vpack.c.b16 %v464, %v460
        %v521 = vpack.c.b16 %v469, %v465
        %v522 = vpack.c.b16 %v470, %v466
        %v523 = vpack.c.b16 %v471, %v467
        %v524 = vpack.c.b16 %v472, %v468
        %v525 = vpack.c.b16 %v477, %v473
        %v526 = vpack.c.b16 %v478, %v474
        %v527 = vpack.c.b16 %v479, %v475
        %v528 = vpack.c.b16 %v480, %v476
        %v529 = vpack.c.b16 %v485, %v481
        %v530 = vpack.c.b16 %v486, %v482
        %v531 = vpack.c.b16 %v487, %v483
        %v532 = vpack.c.b16 %v488, %v484
        %v533 = vpack.c.b16 %v493, %v489
        %v534 = vpack.c.b16 %v494, %v490
        %v535 = vpack.c.b16 %v495, %v491
        %v536 = vpack.c.b16 %v496, %v492
        %v537 = vpack.c.b16 %v501, %v497
        %v538 = vpack.c.b16 %v502, %v498
        %v539 = vpack.c.b16 %v503, %v499
        %v540 = vpack.c.b16 %v504, %v500
        %v541 = vpack.c.b16 %v509, %v505
        %v542 = vpack.c.b16 %v510, %v506
        %v543 = vpack.c.b16 %v511, %v507
        %v544 = vpack.c.b16 %v512, %v508
        %577 = vmatprep.subr.bf16.mxu0 %v514
        %578 = vmatpush1.bf16.msra.mxu0 %v513
        %579 = vmatprep.subr.bf16.mxu0 %v518
        %580 = vmatpush1.bf16.msra.mxu0 %v517
        %581 = vmatprep.subr.bf16.mxu0 %v522
        %582 = vmatpush1.bf16.msra.mxu0 %v521
        %583 = vmatprep.subr.bf16.mxu0 %v526
        %584 = vmatpush1.bf16.msra.mxu0 %v525
        %585 = vmatprep.subr.bf16.mxu0 %v530
        %586 = vmatpush1.bf16.msra.mxu0 %v529
        %587 = vmatprep.subr.bf16.mxu0 %v534
        %588 = vmatpush1.bf16.msra.mxu0 %v533
        %589 = vmatprep.subr.bf16.mxu0 %v538
        %590 = vmatpush1.bf16.msra.mxu0 %v537
        %591 = vmatprep.subr.bf16.mxu0 %v542
        %592 = vmatpush1.bf16.msra.mxu0 %v541
        %593 = vmatprep.subr.bf16.mxu0 0
        %594 = vmatpush1.bf16.msra.mxu0 0
        %595 = vmatprep.subr.bf16.mxu0 0
        %596 = vmatpush1.bf16.msra.mxu0 0
        %597 = vmatprep.subr.bf16.mxu0 0
        %598 = vmatpush1.bf16.msra.mxu0 0
        %599 = vmatprep.subr.bf16.mxu0 0
        %600 = vmatpush1.bf16.msra.mxu0 0
        %601 = vmatprep.subr.bf16.mxu0 0
        %602 = vmatpush1.bf16.msra.mxu0 0
        %603 = vmatprep.subr.bf16.mxu0 0
        %604 = vmatpush1.bf16.msra.mxu0 0
        %605 = vmatprep.subr.bf16.mxu0 0
        %606 = vmatpush1.bf16.msra.mxu0 0
        %607 = vmatprep.subr.bf16.mxu0 0
        %608 = vmatpush1.bf16.msra.mxu0 0
        %609 = vmatprep.mubr.bf16.mxu0 0
        %610 = vmatmul.mubr.bf16.gmra.mrb[0].mxu0 %v361
        %v611 = vpop.f32.mrb[0].mxu0
        %v612 = vadd.f32 %v400, %v611
        %v613 = vpop.f32.mrb[0].mxu0
        %v614 = vadd.f32 %v404, %v613
        %v615 = vpop.f32.mrb[0].mxu0
        %v616 = vadd.f32 %v400, %v615
        %v617 = vpop.f32.mrb[0].mxu0
        %v618 = vadd.f32 %v404, %v617
        %619 = vmatprep.mubr.bf16.mxu0 0
        %620 = vmatmul.mubr.bf16.gmra.mrb[0].mxu0 %v362
        %v621 = vpop.f32.mrb[0].mxu0
        %v622 = vadd.f32 %v400, %v621
        %v623 = vpop.f32.mrb[0].mxu0
        %v624 = vadd.f32 %v404, %v623
        %v625 = vpop.f32.mrb[0].mxu0
        %v626 = vpop.f32.mrb[0].mxu0
        %627 = vdwg.mxu0
        %628 = vmatprep.subr.bf16.mxu0 %v516
        %629 = vmatpush1.bf16.msra.mxu0 %v515
        %630 = vmatprep.subr.bf16.mxu0 %v520
        %631 = vmatpush1.bf16.msra.mxu0 %v519
        %632 = vmatprep.subr.bf16.mxu0 %v524
        %633 = vmatpush1.bf16.msra.mxu0 %v523
        %634 = vmatprep.subr.bf16.mxu0 %v528
        %635 = vmatpush1.bf16.msra.mxu0 %v527
        %636 = vmatprep.subr.bf16.mxu0 %v532
        %637 = vmatpush1.bf16.msra.mxu0 %v531
        %638 = vmatprep.subr.bf16.mxu0 %v536
        %639 = vmatpush1.bf16.msra.mxu0 %v535
        %640 = vmatprep.subr.bf16.mxu0 %v540
        %641 = vmatpush1.bf16.msra.mxu0 %v539
        %642 = vmatprep.subr.bf16.mxu0 %v544
        %643 = vmatpush1.bf16.msra.mxu0 %v543
        %644 = vmatprep.subr.bf16.mxu0 0
        %645 = vmatpush1.bf16.msra.mxu0 0
        %646 = vmatprep.subr.bf16.mxu0 0
        %647 = vmatpush1.bf16.msra.mxu0 0
        %648 = vmatprep.subr.bf16.mxu0 0
        %649 = vmatpush1.bf16.msra.mxu0 0
        %650 = vmatprep.subr.bf16.mxu0 0
        %651 = vmatpush1.bf16.msra.mxu0 0
        %652 = vmatprep.subr.bf16.mxu0 0
        %653 = vmatpush1.bf16.msra.mxu0 0
        %654 = vmatprep.subr.bf16.mxu0 0
        %655 = vmatpush1.bf16.msra.mxu0 0
        %656 = vmatprep.subr.bf16.mxu0 0
        %657 = vmatpush1.bf16.msra.mxu0 0
        %658 = vmatprep.subr.bf16.mxu0 0
        %659 = vmatpush1.bf16.msra.mxu0 0
        %660 = vmatprep.mubr.bf16.mxu0 0
        %661 = vmatmul.mubr.bf16.gmra.mrb[0].mxu0 %v361
        %v662 = vpop.f32.mrb[0].mxu0
        %v663 = vadd.f32 %v408, %v662
        %v664 = vpop.f32.mrb[0].mxu0
        %v665 = vadd.f32 %v412, %v664
        %v666 = vpop.f32.mrb[0].mxu0
        %v667 = vadd.f32 %v408, %v666
        %v668 = vpop.f32.mrb[0].mxu0
        %v669 = vadd.f32 %v412, %v668
        %670 = vmatprep.mubr.bf16.mxu0 0
        %671 = vmatmul.mubr.bf16.gmra.mrb[0].mxu0 %v362
        %v672 = vpop.f32.mrb[0].mxu0
        %v673 = vadd.f32 %v408, %v672
        %v674 = vpop.f32.mrb[0].mxu0
        %v675 = vadd.f32 %v412, %v674
        %v676 = vpop.f32.mrb[0].mxu0
        %v677 = vpop.f32.mrb[0].mxu0
        %678 = vdwg.mxu0
        %v679 = vmul.f32 %v612, 1.702
        %v680 = vmul.f32 %v614, 1.702
        %v681 = vmul.f32 %v663, 1.702
        %v682 = vmul.f32 %v665, 1.702
        %v683 = vmul.f32 %v616, 1.702
        %v684 = vmul.f32 %v618, 1.702
        %v685 = vmul.f32 %v667, 1.702
        %v686 = vmul.f32 %v669, 1.702
        %v687 = vmul.f32 %v622, 1.702
        %v688 = vmul.f32 %v624, 1.702
        %v689 = vmul.f32 %v673, 1.702
        %v690 = vmul.f32 %v675, 1.702
        %v691 = vxor.u32 %v679, 2147483648
        %v692 = vxor.u32 %v680, 2147483648
        %v693 = vxor.u32 %v681, 2147483648
        %v694 = vxor.u32 %v682, 2147483648
        %v695 = vxor.u32 %v683, 2147483648
        %v696 = vxor.u32 %v684, 2147483648
        %v697 = vxor.u32 %v685, 2147483648
        %v698 = vxor.u32 %v686, 2147483648
        %v699 = vxor.u32 %v687, 2147483648
        %v700 = vxor.u32 %v688, 2147483648
        %v701 = vxor.u32 %v689, 2147483648
        %v702 = vxor.u32 %v690, 2147483648
        %v703 = vmul.f32 %v691, 1.442695
        %v704 = vpow.pop %v703
        %v705 = vmul.f32 %v692, 1.442695
        %v706 = vpow.pop %v705
        %v707 = vmul.f32 %v693, 1.442695
        %v708 = vpow.pop %v707
        %v709 = vmul.f32 %v694, 1.442695
        %v710 = vpow.pop %v709
        %v711 = vmul.f32 %v695, 1.442695
        %v712 = vpow.pop %v711
        %v713 = vmul.f32 %v696, 1.442695
        %v714 = vpow.pop %v713
        %v715 = vmul.f32 %v697, 1.442695
        %v716 = vpow.pop %v715
        %v717 = vmul.f32 %v698, 1.442695
        %v718 = vpow.pop %v717
        %v719 = vmul.f32 %v699, 1.442695
        %v720 = vpow.pop %v719
        %v721 = vmul.f32 %v700, 1.442695
        %v722 = vpow.pop %v721
        %v723 = vmul.f32 %v701, 1.442695
        %v724 = vpow.pop %v723
        %v725 = vmul.f32 %v702, 1.442695
        %v726 = vpow.pop %v725
        %v727 = vadd.f32 %v704, 1.0
        %v728 = vadd.f32 %v706, 1.0
        %v729 = vadd.f32 %v708, 1.0
        %v730 = vadd.f32 %v710, 1.0
        %v731 = vadd.f32 %v712, 1.0
        %v732 = vadd.f32 %v714, 1.0
        %v733 = vadd.f32 %v716, 1.0
        %v734 = vadd.f32 %v718, 1.0
        %v735 = vadd.f32 %v720, 1.0
        %v736 = vadd.f32 %v722, 1.0
        %v737 = vadd.f32 %v724, 1.0
        %v738 = vadd.f32 %v726, 1.0
        %v739 = vrcp.pop %v727
        %v740 = vmul.f32 1.0, %v739
        %v741 = vrcp.pop %v728
        %v742 = vmul.f32 1.0, %v741
        %v743 = vrcp.pop %v729
        %v744 = vmul.f32 1.0, %v743
        %v745 = vrcp.pop %v730
        %v746 = vmul.f32 1.0, %v745
        %v747 = vrcp.pop %v731
        %v748 = vmul.f32 1.0, %v747
        %v749 = vrcp.pop %v732
        %v750 = vmul.f32 1.0, %v749
        %v751 = vrcp.pop %v733
        %v752 = vmul.f32 1.0, %v751
        %v753 = vrcp.pop %v734
        %v754 = vmul.f32 1.0, %v753
        %v755 = vrcp.pop %v735
        %v756 = vmul.f32 1.0, %v755
        %v757 = vrcp.pop %v736
        %v758 = vmul.f32 1.0, %v757
        %v759 = vrcp.pop %v737
        %v760 = vmul.f32 1.0, %v759
        %v761 = vrcp.pop %v738
        %v762 = vmul.f32 1.0, %v761
        %v763 = vmul.f32 %v612, %v740
        %v764 = vmul.f32 %v614, %v742
        %v765 = vmul.f32 %v663, %v744
        %v766 = vmul.f32 %v665, %v746
        %v767 = vmul.f32 %v616, %v748
        %v768 = vmul.f32 %v618, %v750
        %v769 = vmul.f32 %v667, %v752
        %v770 = vmul.f32 %v669, %v754
        %v771 = vmul.f32 %v622, %v756
        %v772 = vmul.f32 %v624, %v758
        %v773 = vmul.f32 %v673, %v760
        %v774 = vmul.f32 %v675, %v762
        %775 = vst [vmem:[%s270] sm:$0xff] %v763
        %776 = vst [vmem:[%s270 + $0x8] sm:$0xff] %v764
        %777 = vst [vmem:[%s270 + $0x10] sm:$0xff] %v765
        %778 = vst [vmem:[%s270 + $0x18] sm:$0xff] %v766
        %779 = vst [vmem:[%s270 + $0x20] sm:$0xff] %v767
        %780 = vst [vmem:[%s270 + $0x28] sm:$0xff] %v768
        %781 = vst [vmem:[%s270 + $0x30] sm:$0xff] %v769
        %782 = vst [vmem:[%s270 + $0x38] sm:$0xff] %v770
        %783 = vst [vmem:[%s270 + $0x40] sm:$0xff] %v771
        %784 = vst [vmem:[%s270 + $0x48] sm:$0xff] %v772
        %785 = vst [vmem:[%s270 + $0x50] sm:$0xff] %v773
        %786 = vst [vmem:[%s270 + $0x58] sm:$0xff] %v774
        %s787 = sand.u32 %s158, 1
        %s788 = sand.u32 %s158, 1
        %s789 = smul.addr %s788, 96
        %s790 = scalar_lea.vmem [#allocation2], %s789
        // Predicated region
        $region41: #{encode_image.16} parent=39 // pred_check
          %p791 = pneg %p168
        $region42: #{encode_image.16} parent=39 // pred_check_branch
          %793 = sbr.rel (%p791) target = $region44
        $region43: #{encode_image.16} parent=39 // pred_region
          %s794 = smul.u32 3, %s20
          %s795 = smul.u32 4, %s21
          %s796 = ssub.s32 5, %s794
          %p797 = scmp.lt.s32.totalorder %s796, 3
          %s798 = scalar_select %p797, %s796, 3
          %s799 = smul.u32 128, %s798
          %s800 = smul.u32 %s799, 4
          %p801 = scmp.ne.s32.totalorder 0, %s800
          %s802 = smul.addr %s794, 4
          %s803 = sadd.s32 %s795, %s802
          %s804 = smul.addr %s803, 8
          %s805 = scalar_lea.vmem %s5, %s804
          // Predicated region
          $region45: #{encode_image.16} parent=43 // pred_check
            %p806 = pneg %p801
          $region46: #{encode_image.16} parent=43 // pred_check_branch
            %808 = sbr.rel (%p806) target = $region48
          $region47: #{encode_image.16} parent=43 // pred_region
            // Predicated region
            $region49: #{encode_image.16} parent=47 // pred_check
              _
            $region50: #{encode_image.16} parent=47 // pred_check_branch
              %810 = sbr.rel (0) target = $region52
            $region51: #{encode_image.16} parent=47 // pred_region
              %s811 = sdiv.u32.pop %s798, 3
              %s812 = srem.u32.pop %s798, 3
              // While loop
              $region53: #{encode_image.16} parent=51 // loop_pre_header
                _
              $region54: #{encode_image.16} parent=51 // loop_header
                %s814 = sphi 0, %s816
                %p815 = scmp.ge.s32.totalorder %s814, %s811
                %s819 = sphi 0, %s848
                %s820 = sphi %s790, %s851
                %s821 = sphi %s805, %s852
              $region55: #{encode_image.16} parent=51 // loop_header_branch
                %818 = sbr.rel (%p815) target = $region59
              $region56: #{encode_image.16} parent=51 // loop_body
                %v822 = vld [vmem:[%s820] sm:$0xff]
                %823 = vst [vmem:[%s821] sm:$0xff] %v822
                %v824 = vld [vmem:[%s820 + $0x20] sm:$0xff]
                %825 = vst [vmem:[%s821 + $0x20] sm:$0xff] %v824
                %v826 = vld [vmem:[%s820 + $0x40] sm:$0xff]
                %827 = vst [vmem:[%s821 + $0x40] sm:$0xff] %v826
                %v828 = vld [vmem:[%s820 + $0x8] sm:$0xff]
                %829 = vst [vmem:[%s821 + $0x8] sm:$0xff] %v828
                %v830 = vld [vmem:[%s820 + $0x28] sm:$0xff]
                %831 = vst [vmem:[%s821 + $0x28] sm:$0xff] %v830
                %v832 = vld [vmem:[%s820 + $0x48] sm:$0xff]
                %833 = vst [vmem:[%s821 + $0x48] sm:$0xff] %v832
                %v834 = vld [vmem:[%s820 + $0x10] sm:$0xff]
                %835 = vst [vmem:[%s821 + $0x10] sm:$0xff] %v834
                %v836 = vld [vmem:[%s820 + $0x30] sm:$0xff]
                %837 = vst [vmem:[%s821 + $0x30] sm:$0xff] %v836
                %v838 = vld [vmem:[%s820 + $0x50] sm:$0xff]
                %839 = vst [vmem:[%s821 + $0x50] sm:$0xff] %v838
                %v840 = vld [vmem:[%s820 + $0x18] sm:$0xff]
                %841 = vst [vmem:[%s821 + $0x18] sm:$0xff] %v840
                %v842 = vld [vmem:[%s820 + $0x38] sm:$0xff]
                %843 = vst [vmem:[%s821 + $0x38] sm:$0xff] %v842
                %v844 = vld [vmem:[%s820 + $0x58] sm:$0xff]
                %845 = vst [vmem:[%s821 + $0x58] sm:$0xff] %v844
                %s846 = sadd.s32 1, %s819
                %p847 = scmp.ge.s32.totalorder %s846, %s811
                %s848 = scalar_select %p847, 0, %s846
                %s849 = smul.u32 %s848, 96
                %s850 = smul.u32 %s848, 96
                %s851 = scalar_lea.vmem %s790, %s849 [#allocation2]
                %s852 = scalar_lea.vmem %s805, %s850
              $region57: #{encode_image.16} parent=51 // loop_footer
                %s816 = sadd.s32 %s814, 1
              $region58: #{encode_image.16} parent=51 // loop_footer_branch
                %813 = sbr.rel target = $region54
              $region59: #{encode_image.16} parent=51 // loop_exit
                _
              %s853 = sdiv.u32.pop %s798, 3
              %s854 = srem.u32.pop %s798, 3
              %s855 = smul.u32 %s853, 3
              %s856 = smul.u32 32, %s855
              %s857 = scalar_lea.vmem %s790, %s856 [#allocation2]
              %s858 = smul.u32 32, %s855
              %s859 = scalar_lea.vmem %s805, %s858
              // While loop
              $region60: #{encode_image.16} parent=51 // loop_pre_header
                _
              $region61: #{encode_image.16} parent=51 // loop_header
                %s861 = sphi 0, %s863
                %p862 = scmp.ge.s32.totalorder %s861, %s854
                %s866 = sphi 0, %s879
                %s867 = sphi %s857, %s882
                %s868 = sphi %s859, %s883
              $region62: #{encode_image.16} parent=51 // loop_header_branch
                %865 = sbr.rel (%p862) target = $region66
              $region63: #{encode_image.16} parent=51 // loop_body
                %v869 = vld [vmem:[%s867] sm:$0xff]
                %870 = vst [vmem:[%s868] sm:$0xff] %v869
                %v871 = vld [vmem:[%s867 + $0x8] sm:$0xff]
                %872 = vst [vmem:[%s868 + $0x8] sm:$0xff] %v871
                %v873 = vld [vmem:[%s867 + $0x10] sm:$0xff]
                %874 = vst [vmem:[%s868 + $0x10] sm:$0xff] %v873
                %v875 = vld [vmem:[%s867 + $0x18] sm:$0xff]
                %876 = vst [vmem:[%s868 + $0x18] sm:$0xff] %v875
                %s877 = sadd.s32 1, %s866
                %p878 = scmp.ge.s32.totalorder %s877, %s854
                %s879 = scalar_select %p878, 0, %s877
                %s880 = smul.u32 %s879, 32
                %s881 = smul.u32 %s879, 32
                %s882 = scalar_lea.vmem %s857, %s880 [#allocation2]
                %s883 = scalar_lea.vmem %s859, %s881
              $region64: #{encode_image.16} parent=51 // loop_footer
                %s863 = sadd.s32 %s861, 1
              $region65: #{encode_image.16} parent=51 // loop_footer_branch
                %860 = sbr.rel target = $region61
              $region66: #{encode_image.16} parent=51 // loop_exit
                _
            $region52: #{encode_image.16} parent=47 // pred_fallthru
              _
            // Predicated region
            $region67: #{encode_image.16} parent=47 // pred_check
              _
            $region68: #{encode_image.16} parent=47 // pred_check_branch
              %885 = sbr.rel target = $region70
            $region69: #{encode_image.16} parent=47 // pred_region
              _
            $region70: #{encode_image.16} parent=47 // pred_fallthru
              _
          $region48: #{encode_image.16} parent=43 // pred_fallthru
            _
          %886 = vnop
        $region44: #{encode_image.16} parent=39 // pred_fallthru
          _
      $region40: #{encode_image.16} parent=5 // pred_fallthru
        _
      %p887 = scmp.le.s32.totalorder 2, %s11
      // Predicated region
      $region71: #{encode_image.16} parent=5 // pred_check
        %p888 = pneg %p887
      $region72: #{encode_image.16} parent=5 // pred_check_branch
        %890 = sbr.rel (%p888) target = $region74
      $region73: #{encode_image.16} parent=5 // pred_region
        %s891 = ssub.s32 %s11, 2
        // Predicated region
        $region75: #{encode_image.16} parent=73 // pred_check
          %p892 = pneg %p174
        $region76: #{encode_image.16} parent=73 // pred_check_branch
          %894 = sbr.rel (%p892) target = $region78
        $region77: #{encode_image.16} parent=73 // pred_region
          %s895 = sand.u32 %s159, 1
          %s896 = sand.u32 %s159, 1
          %s897 = smul.addr %s896, 96
          %s898 = scalar_lea.vmem [#allocation2], %s897
        $region78: #{encode_image.16} parent=73 // pred_fallthru
          _
      $region74: #{encode_image.16} parent=5 // pred_fallthru
        _
    $region6: #{encode_image.16} parent=1 // loop_footer
      %s15 = sadd.s32 1, %s11
    $region7: #{encode_image.16} parent=1 // loop_footer_branch
      %10 = sbr.rel target = $region3
    $region8: #{encode_image.16} parent=1 // loop_exit
      _

// kernel: encode_image.17
$region0: #{encode_image.17}
  #allocation0 [shape = 'u32[]', space=smem, size = 0x4, offset = 0x4, fixed_abs, tag = 'smem constant byte address 0x4 - core index']
  #allocation1 [shape = 'u32[144,128]{1,0:T(1,128)}', space=vmem, size = 0x12000, scoped, tag = 'internal scratch']
  #allocation2 [shape = 'f32[24,128]{1,0:T(8,128)}', space=vmem, size = 0x3000, scoped, tag = 'scratch operand']
  %s0 = inlined_call_operand.vmem [shape: f32[34,512], index: 0, kind: input, shape index: {}]
  %s1 = inlined_call_operand.vmem [shape: bf16[512,128], index: 1, kind: input, shape index: {}]
  %s2 = inlined_call_operand.vmem [shape: f32[1,128], index: 2, kind: input, shape index: {}]
  %s3 = inlined_call_operand.vmem [shape: f32[34,128], index: 3, kind: input, shape index: {}]
  %s4 = inlined_call_operand.vmem [shape: f32[34,128], index: 4, kind: output, shape index: {}]
  %s5 = sld [smem:[#allocation0]]
  $region105: #{encode_image.17} parent=0
    _
  %s7 = ssub.s32 1, %s5
  %s8 = scalar_select 0, %s7, %s5
  $region1: #{encode_image.17} parent=0
    #allocation3 [shape = 'u8[24576]{0}', space=vmem, size = 0x6000, scoped, tag = 'output window, operand 0']
    loop: start=0, step=1, limit=4
    $region2: #{encode_image.17} parent=1 // loop_pre_header
      _
    $region3: #{encode_image.17} parent=1 // loop_header
      %s10 = sphi 0, %s14
      %p11 = scmp.ge.s32.totalorder %s10, 4
      %s17 = sphi 0, %s36
      %s18 = sphi 0, %s32
      %s19 = sphi 0, %s28
      %s20 = sphi 0, %s17
      %s21 = sphi 0, %s18
      %s22 = sphi 0, %s19
      %s23 = sphi 0, %s20
      %s24 = sphi 0, %s21
      %s25 = sphi 0, %s22
      %s41 = sphi 0, %s43
      %s44 = sphi 0, %s41
      %s45 = sphi 0, %s44
      %s61 = sphi 0, %s45
      %s69 = sphi 0, %s71
      %s72 = sphi 0, %s69
      %s73 = sphi 0, %s72
      %s89 = sphi 0, %s73
      %s95 = sphi 0, %s97
      %s98 = sphi 0, %s95
      %s99 = sphi 0, %s98
      %s115 = sphi 0, %s99
      %s123 = sphi 0, %s125
      %s126 = sphi 0, %s123
      %s127 = sphi 0, %s126
      %s143 = sphi 0, %s127
      %s151 = sphi 0, %s153
      %s154 = sphi 0, %s151
      %s155 = sphi 0, %s154
      %s171 = sphi 0, %s155
    $region4: #{encode_image.17} parent=1 // loop_header_branch
      %13 = sbr.rel (%p11) target = $region8
    $region5: #{encode_image.17} parent=1 // loop_body
      %s15 = ssub.s32 %s10, 1
      %s16 = ssub.s32 %s10, 2
      %s26 = sadd.s32 1, %s19
      %p27 = scmp.ge.s32.totalorder %s26, 1
      %s28 = scalar_select %p27, 0, %s26
      %s29 = sadd.s32 1, %s18
      %s30 = scalar_select %p27, %s29, %s18
      %p31 = scmp.ge.s32.totalorder %s30, 1
      %s32 = scalar_select %p31, 0, %s30
      %s33 = sadd.s32 1, %s17
      %s34 = scalar_select %p31, %s33, %s17
      %p35 = scmp.ge.s32.totalorder %s34, 2
      %s36 = scalar_select %p35, 0, %s34
      %s37 = ssub.s32 %s17, %s36
      %s38 = ssub.s32 %s19, %s28
      %s39 = sor.u32 %s37, %s38
      %p40 = scmp.eq.s32.totalorder %s39, 0
      %s42 = sadd.s32 %s41, 1
      %s43 = scalar_select %p40, %s41, %s42
      %p46 = pneg %p40
      %p47 = scmp.eq.s32.totalorder %s10, 1
      %p48 = por %p46, %p47
      %p49 = scmp.ne.s32.totalorder %s41, %s44
      %p50 = scmp.eq.s32.totalorder %s10, 0
      %p51 = por %p49, %p50
      %p52 = scmp.ne.s32.totalorder %s41, %s44
      %p53 = scmp.eq.s32.totalorder %s15, 1
      %p54 = por %p52, %p53
      %p55 = scmp.ne.s32.totalorder %s44, %s45
      %p56 = scmp.eq.s32.totalorder %s15, 0
      %p57 = por %p55, %p56
      %p58 = scmp.ne.s32.totalorder %s44, %s45
      %p59 = scmp.eq.s32.totalorder %s16, 1
      %p60 = por %p58, %p59
      %p62 = scmp.ne.s32.totalorder %s45, %s61
      %p63 = scmp.eq.s32.totalorder %s16, 0
      %p64 = por %p62, %p63
      %s65 = ssub.s32 %s19, %s28
      %s66 = ssub.s32 %s18, %s32
      %s67 = sor.u32 %s65, %s66
      %p68 = scmp.eq.s32.totalorder %s67, 0
      %s70 = sadd.s32 %s69, 1
      %s71 = scalar_select %p68, %s69, %s70
      %p74 = pneg %p68
      %p75 = scmp.eq.s32.totalorder %s10, 1
      %p76 = por %p74, %p75
      %p77 = scmp.ne.s32.totalorder %s69, %s72
      %p78 = scmp.eq.s32.totalorder %s10, 0
      %p79 = por %p77, %p78
      %p80 = scmp.ne.s32.totalorder %s69, %s72
      %p81 = scmp.eq.s32.totalorder %s15, 1
      %p82 = por %p80, %p81
      %p83 = scmp.ne.s32.totalorder %s72, %s73
      %p84 = scmp.eq.s32.totalorder %s15, 0
      %p85 = por %p83, %p84
      %p86 = scmp.ne.s32.totalorder %s72, %s73
      %p87 = scmp.eq.s32.totalorder %s16, 1
      %p88 = por %p86, %p87
      %p90 = scmp.ne.s32.totalorder %s73, %s89
      %p91 = scmp.eq.s32.totalorder %s16, 0
      %p92 = por %p90, %p91
      %s93 = ssub.s32 %s18, %s32
      %p94 = scmp.eq.s32.totalorder %s93, 0
      %s96 = sadd.s32 %s95, 1
      %s97 = scalar_select %p94, %s95, %s96
      %p100 = pneg %p94
      %p101 = scmp.eq.s32.totalorder %s10, 1
      %p102 = por %p100, %p101
      %p103 = scmp.ne.s32.totalorder %s95, %s98
      %p104 = scmp.eq.s32.totalorder %s10, 0
      %p105 = por %p103, %p104
      %p106 = scmp.ne.s32.totalorder %s95, %s98
      %p107 = scmp.eq.s32.totalorder %s15, 1
      %p108 = por %p106, %p107
      %p109 = scmp.ne.s32.totalorder %s98, %s99
      %p110 = scmp.eq.s32.totalorder %s15, 0
      %p111 = por %p109, %p110
      %p112 = scmp.ne.s32.totalorder %s98, %s99
      %p113 = scmp.eq.s32.totalorder %s16, 1
      %p114 = por %p112, %p113
      %p116 = scmp.ne.s32.totalorder %s99, %s115
      %p117 = scmp.eq.s32.totalorder %s16, 0
      %p118 = por %p116, %p117
      %s119 = ssub.s32 %s17, %s36
      %s120 = ssub.s32 %s18, %s32
      %s121 = sor.u32 %s119, %s120
      %p122 = scmp.eq.s32.totalorder %s121, 0
      %s124 = sadd.s32 %s123, 1
      %s125 = scalar_select %p122, %s123, %s124
      %p128 = pneg %p122
      %p129 = scmp.eq.s32.totalorder %s10, 1
      %p130 = por %p128, %p129
      %p131 = scmp.ne.s32.totalorder %s123, %s126
      %p132 = scmp.eq.s32.totalorder %s10, 0
      %p133 = por %p131, %p132
      %p134 = scmp.ne.s32.totalorder %s123, %s126
      %p135 = scmp.eq.s32.totalorder %s15, 1
      %p136 = por %p134, %p135
      %p137 = scmp.ne.s32.totalorder %s126, %s127
      %p138 = scmp.eq.s32.totalorder %s15, 0
      %p139 = por %p137, %p138
      %p140 = scmp.ne.s32.totalorder %s126, %s127
      %p141 = scmp.eq.s32.totalorder %s16, 1
      %p142 = por %p140, %p141
      %p144 = scmp.ne.s32.totalorder %s127, %s143
      %p145 = scmp.eq.s32.totalorder %s16, 0
      %p146 = por %p144, %p145
      %s147 = ssub.s32 %s17, %s36
      %s148 = ssub.s32 %s18, %s32
      %s149 = sor.u32 %s147, %s148
      %p150 = scmp.eq.s32.totalorder %s149, 0
      %s152 = sadd.s32 %s151, 1
      %s153 = scalar_select %p150, %s151, %s152
      %p156 = pneg %p150
      %p157 = scmp.eq.s32.totalorder %s10, 1
      %p158 = por %p156, %p157
      %p159 = scmp.ne.s32.totalorder %s151, %s154
      %p160 = scmp.eq.s32.totalorder %s10, 0
      %p161 = por %p159, %p160
      %p162 = scmp.ne.s32.totalorder %s151, %s154
      %p163 = scmp.eq.s32.totalorder %s15, 1
      %p164 = por %p162, %p163
      %p165 = scmp.ne.s32.totalorder %s154, %s155
      %p166 = scmp.eq.s32.totalorder %s15, 0
      %p167 = por %p165, %p166
      %p168 = scmp.ne.s32.totalorder %s154, %s155
      %p169 = scmp.eq.s32.totalorder %s16, 1
      %p170 = por %p168, %p169
      %p172 = scmp.ne.s32.totalorder %s155, %s171
      %p173 = scmp.eq.s32.totalorder %s16, 0
      %p174 = por %p172, %p173
      %p175 = scmp.le.s32.totalorder 1, %s10
      %p176 = scmp.lt.s32.totalorder %s10, 3
      %p177 = pnand %p175, %p176
      %p178 = pneg %p177
      // Predicated region
      $region9: #{encode_image.17} parent=5 // pred_check
        _
      $region10: #{encode_image.17} parent=5 // pred_check_branch
        %180 = sbr.rel (%p177) target = $region12
      $region11: #{encode_image.17} parent=5 // pred_region
        %s181 = ssub.s32 %s10, 1
        // Predicated region
        $region13: #{encode_image.17} parent=11 // pred_check
          %p182 = pneg %p85
        $region14: #{encode_image.17} parent=11 // pred_check_branch
          %184 = sbr.rel (%p182) target = $region16
        $region15: #{encode_image.17} parent=11 // pred_region
          %s185 = smul.u32 64, %s22
          %p186 = scmp.lt.s32.totalorder %s185, 63
          %s187 = scalar_select %p186, %s185, 63
          %p188 = scmp.lt.s32.totalorder %s21, 0
          %s189 = scalar_select %p188, %s21, 0
          %s190 = sadd.s32 %s189, %s187
          %s191 = smul.addr %s190, 4
          %s192 = scalar_lea.vmem %s1, %s191
          %s193 = smul.u32 64, %s22
        $region16: #{encode_image.17} parent=11 // pred_fallthru
          _
        // Predicated region
        $region17: #{encode_image.17} parent=11 // pred_check
          %p194 = pneg %p111
        $region18: #{encode_image.17} parent=11 // pred_check_branch
          %196 = sbr.rel (%p194) target = $region20
        $region19: #{encode_image.17} parent=11 // pred_region
          %p197 = scmp.lt.s32.totalorder %s21, 0
          %s198 = scalar_select %p197, %s21, 0
          %s199 = scalar_lea.vmem %s2, %s198
        $region20: #{encode_image.17} parent=11 // pred_fallthru
          _
      $region12: #{encode_image.17} parent=5 // pred_fallthru
        _
      %p200 = scmp.lt.s32.totalorder %s10, 2
      // Predicated region
      $region21: #{encode_image.17} parent=5 // pred_check
        %p201 = pneg %p200
      $region22: #{encode_image.17} parent=5 // pred_check_branch
        %203 = sbr.rel (%p201) target = $region24
      $region23: #{encode_image.17} parent=5 // pred_region
        // Predicated region
        $region25: #{encode_image.17} parent=23 // pred_check
          %p204 = pneg %p51
        $region26: #{encode_image.17} parent=23 // pred_check_branch
          %206 = sbr.rel (%p204) target = $region28
        $region27: #{encode_image.17} parent=23 // pred_region
          %s207 = smul.u32 3, %s17
          %s208 = smul.u32 4, %s19
          %s209 = ssub.s32 5, %s207
          %p210 = scmp.lt.s32.totalorder %s209, 3
          %s211 = scalar_select %p210, %s209, 3
          %s212 = smul.u32 128, %s211
          %s213 = smul.u32 %s212, 4
          %p214 = scmp.lt.s32.totalorder %s207, 4
          %s215 = scalar_select %p214, %s207, 4
          %p216 = scmp.lt.s32.totalorder %s208, 3
          %s217 = scalar_select %p216, %s208, 3
          %s218 = smul.addr %s215, 4
          %s219 = sadd.s32 %s217, %s218
          %s220 = smul.addr %s219, 8
          %s221 = scalar_lea.vmem %s0, %s220
          %s222 = smul.u32 3, %s17
          %s223 = smul.u32 4, %s19
          %s224 = ssub.s32 5, %s222
          %p225 = scmp.lt.s32.totalorder %s224, 3
          %s226 = scalar_select %p225, %s224, 3
          %s227 = smul.u32 128, %s226
          %s228 = smul.u32 %s227, 4
        $region28: #{encode_image.17} parent=23 // pred_fallthru
          _
        // Predicated region
        $region29: #{encode_image.17} parent=23 // pred_check
          %p229 = pneg %p133
        $region30: #{encode_image.17} parent=23 // pred_check_branch
          %231 = sbr.rel (%p229) target = $region32
        $region31: #{encode_image.17} parent=23 // pred_region
          %s232 = smul.u32 3, %s17
          %s233 = ssub.s32 5, %s232
          %p234 = scmp.lt.s32.totalorder %s233, 3
          %s235 = scalar_select %p234, %s233, 3
          %s236 = smul.u32 128, %s235
          %p237 = scmp.lt.s32.totalorder %s232, 4
          %s238 = scalar_select %p237, %s232, 4
          %p239 = scmp.lt.s32.totalorder %s18, 0
          %s240 = scalar_select %p239, %s18, 0
          %s241 = sadd.s32 %s240, %s238
          %s242 = smul.addr %s241, 8
          %s243 = scalar_lea.vmem %s3, %s242
          %s244 = smul.u32 3, %s17
          %s245 = ssub.s32 5, %s244
          %p246 = scmp.lt.s32.totalorder %s245, 3
          %s247 = scalar_select %p246, %s245, 3
          %s248 = smul.u32 128, %s247
        $region32: #{encode_image.17} parent=23 // pred_fallthru
          _
      $region24: #{encode_image.17} parent=5 // pred_fallthru
        _
      %p249 = scmp.le.s32.totalorder 1, %s10
      %p250 = scmp.lt.s32.totalorder %s10, 3
      %p251 = pnand %p249, %p250
      %p252 = pneg %p251
      // Predicated region
      $region33: #{encode_image.17} parent=5 // pred_check
        _
      $region34: #{encode_image.17} parent=5 // pred_check_branch
        %254 = sbr.rel (%p251) target = $region36
      $region35: #{encode_image.17} parent=5 // pred_region
        %s255 = ssub.s32 %s10, 1
        %s256 = smul.u32 3, %s20
        %s257 = smul.u32 4, %s22
        %s258 = ssub.s32 5, %s256
        %p259 = scmp.lt.s32.totalorder %s258, 3
        %s260 = scalar_select %p259, %s258, 3
        %s261 = smul.u32 128, %s260
        %s262 = smul.u32 %s261, 4
        %p263 = scmp.lt.s32.totalorder %s256, 4
        %s264 = scalar_select %p263, %s256, 4
        %p265 = scmp.lt.s32.totalorder %s257, 3
        %s266 = scalar_select %p265, %s257, 3
        %s267 = smul.addr %s264, 4
        %s268 = sadd.s32 %s266, %s267
        %s269 = smul.addr %s268, 8
        %s270 = scalar_lea.vmem %s0, %s269
        %p271 = pneg %p57
        %p272 = pneg %p54
        %s273 = smul.u32 64, %s22
        %p274 = scmp.lt.s32.totalorder %s273, 63
        %s275 = scalar_select %p274, %s273, 63
        %p276 = scmp.lt.s32.totalorder %s21, 0
        %s277 = scalar_select %p276, %s21, 0
        %s278 = sadd.s32 %s277, %s275
        %s279 = smul.addr %s278, 4
        %s280 = scalar_lea.vmem %s1, %s279
        %p281 = pneg %p85
        %p282 = pneg %p82
        %p283 = scmp.lt.s32.totalorder %s21, 0
        %s284 = scalar_select %p283, %s21, 0
        %s285 = scalar_lea.vmem %s2, %s284
        %p286 = pneg %p111
        %p287 = pneg %p108
        %s288 = smul.u32 3, %s20
        %s289 = ssub.s32 5, %s288
        %p290 = scmp.lt.s32.totalorder %s289, 3
        %s291 = scalar_select %p290, %s289, 3
        %s292 = smul.u32 128, %s291
        %p293 = scmp.lt.s32.totalorder %s288, 4
        %s294 = scalar_select %p293, %s288, 4
        %p295 = scmp.lt.s32.totalorder %s21, 0
        %s296 = scalar_select %p295, %s21, 0
        %s297 = sadd.s32 %s296, %s294
        %s298 = smul.addr %s297, 8
        %s299 = scalar_lea.vmem %s3, %s298
        %p300 = pneg %p139
        %p301 = pneg %p136
        %p302 = pneg %p167
        %p303 = pneg %p164
        %s304 = sand.u32 %s154, 1
        %s305 = sand.u32 %s154, 1
        %s306 = smul.addr %s305, 24
        %s307 = scalar_lea.vmem [#allocation3], %s306
        %s308 = smul.u32 3, %s20
        %s309 = smul.u32 4, %s22
        %s310 = ssub.s32 5, %s308
        %p311 = scmp.lt.s32.totalorder %s310, 3
        %s312 = scalar_select %p311, %s310, 3
        %s313 = smul.u32 128, %s312
        %s314 = smul.u32 %s313, 4
        %p315 = scmp.lt.s32.totalorder %s308, 4
        %s316 = scalar_select %p315, %s308, 4
        %p317 = scmp.lt.s32.totalorder %s309, 3
        %s318 = scalar_select %p317, %s309, 3
        %s319 = smul.addr %s316, 4
        %s320 = sadd.s32 %s318, %s319
        %s321 = smul.addr %s320, 8
        %s322 = scalar_lea.vmem %s0, %s321
        %s323 = smul.u32 3, %s20
        %s324 = smul.u32 4, %s22
        %s325 = ssub.s32 5, %s323
        %p326 = scmp.lt.s32.totalorder %s325, 3
        %s327 = scalar_select %p326, %s325, 3
        %s328 = smul.u32 128, %s327
        %s329 = smul.u32 %s328, 4
        %s330 = smul.u32 64, %s22
        %p331 = scmp.lt.s32.totalorder %s330, 63
        %s332 = scalar_select %p331, %s330, 63
        %p333 = scmp.lt.s32.totalorder %s21, 0
        %s334 = scalar_select %p333, %s21, 0
        %s335 = sadd.s32 %s334, %s332
        %s336 = smul.addr %s335, 4
        %s337 = scalar_lea.vmem %s1, %s336
        %s338 = smul.u32 64, %s22
        %p339 = scmp.lt.s32.totalorder %s21, 0
        %s340 = scalar_select %p339, %s21, 0
        %s341 = scalar_lea.vmem %s2, %s340
        %s342 = smul.u32 3, %s20
        %s343 = ssub.s32 5, %s342
        %p344 = scmp.lt.s32.totalorder %s343, 3
        %s345 = scalar_select %p344, %s343, 3
        %s346 = smul.u32 128, %s345
        %p347 = scmp.lt.s32.totalorder %s342, 4
        %s348 = scalar_select %p347, %s342, 4
        %p349 = scmp.lt.s32.totalorder %s21, 0
        %s350 = scalar_select %p349, %s21, 0
        %s351 = sadd.s32 %s350, %s348
        %s352 = smul.addr %s351, 8
        %s353 = scalar_lea.vmem %s3, %s352
        %s354 = smul.u32 3, %s20
        %s355 = ssub.s32 5, %s354
        %p356 = scmp.lt.s32.totalorder %s355, 3
        %s357 = scalar_select %p356, %s355, 3
        %s358 = smul.u32 128, %s357
        %s359 = smul.u32 3, %s20
        %s360 = ssub.s32 5, %s359
        %p361 = scmp.lt.s32.totalorder %s360, 3
        %s362 = scalar_select %p361, %s360, 3
        %s363 = smul.u32 128, %s362
        %p365 = scmp.eq.s32.totalorder %s22, 0
        // Predicated region
        $region37: #{encode_image.17} parent=35 // pred_check
          %p366 = pneg %p365
        $region38: #{encode_image.17} parent=35 // pred_check_branch
          %368 = sbr.rel (%p366) target = $region40
        $region39: #{encode_image.17} parent=35 // pred_region
          %369 = vst [vmem:[#allocation2] sm:$0xff] 0.0
          %370 = vst [vmem:[#allocation2 + $0x8] sm:$0xff] 0.0
          %371 = vst [vmem:[#allocation2 + $0x10] sm:$0xff] 0.0
        $region40: #{encode_image.17} parent=35 // pred_fallthru
          _
        %v372 = vld [vmem:[#allocation2] sm:$0xff]
        %v373 = vld [vmem:[#allocation2 + $0x8] sm:$0xff]
        %v374 = vld [vmem:[#allocation2 + $0x10] sm:$0xff]
        %v375 = vld [vmem:[%s322] sm:$0xff]
        %v376 = vld [vmem:[%s322 + $0x8] sm:$0xff]
        %v377 = vld [vmem:[%s322 + $0x10] sm:$0xff]
        %v378 = vld [vmem:[%s322 + $0x18] sm:$0xff]
        %v379 = vld [vmem:[%s322 + $0x20] sm:$0xff]
        %v380 = vld [vmem:[%s322 + $0x28] sm:$0xff]
        %v381 = vld [vmem:[%s322 + $0x30] sm:$0xff]
        %v382 = vld [vmem:[%s322 + $0x38] sm:$0xff]
        %v383 = vld [vmem:[%s322 + $0x40] sm:$0xff]
        %v384 = vld [vmem:[%s322 + $0x48] sm:$0xff]
        %v385 = vld [vmem:[%s322 + $0x50] sm:$0xff]
        %v386 = vld [vmem:[%s322 + $0x58] sm:$0xff]
        %v387 = vpack.c.bf16 %v379, %v375
        %v388 = vpack.c.bf16 %v380, %v376
        %v389 = vpack.c.bf16 %v381, %v377
        %v390 = vpack.c.bf16 %v382, %v378
        %v391 = vpack.c.bf16 %v383, %v383
        %v392 = vpack.c.bf16 %v384, %v384
        %v393 = vpack.c.bf16 %v385, %v385
        %v394 = vpack.c.bf16 %v386, %v386
        %v395 = vld [vmem:[%s337] sm:$0xf]
        %v396 = vld [vmem:[%s337 + $0x4] sm:$0xf]
        %v397 = vld [vmem:[%s337 + $0x8] sm:$0xf]
        %v398 = vld [vmem:[%s337 + $0xc] sm:$0xf]
        %v399 = vld [vmem:[%s337 + $0x10] sm:$0xf]
        %v400 = vld [vmem:[%s337 + $0x14] sm:$0xf]
        %v401 = vld [vmem:[%s337 + $0x18] sm:$0xf]
        %v402 = vld [vmem:[%s337 + $0x1c] sm:$0xf]
        %v403 = vld [vmem:[%s337 + $0x20] sm:$0xf]
        %v404 = vld [vmem:[%s337 + $0x24] sm:$0xf]
        %v405 = vld [vmem:[%s337 + $0x28] sm:$0xf]
        %v406 = vld [vmem:[%s337 + $0x2c] sm:$0xf]
        %v407 = vld [vmem:[%s337 + $0x30] sm:$0xf]
        %v408 = vld [vmem:[%s337 + $0x34] sm:$0xf]
        %v409 = vld [vmem:[%s337 + $0x38] sm:$0xf]
        %v410 = vld [vmem:[%s337 + $0x3c] sm:$0xf]
        %v411 = vld [vmem:[%s337 + $0x40] sm:$0xf]
        %v412 = vld [vmem:[%s337 + $0x44] sm:$0xf]
        %v413 = vld [vmem:[%s337 + $0x48] sm:$0xf]
        %v414 = vld [vmem:[%s337 + $0x4c] sm:$0xf]
        %v415 = vld [vmem:[%s337 + $0x50] sm:$0xf]
        %v416 = vld [vmem:[%s337 + $0x54] sm:$0xf]
        %v417 = vld [vmem:[%s337 + $0x58] sm:$0xf]
        %v418 = vld [vmem:[%s337 + $0x5c] sm:$0xf]
        %v419 = vld [vmem:[%s337 + $0x60] sm:$0xf]
        %v420 = vld [vmem:[%s337 + $0x64] sm:$0xf]
        %v421 = vld [vmem:[%s337 + $0x68] sm:$0xf]
        %v422 = vld [vmem:[%s337 + $0x6c] sm:$0xf]
        %v423 = vld [vmem:[%s337 + $0x70] sm:$0xf]
        %v424 = vld [vmem:[%s337 + $0x74] sm:$0xf]
        %v425 = vld [vmem:[%s337 + $0x78] sm:$0xf]
        %v426 = vld [vmem:[%s337 + $0x7c] sm:$0xf]
        %v427 = vld [vmem:[%s337 + $0x80] sm:$0xf]
        %v428 = vld [vmem:[%s337 + $0x84] sm:$0xf]
        %v429 = vld [vmem:[%s337 + $0x88] sm:$0xf]
        %v430 = vld [vmem:[%s337 + $0x8c] sm:$0xf]
        %v431 = vld [vmem:[%s337 + $0x90] sm:$0xf]
        %v432 = vld [vmem:[%s337 + $0x94] sm:$0xf]
        %v433 = vld [vmem:[%s337 + $0x98] sm:$0xf]
        %v434 = vld [vmem:[%s337 + $0x9c] sm:$0xf]
        %v435 = vld [vmem:[%s337 + $0xa0] sm:$0xf]
        %v436 = vld [vmem:[%s337 + $0xa4] sm:$0xf]
        %v437 = vld [vmem:[%s337 + $0xa8] sm:$0xf]
        %v438 = vld [vmem:[%s337 + $0xac] sm:$0xf]
        %v439 = vld [vmem:[%s337 + $0xb0] sm:$0xf]
        %v440 = vld [vmem:[%s337 + $0xb4] sm:$0xf]
        %v441 = vld [vmem:[%s337 + $0xb8] sm:$0xf]
        %v442 = vld [vmem:[%s337 + $0xbc] sm:$0xf]
        %v443 = vld [vmem:[%s337 + $0xc0] sm:$0xf]
        %v444 = vld [vmem:[%s337 + $0xc4] sm:$0xf]
        %v445 = vld [vmem:[%s337 + $0xc8] sm:$0xf]
        %v446 = vld [vmem:[%s337 + $0xcc] sm:$0xf]
        %v447 = vld [vmem:[%s337 + $0xd0] sm:$0xf]
        %v448 = vld [vmem:[%s337 + $0xd4] sm:$0xf]
        %v449 = vld [vmem:[%s337 + $0xd8] sm:$0xf]
        %v450 = vld [vmem:[%s337 + $0xdc] sm:$0xf]
        %v451 = vld [vmem:[%s337 + $0xe0] sm:$0xf]
        %v452 = vld [vmem:[%s337 + $0xe4] sm:$0xf]
        %v453 = vld [vmem:[%s337 + $0xe8] sm:$0xf]
        %v454 = vld [vmem:[%s337 + $0xec] sm:$0xf]
        %v455 = vld [vmem:[%s337 + $0xf0] sm:$0xf]
        %v456 = vld [vmem:[%s337 + $0xf4] sm:$0xf]
        %v457 = vld [vmem:[%s337 + $0xf8] sm:$0xf]
        %v458 = vld [vmem:[%s337 + $0xfc] sm:$0xf]
        %v523 = vunpack.c.l.b16 %v395
        %v524 = vunpack.c.l.b16 %v396
        %v525 = vunpack.c.l.b16 %v397
        %v526 = vunpack.c.l.b16 %v398
        %v527 = vunpack.c.l.b16 %v399
        %v528 = vunpack.c.l.b16 %v400
        %v529 = vunpack.c.l.b16 %v401
        %v530 = vunpack.c.l.b16 %v402
        %v531 = vunpack.c.l.b16 %v403
        %v532 = vunpack.c.l.b16 %v404
        %v533 = vunpack.c.l.b16 %v405
        %v534 = vunpack.c.l.b16 %v406
        %v535 = vunpack.c.l.b16 %v407
        %v536 = vunpack.c.l.b16 %v408
        %v537 = vunpack.c.l.b16 %v409
        %v538 = vunpack.c.l.b16 %v410
        %v539 = vunpack.c.l.b16 %v411
        %v540 = vunpack.c.l.b16 %v412
        %v541 = vunpack.c.l.b16 %v413
        %v542 = vunpack.c.l.b16 %v414
        %v543 = vunpack.c.l.b16 %v415
        %v544 = vunpack.c.l.b16 %v416
        %v545 = vunpack.c.l.b16 %v417
        %v546 = vunpack.c.l.b16 %v418
        %v547 = vunpack.c.l.b16 %v419
        %v548 = vunpack.c.l.b16 %v420
        %v549 = vunpack.c.l.b16 %v421
        %v550 = vunpack.c.l.b16 %v422
        %v551 = vunpack.c.l.b16 %v423
        %v552 = vunpack.c.l.b16 %v424
        %v553 = vunpack.c.l.b16 %v425
        %v554 = vunpack.c.l.b16 %v426
        %v555 = vunpack.c.l.b16 %v427
        %v556 = vunpack.c.l.b16 %v428
        %v557 = vunpack.c.l.b16 %v429
        %v558 = vunpack.c.l.b16 %v430
        %v559 = vunpack.c.l.b16 %v431
        %v560 = vunpack.c.l.b16 %v432
        %v561 = vunpack.c.l.b16 %v433
        %v562 = vunpack.c.l.b16 %v434
        %v563 = vunpack.c.l.b16 %v435
        %v564 = vunpack.c.l.b16 %v436
        %v565 = vunpack.c.l.b16 %v437
        %v566 = vunpack.c.l.b16 %v438
        %v567 = vunpack.c.l.b16 %v439
        %v568 = vunpack.c.l.b16 %v440
        %v569 = vunpack.c.l.b16 %v441
        %v570 = vunpack.c.l.b16 %v442
        %v571 = vunpack.c.l.b16 %v443
        %v572 = vunpack.c.l.b16 %v444
        %v573 = vunpack.c.l.b16 %v445
        %v574 = vunpack.c.l.b16 %v446
        %v575 = vunpack.c.l.b16 %v447
        %v576 = vunpack.c.l.b16 %v448
        %v577 = vunpack.c.l.b16 %v449
        %v578 = vunpack.c.l.b16 %v450
        %v579 = vunpack.c.l.b16 %v451
        %v580 = vunpack.c.l.b16 %v452
        %v581 = vunpack.c.l.b16 %v453
        %v582 = vunpack.c.l.b16 %v454
        %v583 = vunpack.c.l.b16 %v455
        %v584 = vunpack.c.l.b16 %v456
        %v585 = vunpack.c.l.b16 %v457
        %v586 = vunpack.c.l.b16 %v458
        %v587 = vpack.c.b16 %v524, %v523
        %v588 = vpack.c.b16 %v526, %v525
        %v589 = vpack.c.b16 %v528, %v527
        %v590 = vpack.c.b16 %v530, %v529
        %v591 = vpack.c.b16 %v532, %v531
        %v592 = vpack.c.b16 %v534, %v533
        %v593 = vpack.c.b16 %v536, %v535
        %v594 = vpack.c.b16 %v538, %v537
        %v595 = vpack.c.b16 %v540, %v539
        %v596 = vpack.c.b16 %v542, %v541
        %v597 = vpack.c.b16 %v544, %v543
        %v598 = vpack.c.b16 %v546, %v545
        %v599 = vpack.c.b16 %v548, %v547
        %v600 = vpack.c.b16 %v550, %v549
        %v601 = vpack.c.b16 %v552, %v551
        %v602 = vpack.c.b16 %v554, %v553
        %v603 = vpack.c.b16 %v556, %v555
        %v604 = vpack.c.b16 %v558, %v557
        %v605 = vpack.c.b16 %v560, %v559
        %v606 = vpack.c.b16 %v562, %v561
        %v607 = vpack.c.b16 %v564, %v563
        %v608 = vpack.c.b16 %v566, %v565
        %v609 = vpack.c.b16 %v568, %v567
        %v610 = vpack.c.b16 %v570, %v569
        %v611 = vpack.c.b16 %v572, %v571
        %v612 = vpack.c.b16 %v574, %v573
        %v613 = vpack.c.b16 %v576, %v575
        %v614 = vpack.c.b16 %v578, %v577
        %v615 = vpack.c.b16 %v580, %v579
        %v616 = vpack.c.b16 %v582, %v581
        %v617 = vpack.c.b16 %v584, %v583
        %v618 = vpack.c.b16 %v586, %v585
        %651 = vmatprep.subr.bf16.mxu0 0
        %652 = vmatpush1.bf16.msra.mxu0 %v587
        %653 = vmatprep.subr.bf16.mxu0 0
        %654 = vmatpush1.bf16.msra.mxu0 %v588
        %655 = vmatprep.subr.bf16.mxu0 0
        %656 = vmatpush1.bf16.msra.mxu0 %v589
        %657 = vmatprep.subr.bf16.mxu0 0
        %658 = vmatpush1.bf16.msra.mxu0 %v590
        %659 = vmatprep.subr.bf16.mxu0 0
        %660 = vmatpush1.bf16.msra.mxu0 %v591
        %661 = vmatprep.subr.bf16.mxu0 0
        %662 = vmatpush1.bf16.msra.mxu0 %v592
        %663 = vmatprep.subr.bf16.mxu0 0
        %664 = vmatpush1.bf16.msra.mxu0 %v593
        %665 = vmatprep.subr.bf16.mxu0 0
        %666 = vmatpush1.bf16.msra.mxu0 %v594
        %667 = vmatprep.subr.bf16.mxu0 0
        %668 = vmatpush1.bf16.msra.mxu0 %v595
        %669 = vmatprep.subr.bf16.mxu0 0
        %670 = vmatpush1.bf16.msra.mxu0 %v596
        %671 = vmatprep.subr.bf16.mxu0 0
        %672 = vmatpush1.bf16.msra.mxu0 %v597
        %673 = vmatprep.subr.bf16.mxu0 0
        %674 = vmatpush1.bf16.msra.mxu0 %v598
        %675 = vmatprep.subr.bf16.mxu0 0
        %676 = vmatpush1.bf16.msra.mxu0 %v599
        %677 = vmatprep.subr.bf16.mxu0 0
        %678 = vmatpush1.bf16.msra.mxu0 %v600
        %679 = vmatprep.subr.bf16.mxu0 0
        %680 = vmatpush1.bf16.msra.mxu0 %v601
        %681 = vmatprep.subr.bf16.mxu0 0
        %682 = vmatpush1.bf16.msra.mxu0 %v602
        %683 = vmatprep.mubr.bf16.mxu0 %v388
        %684 = vmatmul.mubr.bf16.gmra.mrb[0].mxu0 %v387
        %v685 = vpop.f32.mrb[0].mxu0
        %v686 = vadd.f32 0.0, %v685
        %v687 = vpop.f32.mrb[0].mxu0
        %v688 = vpop.f32.mrb[0].mxu0
        %v689 = vadd.f32 0.0, %v688
        %v690 = vpop.f32.mrb[0].mxu0
        %691 = vmatprep.mubr.bf16.mxu0 %v392
        %692 = vmatmul.mubr.bf16.gmra.mrb[0].mxu0 %v391
        %v693 = vpop.f32.mrb[0].mxu0
        %v694 = vadd.f32 0.0, %v693
        %v695 = vpop.f32.mrb[0].mxu0
        %v696 = vpop.f32.mrb[0].mxu0
        %v697 = vpop.f32.mrb[0].mxu0
        %698 = vdwg.mxu0
        %699 = vmatprep.subr.bf16.mxu0 0
        %700 = vmatpush1.bf16.msra.mxu0 %v603
        %701 = vmatprep.subr.bf16.mxu0 0
        %702 = vmatpush1.bf16.msra.mxu0 %v604
        %703 = vmatprep.subr.bf16.mxu0 0
        %704 = vmatpush1.bf16.msra.mxu0 %v605
        %705 = vmatprep.subr.bf16.mxu0 0
        %706 = vmatpush1.bf16.msra.mxu0 %v606
        %707 = vmatprep.subr.bf16.mxu0 0
        %708 = vmatpush1.bf16.msra.mxu0 %v607
        %709 = vmatprep.subr.bf16.mxu0 0
        %710 = vmatpush1.bf16.msra.mxu0 %v608
        %711 = vmatprep.subr.bf16.mxu0 0
        %712 = vmatpush1.bf16.msra.mxu0 %v609
        %713 = vmatprep.subr.bf16.mxu0 0
        %714 = vmatpush1.bf16.msra.mxu0 %v610
        %715 = vmatprep.subr.bf16.mxu0 0
        %716 = vmatpush1.bf16.msra.mxu0 %v611
        %717 = vmatprep.subr.bf16.mxu0 0
        %718 = vmatpush1.bf16.msra.mxu0 %v612
        %719 = vmatprep.subr.bf16.mxu0 0
        %720 = vmatpush1.bf16.msra.mxu0 %v613
        %721 = vmatprep.subr.bf16.mxu0 0
        %722 = vmatpush1.bf16.msra.mxu0 %v614
        %723 = vmatprep.subr.bf16.mxu0 0
        %724 = vmatpush1.bf16.msra.mxu0 %v615
        %725 = vmatprep.subr.bf16.mxu0 0
        %726 = vmatpush1.bf16.msra.mxu0 %v616
        %727 = vmatprep.subr.bf16.mxu0 0
        %728 = vmatpush1.bf16.msra.mxu0 %v617
        %729 = vmatprep.subr.bf16.mxu0 0
        %730 = vmatpush1.bf16.msra.mxu0 %v618
        %731 = vmatprep.mubr.bf16.mxu0 %v390
        %732 = vmatmul.mubr.bf16.gmra.mrb[0].mxu0 %v389
        %v733 = vpop.f32.mrb[0].mxu0
        %v734 = vadd.f32 %v686, %v733
        %v735 = vpop.f32.mrb[0].mxu0
        %v736 = vpop.f32.mrb[0].mxu0
        %v737 = vadd.f32 %v689, %v736
        %v738 = vpop.f32.mrb[0].mxu0
        %739 = vmatprep.mubr.bf16.mxu0 %v394
        %740 = vmatmul.mubr.bf16.gmra.mrb[0].mxu0 %v393
        %v741 = vpop.f32.mrb[0].mxu0
        %v742 = vadd.f32 %v694, %v741
        %v743 = vpop.f32.mrb[0].mxu0
        %v744 = vpop.f32.mrb[0].mxu0
        %v745 = vpop.f32.mrb[0].mxu0
        %746 = vdwg.mxu0
        %v747 = vadd.f32 %v372, %v734
        %v748 = vadd.f32 %v373, %v737
        %v749 = vadd.f32 %v374, %v742
        %750 = vst [vmem:[#allocation2] sm:$0xff] %v747
        %751 = vst [vmem:[#allocation2 + $0x8] sm:$0xff] %v748
        %752 = vst [vmem:[#allocation2 + $0x10] sm:$0xff] %v749
        // Predicated region
        $region41: #{encode_image.17} parent=35 // pred_check
          %p753 = pneg %p365
        $region42: #{encode_image.17} parent=35 // pred_check_branch
          %755 = sbr.rel (%p753) target = $region44
        $region43: #{encode_image.17} parent=35 // pred_region
          %v756 = vld [vmem:[#allocation2] sm:$0xff]
          %v757 = vld [vmem:[#allocation2 + $0x8] sm:$0xff]
          %v758 = vld [vmem:[#allocation2 + $0x10] sm:$0xff]
          %v759 = vld [vmem:[%s341] sm:$0x1]
          %v761 = vlaneseq
          %v762 = vshrl.u32 %v761, 7
          %v763 = vsub.s32 0, %v762
          %v764 = vrot.slane %v759, %v763
          %v766 = vadd.f32 %v756, %v764
          %v767 = vadd.f32 %v757, %v764
          %v768 = vadd.f32 %v758, %v764
          %v769 = vld [vmem:[%s353] sm:$0xff]
          %v770 = vld [vmem:[%s353 + $0x8] sm:$0xff]
          %v771 = vld [vmem:[%s353 + $0x10] sm:$0xff]
          %v772 = vadd.f32 %v766, %v769
          %v773 = vadd.f32 %v767, %v770
          %v774 = vadd.f32 %v768, %v771
          %775 = vst [vmem:[%s307] sm:$0xff] %v772
          %776 = vst [vmem:[%s307 + $0x8] sm:$0xff] %v773
          %777 = vst [vmem:[%s307 + $0x10] sm:$0xff] %v774
        $region44: #{encode_image.17} parent=35 // pred_fallthru
          _
        %s778 = sand.u32 %s154, 1
        %s779 = sand.u32 %s154, 1
        %s780 = smul.addr %s779, 24
        %s781 = scalar_lea.vmem [#allocation3], %s780
        // Predicated region
        $region45: #{encode_image.17} parent=35 // pred_check
          %p782 = pneg %p164
        $region46: #{encode_image.17} parent=35 // pred_check_branch
          %784 = sbr.rel (%p782) target = $region48
        $region47: #{encode_image.17} parent=35 // pred_region
          %s785 = smul.u32 3, %s20
          %s786 = ssub.s32 5, %s785
          %p787 = scmp.lt.s32.totalorder %s786, 3
          %s788 = scalar_select %p787, %s786, 3
          %s789 = smul.u32 128, %s788
          %p790 = scmp.ne.s32.totalorder 0, %s789
          %s791 = sadd.s32 %s21, %s785
          %s792 = smul.addr %s791, 8
          %s793 = scalar_lea.vmem %s4, %s792
          // Predicated region
          $region49: #{encode_image.17} parent=47 // pred_check
            %p794 = pneg %p790
          $region50: #{encode_image.17} parent=47 // pred_check_branch
            %796 = sbr.rel (%p794) target = $region52
          $region51: #{encode_image.17} parent=47 // pred_region
            // Predicated region
            $region53: #{encode_image.17} parent=51 // pred_check
              _
            $region54: #{encode_image.17} parent=51 // pred_check_branch
              %798 = sbr.rel (0) target = $region56
            $region55: #{encode_image.17} parent=51 // pred_region
              // Predicated region
              $region75: #{encode_image.17} parent=55 // pred_check
                _
              $region76: #{encode_image.17} parent=55 // pred_check_branch
                %852 = sbr.rel (0) target = $region78
              $region77: #{encode_image.17} parent=55 // pred_region
                %s853 = sdiv.u32.pop %s788, 3
                %s854 = srem.u32.pop %s788, 3
                // While loop
                $region79: #{encode_image.17} parent=77 // loop_pre_header
                  _
                $region80: #{encode_image.17} parent=77 // loop_header
                  %s856 = sphi 0, %s858
                  %p857 = scmp.ge.s32.totalorder %s856, %s853
                  %s861 = sphi 0, %s872
                  %s862 = sphi %s781, %s875
                  %s863 = sphi %s793, %s876
                $region81: #{encode_image.17} parent=77 // loop_header_branch
                  %860 = sbr.rel (%p857) target = $region85
                $region82: #{encode_image.17} parent=77 // loop_body
                  %v864 = vld [vmem:[%s862] sm:$0xff]
                  %865 = vst [vmem:[%s863] sm:$0xff] %v864
                  %v866 = vld [vmem:[%s862 + $0x8] sm:$0xff]
                  %867 = vst [vmem:[%s863 + $0x8] sm:$0xff] %v866
                  %v868 = vld [vmem:[%s862 + $0x10] sm:$0xff]
                  %869 = vst [vmem:[%s863 + $0x10] sm:$0xff] %v868
                  %s870 = sadd.s32 1, %s861
                  %p871 = scmp.ge.s32.totalorder %s870, %s853
                  %s872 = scalar_select %p871, 0, %s870
                  %s873 = smul.u32 %s872, 24
                  %s874 = smul.u32 %s872, 24
                  %s875 = scalar_lea.vmem %s781, %s873 [#allocation3]
                  %s876 = scalar_lea.vmem %s793, %s874
                $region83: #{encode_image.17} parent=77 // loop_footer
                  %s858 = sadd.s32 %s856, 1
                $region84: #{encode_image.17} parent=77 // loop_footer_branch
                  %855 = sbr.rel target = $region80
                $region85: #{encode_image.17} parent=77 // loop_exit
                  _
                %s877 = sdiv.u32.pop %s788, 3
                %s878 = srem.u32.pop %s788, 3
                %s879 = smul.u32 %s877, 3
                %s880 = smul.u32 8, %s879
                %s881 = scalar_lea.vmem %s781, %s880 [#allocation3]
                %s882 = smul.u32 8, %s879
                %s883 = scalar_lea.vmem %s793, %s882
                // While loop
                $region86: #{encode_image.17} parent=77 // loop_pre_header
                  _
                $region87: #{encode_image.17} parent=77 // loop_header
                  %s885 = sphi 0, %s887
                  %p886 = scmp.ge.s32.totalorder %s885, %s878
                  %s890 = sphi 0, %s897
                  %s891 = sphi %s881, %s900
                  %s892 = sphi %s883, %s901
                $region88: #{encode_image.17} parent=77 // loop_header_branch
                  %889 = sbr.rel (%p886) target = $region92
                $region89: #{encode_image.17} parent=77 // loop_body
                  %v893 = vld [vmem:[%s891] sm:$0xff]
                  %894 = vst [vmem:[%s892] sm:$0xff] %v893
                  %s895 = sadd.s32 1, %s890
                  %p896 = scmp.ge.s32.totalorder %s895, %s878
                  %s897 = scalar_select %p896, 0, %s895
                  %s898 = smul.u32 %s897, 8
                  %s899 = smul.u32 %s897, 8
                  %s900 = scalar_lea.vmem %s881, %s898 [#allocation3]
                  %s901 = scalar_lea.vmem %s883, %s899
                $region90: #{encode_image.17} parent=77 // loop_footer
                  %s887 = sadd.s32 %s885, 1
                $region91: #{encode_image.17} parent=77 // loop_footer_branch
                  %884 = sbr.rel target = $region87
                $region92: #{encode_image.17} parent=77 // loop_exit
                  _
              $region78: #{encode_image.17} parent=55 // pred_fallthru
                _
              // Predicated region
              $region93: #{encode_image.17} parent=55 // pred_check
                _
              $region94: #{encode_image.17} parent=55 // pred_check_branch
                %903 = sbr.rel target = $region96
              $region95: #{encode_image.17} parent=55 // pred_region
                _
              $region96: #{encode_image.17} parent=55 // pred_fallthru
                _
            $region56: #{encode_image.17} parent=51 // pred_fallthru
              _
            // Predicated region
            $region57: #{encode_image.17} parent=51 // pred_check
              _
            $region58: #{encode_image.17} parent=51 // pred_check_branch
              %800 = sbr.rel target = $region60
            $region59: #{encode_image.17} parent=51 // pred_region
              %s802 = sdiv.u32.pop %s788, 3
              %s803 = srem.u32.pop %s788, 3
              // While loop
              $region61: #{encode_image.17} parent=59 // loop_pre_header
                _
              $region62: #{encode_image.17} parent=59 // loop_header
                %s805 = sphi 0, %s807
                %p806 = scmp.ge.s32.totalorder %s805, %s802
                %s810 = sphi 0, %s821
                %s811 = sphi %s781, %s824
                %s812 = sphi %s793, %s825
              $region63: #{encode_image.17} parent=59 // loop_header_branch
                %809 = sbr.rel (%p806) target = $region67
              $region64: #{encode_image.17} parent=59 // loop_body
                %v813 = vld [vmem:[%s811] sm:$0xff]
                %814 = vst [vmem:[%s812] sm:$0xff] %v813
                %v815 = vld [vmem:[%s811 + $0x8] sm:$0xff]
                %816 = vst [vmem:[%s812 + $0x8] sm:$0xff] %v815
                %v817 = vld [vmem:[%s811 + $0x10] sm:$0xff]
                %818 = vst [vmem:[%s812 + $0x10] sm:$0xff] %v817
                %s819 = sadd.s32 1, %s810
                %p820 = scmp.ge.s32.totalorder %s819, %s802
                %s821 = scalar_select %p820, 0, %s819
                %s822 = smul.u32 %s821, 24
                %s823 = smul.u32 %s821, 24
                %s824 = scalar_lea.vmem %s781, %s822 [#allocation3]
                %s825 = scalar_lea.vmem %s793, %s823
              $region65: #{encode_image.17} parent=59 // loop_footer
                %s807 = sadd.s32 %s805, 1
              $region66: #{encode_image.17} parent=59 // loop_footer_branch
                %804 = sbr.rel target = $region62
              $region67: #{encode_image.17} parent=59 // loop_exit
                _
              %s826 = sdiv.u32.pop %s788, 3
              %s827 = srem.u32.pop %s788, 3
              %s828 = smul.u32 %s826, 3
              %s829 = smul.u32 8, %s828
              %s830 = scalar_lea.vmem %s781, %s829 [#allocation3]
              %s831 = smul.u32 8, %s828
              %s832 = scalar_lea.vmem %s793, %s831
              // While loop
              $region68: #{encode_image.17} parent=59 // loop_pre_header
                _
              $region69: #{encode_image.17} parent=59 // loop_header
                %s834 = sphi 0, %s836
                %p835 = scmp.ge.s32.totalorder %s834, %s827
                %s839 = sphi 0, %s846
                %s840 = sphi %s830, %s849
                %s841 = sphi %s832, %s850
              $region70: #{encode_image.17} parent=59 // loop_header_branch
                %838 = sbr.rel (%p835) target = $region74
              $region71: #{encode_image.17} parent=59 // loop_body
                %v842 = vld [vmem:[%s840] sm:$0xff]
                %843 = vst [vmem:[%s841] sm:$0xff] %v842
                %s844 = sadd.s32 1, %s839
                %p845 = scmp.ge.s32.totalorder %s844, %s827
                %s846 = scalar_select %p845, 0, %s844
                %s847 = smul.u32 %s846, 8
                %s848 = smul.u32 %s846, 8
                %s849 = scalar_lea.vmem %s830, %s847 [#allocation3]
                %s850 = scalar_lea.vmem %s832, %s848
              $region72: #{encode_image.17} parent=59 // loop_footer
                %s836 = sadd.s32 %s834, 1
              $region73: #{encode_image.17} parent=59 // loop_footer_branch
                %833 = sbr.rel target = $region69
              $region74: #{encode_image.17} parent=59 // loop_exit
                _
            $region60: #{encode_image.17} parent=51 // pred_fallthru
              _
          $region52: #{encode_image.17} parent=47 // pred_fallthru
            _
          %904 = vnop
        $region48: #{encode_image.17} parent=35 // pred_fallthru
          _
      $region36: #{encode_image.17} parent=5 // pred_fallthru
        _
      %p905 = scmp.le.s32.totalorder 2, %s10
      // Predicated region
      $region97: #{encode_image.17} parent=5 // pred_check
        %p906 = pneg %p905
      $region98: #{encode_image.17} parent=5 // pred_check_branch
        %908 = sbr.rel (%p906) target = $region100
      $region99: #{encode_image.17} parent=5 // pred_region
        %s909 = ssub.s32 %s10, 2
        // Predicated region
        $region101: #{encode_image.17} parent=99 // pred_check
          %p910 = pneg %p170
        $region102: #{encode_image.17} parent=99 // pred_check_branch
          %912 = sbr.rel (%p910) target = $region104
        $region103: #{encode_image.17} parent=99 // pred_region
          %s913 = sand.u32 %s155, 1
          %s914 = sand.u32 %s155, 1
          %s915 = smul.addr %s914, 24
          %s916 = scalar_lea.vmem [#allocation3], %s915
        $region104: #{encode_image.17} parent=99 // pred_fallthru
          _
      $region100: #{encode_image.17} parent=5 // pred_fallthru
        _
    $region6: #{encode_image.17} parent=1 // loop_footer
      %s14 = sadd.s32 1, %s10
    $region7: #{encode_image.17} parent=1 // loop_footer_branch
      %9 = sbr.rel target = $region3
    $region8: #{encode_image.17} parent=1 // loop_exit
      _

</llo_original>
